<compile_context>
chip_gen: v6e
topology: v6e:2x2x1
jax: 0.10.0
libtpu: 0.0.40
codegen_flags: <defaults>
</compile_context>

<pallas_src>
import functools

import jax
import jax.numpy as jnp
import numpy as np
from jax.experimental import pallas as pl
from jax.experimental.pallas import tpu as pltpu

_LN_EPS = 1e-5
_SQRT_2_OVER_PI = 0.7978845608028654


def _gelu_tanh(x):
    # GELU, tanh approximation (== torch nn.GELU(approximate='tanh')).
    # |error| vs exact erf-GELU <= ~3e-3; tanh runs on the EUP slot instead of
    # a ~15-op VALU erf polynomial.
    return 0.5 * x * (1.0 + jnp.tanh(_SQRT_2_OVER_PI * (x + 0.044715 * (x * x * x))))


# ---------------------------------------------------------------------------
# Pallas kernel: one batch tile (bt batch elements, all seq tokens) per step.
# ---------------------------------------------------------------------------
def encoder_kernel(x_ref,
                   pavg_ref, g1_ref, be1_ref,
                   wqkv_ref, bqkv_ref, wo_ref, bo_ref,
                   g2_ref, be2_ref,
                   w1_ref, b1_ref, w2_ref, b2_ref,
                   wm_ref, bm_ref,
                   o_ref,
                   *, n_groups, group_heads, head_dim, feats, seq, bt):
    gw = group_heads * head_dim            # lane width of one head super-block
    rows = bt * seq

    x = x_ref[...].reshape(rows, feats)    # (R, feats), f32
    pavg = pavg_ref[...]                   # (gw, gw) block-average matrix, bf16
    g1 = g1_ref[...]; be1 = be1_ref[...]
    g2 = g2_ref[...]; be2 = be2_ref[...]

    def mm(a, w):
        # bf16 MXU matmul with f32 accumulation (weights are already bf16).
        return jnp.dot(a.astype(jnp.bfloat16), w,
                       preferred_element_type=jnp.float32)

    def ln(vec, g, be):
        # Per-head LayerNorm, lane-dense: pavg = blockdiag(ones(hd,hd)/hd), so
        # vec @ pavg gives each lane its own head's mean.  bf16 operands / f32
        # accumulation (perf-review: f32 MXU passes are ~3x more expensive).
        mean = mm(vec, pavg)
        xc = vec - mean
        var = mm(xc * xc, pavg)
        return xc * jax.lax.rsqrt(var + _LN_EPS) * g + be

    out2_parts = []
    for j in range(n_groups):
        gl = j * gw
        xg = x[:, gl:gl + gw]

        # ---- Multi-head self-attention on LN1(x), this head-group ----------
        xn = ln(xg, g1, be1)
        # Fused Q/K/V: one (R, gw) @ (gw, 3*gw) grouped block-diagonal matmul.
        # 1/sqrt(feats) already folded into the Q block (host side).
        qkv = (mm(xn, wqkv_ref[j]) + bqkv_ref[j]).astype(jnp.bfloat16)
        q = qkv[:, 0 * gw:1 * gw].reshape(bt, seq, gw)
        k = qkv[:, 1 * gw:2 * gw].reshape(bt, seq, gw)
        v = qkv[:, 2 * gw:3 * gw].reshape(bt, seq, gw)

        acc = jnp.zeros((rows, gw), jnp.float32)
        # TODO(synk): for group_heads >= ~8 or seq >= ~256, switch this static
        # loop to lax.fori_loop / flash-style key tiling to bound live ranges.
        for h in range(group_heads):
            lo = h * head_dim
            hi = lo + head_dim
            qi = q[:, :, lo:hi]
            ki = k[:, :, lo:hi]
            vi = v[:, :, lo:hi]
            s = jnp.einsum("bqd,bkd->bqk", qi, ki,
                           preferred_element_type=jnp.float32)      # (bt, n, n)
            s = s - jnp.max(s, axis=-1, keepdims=True)
            e = jnp.exp(s)
            prob = e * pl.reciprocal(jnp.sum(e, axis=-1, keepdims=True),
                                     approx=True)
            ai = jnp.einsum("bqk,bkd->bqd", prob.astype(jnp.bfloat16), vi,
                            preferred_element_type=jnp.float32)     # (bt, n, hd)
            # Per-head output projection folded in, accumulated lane-dense into
            # the group-width f32 accumulator (no masked sub-128-lane stores).
            acc = acc + mm(ai.reshape(rows, head_dim), wo_ref[j, lo:hi, :])

        out1 = acc + bo_ref[j] + xg            # residual on the pre-LN input

        # ---- FeedForward on LN2(out1): GELU after BOTH linears (as in ref) --
        yn = ln(out1, g2, be2)
        t1 = _gelu_tanh(mm(yn, w1_ref[j]) + b1_ref[j])
        t2 = _gelu_tanh(mm(t1, w2_ref[j]) + b2_ref[j])
        out2_parts.append(t2 + out1)

    out2 = out2_parts[0] if n_groups == 1 else jnp.concatenate(out2_parts, axis=1)

    # ---- Method 0 merge: dense Linear(feats, feats), lane-dense store -------
    out = mm(out2, wm_ref[...]) + bm_ref[...]
    o_ref[...] = out.reshape(bt, seq, feats).astype(o_ref.dtype)


# ---------------------------------------------------------------------------
# Host-side parameter packing (grouped block-diagonal weights)
# ---------------------------------------------------------------------------
def _block_diag(blocks):
    """(g, r, c) -> (g*r, g*c) block-diagonal matrix."""
    g, r, c = blocks.shape
    out = jnp.zeros((g * r, g * c), blocks.dtype)
    for i in range(g):
        out = out.at[i * r:(i + 1) * r, i * c:(i + 1) * c].set(blocks[i])
    return out


def choose_group_heads(head, head_dim, target_lanes=256):
    """Heads per super-block: keep each densified block ~one MXU tile wide.
    (perf-review: cuts block-diag FLOP inflation from head x to group x)."""
    gh = max(1, min(head, target_lanes // max(1, head_dim)))
    while head % gh:
        gh -= 1
    return gh


def pack_params(p, head, group_heads):
    """Repack per-head torch-style params into the kernel's grouped layout."""
    head_, hd, _ = p["wq"].shape
    assert head_ == head and head % group_heads == 0
    feats = head * hd
    gh = group_heads
    ng = head // gh
    scale = 1.0 / (feats ** 0.5)      # torch: softmax(q k^T / sqrt(feats))

    def gbd(w):      # (head, r, c) -> (ng, gh*r, gh*c) grouped block-diagonal
        return jnp.stack([_block_diag(w[j * gh:(j + 1) * gh]) for j in range(ng)])

    def gbias(bvec):  # (head, c) -> (ng, 1, gh*c)
        return jnp.stack([bvec[j * gh:(j + 1) * gh].reshape(1, -1)
                          for j in range(ng)])

    wqkv = jnp.concatenate([gbd(p["wq"]) * scale,   # fold scale into Q
                            gbd(p["wk"]),
                            gbd(p["wv"])], axis=2)                  # (ng, gw, 3gw)
    bqkv = jnp.concatenate([gbias(p["bq"]) * scale,
                            gbias(p["bk"]),
                            gbias(p["bv"])], axis=2)                # (ng, 1, 3gw)

    pavg = _block_diag(jnp.ones((gh, hd, hd), jnp.float32) / hd)    # (gw, gw)

    def tile_ln(v):   # (1, hd) -> (1, gw): same gamma/beta for every head
        return jnp.tile(v.reshape(1, hd), (1, gh)).astype(jnp.float32)

    return dict(
        pavg=pavg.astype(jnp.bfloat16),
        g1=tile_ln(p["g1"]), be1=tile_ln(p["be1"]),
        wqkv=wqkv.astype(jnp.bfloat16),
        bqkv=bqkv.astype(jnp.float32),
        wo=gbd(p["wo"]).astype(jnp.bfloat16),
        bo=gbias(p["bo"]).astype(jnp.float32),
        g2=tile_ln(p["g2"]), be2=tile_ln(p["be2"]),
        w1=gbd(p["w1"]).astype(jnp.bfloat16),
        b1=gbias(p["b1"]).astype(jnp.float32),
        w2=gbd(p["w2"]).astype(jnp.bfloat16),
        b2=gbias(p["b2"]).astype(jnp.float32),
        wm=p["wm"].astype(jnp.bfloat16),
        bm=p["bm"].reshape(1, feats).astype(jnp.float32),
    )


PACKED_ORDER = ("pavg", "g1", "be1", "wqkv", "bqkv", "wo", "bo",
                "g2", "be2", "w1", "b1", "w2", "b2", "wm", "bm")


# ---------------------------------------------------------------------------
# VMEM budgeting / tile derivation
# ---------------------------------------------------------------------------
def _vmem_capacity_bytes():
    try:
        cap = getattr(pltpu.get_tpu_info(), "vmem_capacity_bytes", None)
        if cap:
            return int(cap)
    except Exception:
        pass
    return 64 * 1024 * 1024     # conservative fallback (v7x per-core VMEM)


def _step_bytes(bt, seq, feats, gw):
    """Per-grid-step VMEM estimate INCLUDING the large f32 intermediates
    (perf-review: blocks + params alone badly undercounts)."""
    rows = bt * seq
    f32 = 4
    blocks = (2 + 2) * rows * feats * f32          # double-buffered x + out tiles
    inter = rows * f32 * (4 * feats + 16 * gw)     # qkv / t1 / LN / residual temps
    scores = 3 * bt * seq * seq * f32              # s / e / p of one attention head
    return blocks + inter + scores


def _choose_batch_tile(b, seq, feats, gw, vmem_cap, param_bytes):
    budget = int(0.6 * vmem_cap) - 2 * param_bytes
    budget = max(budget, _step_bytes(1, seq, feats, gw))   # always allow bt=1
    min_steps = min(b, 4)        # >= 2 grid steps per TensorCore on dual-TC parts
    best = 1
    for bt in range(1, b + 1):
        if b % bt:
            continue
        if b // bt < min_steps:
            break
        if _step_bytes(bt, seq, feats, gw) <= budget:
            best = bt
    return best


def _const_index_map(ndim):
    def im(i):
        return (0,) * ndim
    return im


# ---------------------------------------------------------------------------
# Wrapper
# ---------------------------------------------------------------------------
def transformer_encoder(x, packed, *, head, group_heads, batch_tile=None):
    b, n, feats = x.shape
    hd = feats // head
    assert feats == head * hd and head % group_heads == 0
    ng = head // group_heads
    gw = group_heads * hd

    plist = [packed[name] for name in PACKED_ORDER]
    param_bytes = sum(int(np.prod(a.shape)) * a.dtype.itemsize for a in plist)

    cap = _vmem_capacity_bytes()
    if batch_tile is None:
        batch_tile = _choose_batch_tile(b, n, feats, gw, cap, param_bytes)
    assert b % batch_tile == 0, "batch must be divisible by batch_tile"
    grid = (b // batch_tile,)

    # Generation-aware VMEM budget: ~65% on 64 MiB parts (v7x), ~80% on 128 MiB
    # parts (v5e/v6e); always cover the estimated need with headroom.
    frac = 0.65 if cap <= 64 * 1024 * 1024 else 0.80
    need = 2 * param_bytes + _step_bytes(batch_tile, n, feats, gw)
    vmem_limit = int(min(frac * cap, max(need + (8 << 20), 32 << 20)))

    kernel = functools.partial(encoder_kernel, n_groups=ng,
                               group_heads=group_heads, head_dim=hd,
                               feats=feats, seq=n, bt=batch_tile)

    x_spec = pl.BlockSpec((batch_tile, n, feats), lambda i: (i, 0, 0))
    out_spec = pl.BlockSpec((batch_tile, n, feats), lambda i: (i, 0, 0))

    def build(weight_mode):
        w_specs = []
        for a in plist:
            if weight_mode is None:
                w_specs.append(pl.BlockSpec(a.shape, _const_index_map(a.ndim)))
            else:
                w_specs.append(pl.BlockSpec(a.shape, _const_index_map(a.ndim),
                                            pipeline_mode=weight_mode))
        return pl.pallas_call(
            kernel,
            out_shape=jax.ShapeDtypeStruct((b, n, feats), jnp.float32),
            grid_spec=pltpu.PrefetchScalarGridSpec(
                num_scalar_prefetch=0,
                grid=grid,
                in_specs=[x_spec] + w_specs,
                out_specs=out_spec),
            compiler_params=pltpu.CompilerParams(
                dimension_semantics=("parallel",),
                vmem_limit_bytes=vmem_limit),
        )

    try:
        # Weights never change across grid steps -> single-buffer them
        # (perf-review: default double-buffering wastes ~param_bytes of VMEM).
        return build(pl.Buffered(1))(x, *plist)
    except Exception:
        # TODO(synk): fall back if this jax build rejects buffer_count=1.
        return build(None)(x, *plist)


# ---------------------------------------------------------------------------
# Deterministic parameter init (synthetic; shapes match the torch module)
# ---------------------------------------------------------------------------
def init_params(key, feats, head):
    hd = feats // head
    keys = jax.random.split(key, 18)

    def w(k, shape, scale=0.1):
        return (scale * jax.random.normal(k, shape)).astype(jnp.float32)

    return dict(
        g1=(1.0 + w(keys[0], (1, hd))).astype(jnp.float32),
        be1=w(keys[1], (1, hd)),
        wq=w(keys[2], (head, hd, hd)),
        bq=w(keys[3], (head, hd)),
        wk=w(keys[4], (head, hd, hd)),
        bk=w(keys[5], (head, hd)),
        wv=w(keys[6], (head, hd, hd)),
        bv=w(keys[7], (head, hd)),
        wo=w(keys[8], (head, hd, hd)),
        bo=w(keys[9], (head, hd)),
        g2=(1.0 + w(keys[10], (1, hd))).astype(jnp.float32),
        be2=w(keys[11], (1, hd)),
        w1=w(keys[12], (head, hd, 4 * hd)),
        b1=w(keys[13], (head, 4 * hd)),
        w2=w(keys[14], (head, 4 * hd, hd)),
        b2=w(keys[15], (head, hd)),
        wm=w(keys[16], (feats, feats)),
        bm=w(keys[17], (1, feats)),
    )


# ---------------------------------------------------------------------------
# Pure-JAX f32 reference (mirrors the torch forward exactly) for validation
# ---------------------------------------------------------------------------
def reference(x, p, head):
    b, n, feats = x.shape
    hd = feats // head
    x4 = x.reshape(b, n, head, hd)

    def ln(v, g, be):
        m = v.mean(-1, keepdims=True)
        var = ((v - m) ** 2).mean(-1, keepdims=True)
        return (v - m) / jnp.sqrt(var + 1e-5) * g.reshape(hd) + be.reshape(hd)

    xn = ln(x4, p["g1"], p["be1"])
    q = jnp.einsum("bnhi,hio->bnho", xn, p["wq"]) + p["bq"][None, None]
    k = jnp.einsum("bnhi,hio->bnho", xn, p["wk"]) + p["bk"][None, None]
    v = jnp.einsum("bnhi,hio->bnho", xn, p["wv"]) + p["bv"][None, None]
    qT, kT, vT = (a.transpose(0, 2, 1, 3) for a in (q, k, v))
    s = jax.nn.softmax(jnp.einsum("bhif,bhjf->bhij", qT, kT) / (feats ** 0.5), axis=-1)
    attn = jnp.einsum("bhij,bhjf->bihf", s, vT)                       # (b, n, h, hd)
    attn = jnp.einsum("bnhi,hio->bnho", attn, p["wo"]) + p["bo"][None, None]
    out1 = attn + x4

    yn = ln(out1, p["g2"], p["be2"])
    t1 = jax.nn.gelu(jnp.einsum("bnhi,hio->bnho", yn, p["w1"]) + p["b1"][None, None],
                     approximate=False)
    t2 = jax.nn.gelu(jnp.einsum("bnhi,hio->bnho", t1, p["w2"]) + p["b2"][None, None],
                     approximate=False)
    out2 = t2 + out1

    flat = out2.reshape(b, n, feats)
    return flat @ p["wm"] + p["bm"].reshape(feats)


# ---------------------------------------------------------------------------
if __name__ == "__main__":
    B, N, FEATS, HEAD = 2, 8, 32, 4   # head_dim = 8, mlp hidden per head = 32

    key = jax.random.PRNGKey(0)
    kx, kp = jax.random.split(key)
    x = jax.random.normal(kx, (B, N, FEATS), dtype=jnp.float32)
    params = init_params(kp, FEATS, HEAD)

    hd = FEATS // HEAD
    gh = choose_group_heads(HEAD, hd)          # toy: all 4 heads in one group
    packed = pack_params(params, HEAD, gh)

    out = transformer_encoder(x, packed, head=HEAD, group_heads=gh)
    out = jax.block_until_ready(out)

    ref = jax.block_until_ready(reference(x, params, HEAD))
    assert out.shape == (B, N, FEATS)
    # Tolerance covers bf16 matmul operands (f32 accumulation), bf16 LayerNorm
    # mean/var matmuls, tanh-GELU and approx-reciprocal softmax vs the exact
    # erf f32 reference.
    np.testing.assert_allclose(np.asarray(out), np.asarray(ref), rtol=4e-2, atol=4e-2)

    print("KERNEL_OK")
</pallas_src>

<mosaic_0001>
module attributes {stable_mosaic.version = 11 : i64} {
  func.func @encoder_kernel(%arg0: i32, %arg1: memref<1x8x32xf32, #tpu.memory_space<vmem>>, %arg2: memref<32x32xbf16, #tpu.memory_space<vmem>>, %arg3: memref<1x32xf32, #tpu.memory_space<vmem>>, %arg4: memref<1x32xf32, #tpu.memory_space<vmem>>, %arg5: memref<1x32x96xbf16, #tpu.memory_space<vmem>>, %arg6: memref<1x1x96xf32, #tpu.memory_space<vmem>>, %arg7: memref<1x32x32xbf16, #tpu.memory_space<vmem>>, %arg8: memref<1x1x32xf32, #tpu.memory_space<vmem>>, %arg9: memref<1x32xf32, #tpu.memory_space<vmem>>, %arg10: memref<1x32xf32, #tpu.memory_space<vmem>>, %arg11: memref<1x32x128xbf16, #tpu.memory_space<vmem>>, %arg12: memref<1x1x128xf32, #tpu.memory_space<vmem>>, %arg13: memref<1x128x32xbf16, #tpu.memory_space<vmem>>, %arg14: memref<1x1x32xf32, #tpu.memory_space<vmem>>, %arg15: memref<32x32xbf16, #tpu.memory_space<vmem>>, %arg16: memref<1x32xf32, #tpu.memory_space<vmem>>, %arg17: memref<1x8x32xf32, #tpu.memory_space<vmem>>) attributes {dimension_semantics = [#tpu.dimension_semantics<parallel>], iteration_bounds = array<i64: 2>, scalar_prefetch = 0 : i64, scratch_operands = 0 : i64, tpu.core_type = #tpu.core_type<tc>, window_params = [{transform_indices = @transform_0, window_bounds = array<i64: 1, 8, 32>}, {pipeline_mode = #tpu.pipeline_mode<synchronous>, transform_indices = @transform_1, window_bounds = array<i64: 32, 32>}, {pipeline_mode = #tpu.pipeline_mode<synchronous>, transform_indices = @transform_2, window_bounds = array<i64: 1, 32>}, {pipeline_mode = #tpu.pipeline_mode<synchronous>, transform_indices = @transform_3, window_bounds = array<i64: 1, 32>}, {pipeline_mode = #tpu.pipeline_mode<synchronous>, transform_indices = @transform_4, window_bounds = array<i64: 1, 32, 96>}, {pipeline_mode = #tpu.pipeline_mode<synchronous>, transform_indices = @transform_5, window_bounds = array<i64: 1, 1, 96>}, {pipeline_mode = #tpu.pipeline_mode<synchronous>, transform_indices = @transform_6, window_bounds = array<i64: 1, 32, 32>}, {pipeline_mode = #tpu.pipeline_mode<synchronous>, transform_indices = @transform_7, window_bounds = array<i64: 1, 1, 32>}, {pipeline_mode = #tpu.pipeline_mode<synchronous>, transform_indices = @transform_8, window_bounds = array<i64: 1, 32>}, {pipeline_mode = #tpu.pipeline_mode<synchronous>, transform_indices = @transform_9, window_bounds = array<i64: 1, 32>}, {pipeline_mode = #tpu.pipeline_mode<synchronous>, transform_indices = @transform_10, window_bounds = array<i64: 1, 32, 128>}, {pipeline_mode = #tpu.pipeline_mode<synchronous>, transform_indices = @transform_11, window_bounds = array<i64: 1, 1, 128>}, {pipeline_mode = #tpu.pipeline_mode<synchronous>, transform_indices = @transform_12, window_bounds = array<i64: 1, 128, 32>}, {pipeline_mode = #tpu.pipeline_mode<synchronous>, transform_indices = @transform_13, window_bounds = array<i64: 1, 1, 32>}, {pipeline_mode = #tpu.pipeline_mode<synchronous>, transform_indices = @transform_14, window_bounds = array<i64: 32, 32>}, {pipeline_mode = #tpu.pipeline_mode<synchronous>, transform_indices = @transform_15, window_bounds = array<i64: 1, 32>}, {transform_indices = @transform_16, window_bounds = array<i64: 1, 8, 32>}]} {
    %c0 = arith.constant 0 : index
    %c0_0 = arith.constant 0 : index
    %c0_1 = arith.constant 0 : index
    %0 = vector.load %arg1[%c0, %c0_0, %c0_1] : memref<1x8x32xf32, #tpu.memory_space<vmem>>, vector<1x8x32xf32>
    %1 = vector.shape_cast %0 : vector<1x8x32xf32> to vector<8x32xf32>
    %c0_2 = arith.constant 0 : index
    %c0_3 = arith.constant 0 : index
    %2 = vector.load %arg2[%c0_2, %c0_3] : memref<32x32xbf16, #tpu.memory_space<vmem>>, vector<32x32xbf16>
    %c0_4 = arith.constant 0 : index
    %c0_5 = arith.constant 0 : index
    %3 = vector.load %arg3[%c0_4, %c0_5] : memref<1x32xf32, #tpu.memory_space<vmem>>, vector<1x32xf32>
    %c0_6 = arith.constant 0 : index
    %c0_7 = arith.constant 0 : index
    %4 = vector.load %arg4[%c0_6, %c0_7] : memref<1x32xf32, #tpu.memory_space<vmem>>, vector<1x32xf32>
    %c0_8 = arith.constant 0 : index
    %c0_9 = arith.constant 0 : index
    %5 = vector.load %arg9[%c0_8, %c0_9] : memref<1x32xf32, #tpu.memory_space<vmem>>, vector<1x32xf32>
    %c0_10 = arith.constant 0 : index
    %c0_11 = arith.constant 0 : index
    %6 = vector.load %arg10[%c0_10, %c0_11] : memref<1x32xf32, #tpu.memory_space<vmem>>, vector<1x32xf32>
    %7 = arith.truncf %1 : vector<8x32xf32> to vector<8x32xbf16>
    %cst = arith.constant dense<0.000000e+00> : vector<8x32xf32>
    %8 = tpu.matmul %7, %2, %cst {dimension_numbers = #tpu.dot_dimension_numbers<[1], [0], [0], [1], [0, 0, 1, 1], [], []>} : vector<8x32xbf16>, vector<32x32xbf16>, vector<8x32xf32> -> vector<8x32xf32>
    %9 = arith.subf %1, %8 : vector<8x32xf32>
    %10 = arith.mulf %9, %9 : vector<8x32xf32>
    %11 = arith.truncf %10 : vector<8x32xf32> to vector<8x32xbf16>
    %cst_12 = arith.constant dense<0.000000e+00> : vector<8x32xf32>
    %12 = tpu.matmul %11, %2, %cst_12 {dimension_numbers = #tpu.dot_dimension_numbers<[1], [0], [0], [1], [0, 0, 1, 1], [], []>} : vector<8x32xbf16>, vector<32x32xbf16>, vector<8x32xf32> -> vector<8x32xf32>
    %cst_13 = arith.constant 9.99999974E-6 : f32
    %13 = vector.broadcast %cst_13 : f32 to vector<8x32xf32>
    %14 = arith.addf %12, %13 : vector<8x32xf32>
    %15 = math.rsqrt %14 : vector<8x32xf32>
    %16 = arith.mulf %9, %15 : vector<8x32xf32>
    %17 = vector.broadcast %3 : vector<1x32xf32> to vector<8x32xf32>
    %18 = arith.mulf %16, %17 : vector<8x32xf32>
    %19 = vector.broadcast %4 : vector<1x32xf32> to vector<8x32xf32>
    %20 = arith.addf %18, %19 : vector<8x32xf32>
    %c0_14 = arith.constant 0 : index
    %c0_15 = arith.constant 0 : index
    %c0_16 = arith.constant 0 : index
    %21 = vector.load %arg5[%c0_14, %c0_15, %c0_16] : memref<1x32x96xbf16, #tpu.memory_space<vmem>>, vector<1x32x96xbf16>
    %22 = vector.shape_cast %21 : vector<1x32x96xbf16> to vector<32x96xbf16>
    %23 = arith.truncf %20 : vector<8x32xf32> to vector<8x32xbf16>
    %cst_17 = arith.constant dense<0.000000e+00> : vector<8x96xf32>
    %24 = tpu.matmul %23, %22, %cst_17 {dimension_numbers = #tpu.dot_dimension_numbers<[1], [0], [0], [1], [0, 0, 1, 1], [], []>} : vector<8x32xbf16>, vector<32x96xbf16>, vector<8x96xf32> -> vector<8x96xf32>
    %c0_18 = arith.constant 0 : index
    %c0_19 = arith.constant 0 : index
    %c0_20 = arith.constant 0 : index
    %25 = vector.load %arg6[%c0_18, %c0_19, %c0_20] : memref<1x1x96xf32, #tpu.memory_space<vmem>>, vector<1x1x96xf32>
    %26 = vector.shape_cast %25 : vector<1x1x96xf32> to vector<1x96xf32>
    %27 = vector.broadcast %26 : vector<1x96xf32> to vector<8x96xf32>
    %28 = arith.addf %24, %27 : vector<8x96xf32>
    %29 = arith.truncf %28 : vector<8x96xf32> to vector<8x96xbf16>
    %30 = vector.extract_strided_slice %29 {offsets = [0, 0], sizes = [8, 32], strides = [1, 1]} : vector<8x96xbf16> to vector<8x32xbf16>
    %31 = vector.shape_cast %30 : vector<8x32xbf16> to vector<1x8x32xbf16>
    %32 = vector.extract_strided_slice %29 {offsets = [0, 32], sizes = [8, 32], strides = [1, 1]} : vector<8x96xbf16> to vector<8x32xbf16>
    %33 = vector.shape_cast %32 : vector<8x32xbf16> to vector<1x8x32xbf16>
    %34 = vector.extract_strided_slice %29 {offsets = [0, 64], sizes = [8, 32], strides = [1, 1]} : vector<8x96xbf16> to vector<8x32xbf16>
    %35 = vector.shape_cast %34 : vector<8x32xbf16> to vector<1x8x32xbf16>
    %cst_21 = arith.constant 0.000000e+00 : f32
    %36 = vector.broadcast %cst_21 : f32 to vector<8x32xf32>
    %37 = vector.extract_strided_slice %31 {offsets = [0, 0, 0], sizes = [1, 8, 8], strides = [1, 1, 1]} : vector<1x8x32xbf16> to vector<1x8x8xbf16>
    %38 = vector.extract_strided_slice %33 {offsets = [0, 0, 0], sizes = [1, 8, 8], strides = [1, 1, 1]} : vector<1x8x32xbf16> to vector<1x8x8xbf16>
    %39 = vector.extract_strided_slice %35 {offsets = [0, 0, 0], sizes = [1, 8, 8], strides = [1, 1, 1]} : vector<1x8x32xbf16> to vector<1x8x8xbf16>
    "tpu.trace_start"() <{level = 10 : i32, message = "bqd,bkd->bqk"}> : () -> ()
    %cst_22 = arith.constant dense<0.000000e+00> : vector<1x8x8xf32>
    %40 = tpu.matmul %37, %38, %cst_22 {dimension_numbers = #tpu.dot_dimension_numbers<[2], [2], [1], [1], [0, 0, 0, 1, 1, 1], [0], [0]>} : vector<1x8x8xbf16>, vector<1x8x8xbf16>, vector<1x8x8xf32> -> vector<1x8x8xf32>
    "tpu.trace_stop"() : () -> ()
    %cst_23 = arith.constant dense<0xFF800000> : vector<1x8xf32>
    %41 = vector.multi_reduction <maximumf>, %40, %cst_23 [2] : vector<1x8x8xf32> to vector<1x8xf32>
    %42 = vector.shape_cast %41 : vector<1x8xf32> to vector<1x8x1xf32>
    %43 = vector.broadcast %42 : vector<1x8x1xf32> to vector<1x8x8xf32>
    %44 = arith.subf %40, %43 : vector<1x8x8xf32>
    %45 = math.exp %44 : vector<1x8x8xf32>
    %cst_24 = arith.constant dense<0.000000e+00> : vector<1x8xf32>
    %46 = vector.multi_reduction <add>, %45, %cst_24 [2] : vector<1x8x8xf32> to vector<1x8xf32>
    %47 = vector.shape_cast %46 : vector<1x8xf32> to vector<1x8x1xf32>
    %48 = tpu.reciprocal %47 {approx = true} : vector<1x8x1xf32> -> vector<1x8x1xf32>
    %49 = vector.broadcast %48 : vector<1x8x1xf32> to vector<1x8x8xf32>
    %50 = arith.mulf %45, %49 : vector<1x8x8xf32>
    %51 = arith.truncf %50 : vector<1x8x8xf32> to vector<1x8x8xbf16>
    "tpu.trace_start"() <{level = 10 : i32, message = "bqk,bkd->bqd"}> : () -> ()
    %cst_25 = arith.constant dense<0.000000e+00> : vector<1x8x8xf32>
    %52 = tpu.matmul %51, %39, %cst_25 {dimension_numbers = #tpu.dot_dimension_numbers<[2], [1], [1], [2], [0, 0, 0, 1, 1, 2], [0], [0]>} : vector<1x8x8xbf16>, vector<1x8x8xbf16>, vector<1x8x8xf32> -> vector<1x8x8xf32>
    "tpu.trace_stop"() : () -> ()
    %53 = vector.shape_cast %52 : vector<1x8x8xf32> to vector<8x8xf32>
    %c0_26 = arith.constant 0 : index
    %c0_27 = arith.constant 0 : index
    %c0_28 = arith.constant 0 : index
    %54 = vector.load %arg7[%c0_26, %c0_27, %c0_28] : memref<1x32x32xbf16, #tpu.memory_space<vmem>>, vector<1x8x32xbf16>
    %55 = vector.shape_cast %54 : vector<1x8x32xbf16> to vector<8x32xbf16>
    %56 = arith.truncf %53 : vector<8x8xf32> to vector<8x8xbf16>
    %cst_29 = arith.constant dense<0.000000e+00> : vector<8x32xf32>
    %57 = tpu.matmul %56, %55, %cst_29 {dimension_numbers = #tpu.dot_dimension_numbers<[1], [0], [0], [1], [0, 0, 1, 1], [], []>} : vector<8x8xbf16>, vector<8x32xbf16>, vector<8x32xf32> -> vector<8x32xf32>
    %58 = arith.addf %36, %57 : vector<8x32xf32>
    %59 = vector.extract_strided_slice %31 {offsets = [0, 0, 8], sizes = [1, 8, 8], strides = [1, 1, 1]} : vector<1x8x32xbf16> to vector<1x8x8xbf16>
    %60 = vector.extract_strided_slice %33 {offsets = [0, 0, 8], sizes = [1, 8, 8], strides = [1, 1, 1]} : vector<1x8x32xbf16> to vector<1x8x8xbf16>
    %61 = vector.extract_strided_slice %35 {offsets = [0, 0, 8], sizes = [1, 8, 8], strides = [1, 1, 1]} : vector<1x8x32xbf16> to vector<1x8x8xbf16>
    "tpu.trace_start"() <{level = 10 : i32, message = "bqd,bkd->bqk"}> : () -> ()
    %cst_30 = arith.constant dense<0.000000e+00> : vector<1x8x8xf32>
    %62 = tpu.matmul %59, %60, %cst_30 {dimension_numbers = #tpu.dot_dimension_numbers<[2], [2], [1], [1], [0, 0, 0, 1, 1, 1], [0], [0]>} : vector<1x8x8xbf16>, vector<1x8x8xbf16>, vector<1x8x8xf32> -> vector<1x8x8xf32>
    "tpu.trace_stop"() : () -> ()
    %cst_31 = arith.constant dense<0xFF800000> : vector<1x8xf32>
    %63 = vector.multi_reduction <maximumf>, %62, %cst_31 [2] : vector<1x8x8xf32> to vector<1x8xf32>
    %64 = vector.shape_cast %63 : vector<1x8xf32> to vector<1x8x1xf32>
    %65 = vector.broadcast %64 : vector<1x8x1xf32> to vector<1x8x8xf32>
    %66 = arith.subf %62, %65 : vector<1x8x8xf32>
    %67 = math.exp %66 : vector<1x8x8xf32>
    %cst_32 = arith.constant dense<0.000000e+00> : vector<1x8xf32>
    %68 = vector.multi_reduction <add>, %67, %cst_32 [2] : vector<1x8x8xf32> to vector<1x8xf32>
    %69 = vector.shape_cast %68 : vector<1x8xf32> to vector<1x8x1xf32>
    %70 = tpu.reciprocal %69 {approx = true} : vector<1x8x1xf32> -> vector<1x8x1xf32>
    %71 = vector.broadcast %70 : vector<1x8x1xf32> to vector<1x8x8xf32>
    %72 = arith.mulf %67, %71 : vector<1x8x8xf32>
    %73 = arith.truncf %72 : vector<1x8x8xf32> to vector<1x8x8xbf16>
    "tpu.trace_start"() <{level = 10 : i32, message = "bqk,bkd->bqd"}> : () -> ()
    %cst_33 = arith.constant dense<0.000000e+00> : vector<1x8x8xf32>
    %74 = tpu.matmul %73, %61, %cst_33 {dimension_numbers = #tpu.dot_dimension_numbers<[2], [1], [1], [2], [0, 0, 0, 1, 1, 2], [0], [0]>} : vector<1x8x8xbf16>, vector<1x8x8xbf16>, vector<1x8x8xf32> -> vector<1x8x8xf32>
    "tpu.trace_stop"() : () -> ()
    %75 = vector.shape_cast %74 : vector<1x8x8xf32> to vector<8x8xf32>
    %c0_34 = arith.constant 0 : index
    %c8 = arith.constant 8 : index
    %c0_35 = arith.constant 0 : index
    %76 = vector.load %arg7[%c0_34, %c8, %c0_35] : memref<1x32x32xbf16, #tpu.memory_space<vmem>>, vector<1x8x32xbf16>
    %77 = vector.shape_cast %76 : vector<1x8x32xbf16> to vector<8x32xbf16>
    %78 = arith.truncf %75 : vector<8x8xf32> to vector<8x8xbf16>
    %cst_36 = arith.constant dense<0.000000e+00> : vector<8x32xf32>
    %79 = tpu.matmul %78, %77, %cst_36 {dimension_numbers = #tpu.dot_dimension_numbers<[1], [0], [0], [1], [0, 0, 1, 1], [], []>} : vector<8x8xbf16>, vector<8x32xbf16>, vector<8x32xf32> -> vector<8x32xf32>
    %80 = arith.addf %58, %79 : vector<8x32xf32>
    %81 = vector.extract_strided_slice %31 {offsets = [0, 0, 16], sizes = [1, 8, 8], strides = [1, 1, 1]} : vector<1x8x32xbf16> to vector<1x8x8xbf16>
    %82 = vector.extract_strided_slice %33 {offsets = [0, 0, 16], sizes = [1, 8, 8], strides = [1, 1, 1]} : vector<1x8x32xbf16> to vector<1x8x8xbf16>
    %83 = vector.extract_strided_slice %35 {offsets = [0, 0, 16], sizes = [1, 8, 8], strides = [1, 1, 1]} : vector<1x8x32xbf16> to vector<1x8x8xbf16>
    "tpu.trace_start"() <{level = 10 : i32, message = "bqd,bkd->bqk"}> : () -> ()
    %cst_37 = arith.constant dense<0.000000e+00> : vector<1x8x8xf32>
    %84 = tpu.matmul %81, %82, %cst_37 {dimension_numbers = #tpu.dot_dimension_numbers<[2], [2], [1], [1], [0, 0, 0, 1, 1, 1], [0], [0]>} : vector<1x8x8xbf16>, vector<1x8x8xbf16>, vector<1x8x8xf32> -> vector<1x8x8xf32>
    "tpu.trace_stop"() : () -> ()
    %cst_38 = arith.constant dense<0xFF800000> : vector<1x8xf32>
    %85 = vector.multi_reduction <maximumf>, %84, %cst_38 [2] : vector<1x8x8xf32> to vector<1x8xf32>
    %86 = vector.shape_cast %85 : vector<1x8xf32> to vector<1x8x1xf32>
    %87 = vector.broadcast %86 : vector<1x8x1xf32> to vector<1x8x8xf32>
    %88 = arith.subf %84, %87 : vector<1x8x8xf32>
    %89 = math.exp %88 : vector<1x8x8xf32>
    %cst_39 = arith.constant dense<0.000000e+00> : vector<1x8xf32>
    %90 = vector.multi_reduction <add>, %89, %cst_39 [2] : vector<1x8x8xf32> to vector<1x8xf32>
    %91 = vector.shape_cast %90 : vector<1x8xf32> to vector<1x8x1xf32>
    %92 = tpu.reciprocal %91 {approx = true} : vector<1x8x1xf32> -> vector<1x8x1xf32>
    %93 = vector.broadcast %92 : vector<1x8x1xf32> to vector<1x8x8xf32>
    %94 = arith.mulf %89, %93 : vector<1x8x8xf32>
    %95 = arith.truncf %94 : vector<1x8x8xf32> to vector<1x8x8xbf16>
    "tpu.trace_start"() <{level = 10 : i32, message = "bqk,bkd->bqd"}> : () -> ()
    %cst_40 = arith.constant dense<0.000000e+00> : vector<1x8x8xf32>
    %96 = tpu.matmul %95, %83, %cst_40 {dimension_numbers = #tpu.dot_dimension_numbers<[2], [1], [1], [2], [0, 0, 0, 1, 1, 2], [0], [0]>} : vector<1x8x8xbf16>, vector<1x8x8xbf16>, vector<1x8x8xf32> -> vector<1x8x8xf32>
    "tpu.trace_stop"() : () -> ()
    %97 = vector.shape_cast %96 : vector<1x8x8xf32> to vector<8x8xf32>
    %c0_41 = arith.constant 0 : index
    %c16 = arith.constant 16 : index
    %c0_42 = arith.constant 0 : index
    %98 = vector.load %arg7[%c0_41, %c16, %c0_42] : memref<1x32x32xbf16, #tpu.memory_space<vmem>>, vector<1x8x32xbf16>
    %99 = vector.shape_cast %98 : vector<1x8x32xbf16> to vector<8x32xbf16>
    %100 = arith.truncf %97 : vector<8x8xf32> to vector<8x8xbf16>
    %cst_43 = arith.constant dense<0.000000e+00> : vector<8x32xf32>
    %101 = tpu.matmul %100, %99, %cst_43 {dimension_numbers = #tpu.dot_dimension_numbers<[1], [0], [0], [1], [0, 0, 1, 1], [], []>} : vector<8x8xbf16>, vector<8x32xbf16>, vector<8x32xf32> -> vector<8x32xf32>
    %102 = arith.addf %80, %101 : vector<8x32xf32>
    %103 = vector.extract_strided_slice %31 {offsets = [0, 0, 24], sizes = [1, 8, 8], strides = [1, 1, 1]} : vector<1x8x32xbf16> to vector<1x8x8xbf16>
    %104 = vector.extract_strided_slice %33 {offsets = [0, 0, 24], sizes = [1, 8, 8], strides = [1, 1, 1]} : vector<1x8x32xbf16> to vector<1x8x8xbf16>
    %105 = vector.extract_strided_slice %35 {offsets = [0, 0, 24], sizes = [1, 8, 8], strides = [1, 1, 1]} : vector<1x8x32xbf16> to vector<1x8x8xbf16>
    "tpu.trace_start"() <{level = 10 : i32, message = "bqd,bkd->bqk"}> : () -> ()
    %cst_44 = arith.constant dense<0.000000e+00> : vector<1x8x8xf32>
    %106 = tpu.matmul %103, %104, %cst_44 {dimension_numbers = #tpu.dot_dimension_numbers<[2], [2], [1], [1], [0, 0, 0, 1, 1, 1], [0], [0]>} : vector<1x8x8xbf16>, vector<1x8x8xbf16>, vector<1x8x8xf32> -> vector<1x8x8xf32>
    "tpu.trace_stop"() : () -> ()
    %cst_45 = arith.constant dense<0xFF800000> : vector<1x8xf32>
    %107 = vector.multi_reduction <maximumf>, %106, %cst_45 [2] : vector<1x8x8xf32> to vector<1x8xf32>
    %108 = vector.shape_cast %107 : vector<1x8xf32> to vector<1x8x1xf32>
    %109 = vector.broadcast %108 : vector<1x8x1xf32> to vector<1x8x8xf32>
    %110 = arith.subf %106, %109 : vector<1x8x8xf32>
    %111 = math.exp %110 : vector<1x8x8xf32>
    %cst_46 = arith.constant dense<0.000000e+00> : vector<1x8xf32>
    %112 = vector.multi_reduction <add>, %111, %cst_46 [2] : vector<1x8x8xf32> to vector<1x8xf32>
    %113 = vector.shape_cast %112 : vector<1x8xf32> to vector<1x8x1xf32>
    %114 = tpu.reciprocal %113 {approx = true} : vector<1x8x1xf32> -> vector<1x8x1xf32>
    %115 = vector.broadcast %114 : vector<1x8x1xf32> to vector<1x8x8xf32>
    %116 = arith.mulf %111, %115 : vector<1x8x8xf32>
    %117 = arith.truncf %116 : vector<1x8x8xf32> to vector<1x8x8xbf16>
    "tpu.trace_start"() <{level = 10 : i32, message = "bqk,bkd->bqd"}> : () -> ()
    %cst_47 = arith.constant dense<0.000000e+00> : vector<1x8x8xf32>
    %118 = tpu.matmul %117, %105, %cst_47 {dimension_numbers = #tpu.dot_dimension_numbers<[2], [1], [1], [2], [0, 0, 0, 1, 1, 2], [0], [0]>} : vector<1x8x8xbf16>, vector<1x8x8xbf16>, vector<1x8x8xf32> -> vector<1x8x8xf32>
    "tpu.trace_stop"() : () -> ()
    %119 = vector.shape_cast %118 : vector<1x8x8xf32> to vector<8x8xf32>
    %c0_48 = arith.constant 0 : index
    %c24 = arith.constant 24 : index
    %c0_49 = arith.constant 0 : index
    %120 = vector.load %arg7[%c0_48, %c24, %c0_49] : memref<1x32x32xbf16, #tpu.memory_space<vmem>>, vector<1x8x32xbf16>
    %121 = vector.shape_cast %120 : vector<1x8x32xbf16> to vector<8x32xbf16>
    %122 = arith.truncf %119 : vector<8x8xf32> to vector<8x8xbf16>
    %cst_50 = arith.constant dense<0.000000e+00> : vector<8x32xf32>
    %123 = tpu.matmul %122, %121, %cst_50 {dimension_numbers = #tpu.dot_dimension_numbers<[1], [0], [0], [1], [0, 0, 1, 1], [], []>} : vector<8x8xbf16>, vector<8x32xbf16>, vector<8x32xf32> -> vector<8x32xf32>
    %124 = arith.addf %102, %123 : vector<8x32xf32>
    %c0_51 = arith.constant 0 : index
    %c0_52 = arith.constant 0 : index
    %c0_53 = arith.constant 0 : index
    %125 = vector.load %arg8[%c0_51, %c0_52, %c0_53] : memref<1x1x32xf32, #tpu.memory_space<vmem>>, vector<1x1x32xf32>
    %126 = vector.shape_cast %125 : vector<1x1x32xf32> to vector<1x32xf32>
    %127 = vector.broadcast %126 : vector<1x32xf32> to vector<8x32xf32>
    %128 = arith.addf %124, %127 : vector<8x32xf32>
    %129 = arith.addf %128, %1 : vector<8x32xf32>
    %130 = arith.truncf %129 : vector<8x32xf32> to vector<8x32xbf16>
    %cst_54 = arith.constant dense<0.000000e+00> : vector<8x32xf32>
    %131 = tpu.matmul %130, %2, %cst_54 {dimension_numbers = #tpu.dot_dimension_numbers<[1], [0], [0], [1], [0, 0, 1, 1], [], []>} : vector<8x32xbf16>, vector<32x32xbf16>, vector<8x32xf32> -> vector<8x32xf32>
    %132 = arith.subf %129, %131 : vector<8x32xf32>
    %133 = arith.mulf %132, %132 : vector<8x32xf32>
    %134 = arith.truncf %133 : vector<8x32xf32> to vector<8x32xbf16>
    %cst_55 = arith.constant dense<0.000000e+00> : vector<8x32xf32>
    %135 = tpu.matmul %134, %2, %cst_55 {dimension_numbers = #tpu.dot_dimension_numbers<[1], [0], [0], [1], [0, 0, 1, 1], [], []>} : vector<8x32xbf16>, vector<32x32xbf16>, vector<8x32xf32> -> vector<8x32xf32>
    %cst_56 = arith.constant 9.99999974E-6 : f32
    %136 = vector.broadcast %cst_56 : f32 to vector<8x32xf32>
    %137 = arith.addf %135, %136 : vector<8x32xf32>
    %138 = math.rsqrt %137 : vector<8x32xf32>
    %139 = arith.mulf %132, %138 : vector<8x32xf32>
    %140 = vector.broadcast %5 : vector<1x32xf32> to vector<8x32xf32>
    %141 = arith.mulf %139, %140 : vector<8x32xf32>
    %142 = vector.broadcast %6 : vector<1x32xf32> to vector<8x32xf32>
    %143 = arith.addf %141, %142 : vector<8x32xf32>
    %c0_57 = arith.constant 0 : index
    %c0_58 = arith.constant 0 : index
    %c0_59 = arith.constant 0 : index
    %144 = vector.load %arg11[%c0_57, %c0_58, %c0_59] : memref<1x32x128xbf16, #tpu.memory_space<vmem>>, vector<1x32x128xbf16>
    %145 = vector.shape_cast %144 : vector<1x32x128xbf16> to vector<32x128xbf16>
    %146 = arith.truncf %143 : vector<8x32xf32> to vector<8x32xbf16>
    %cst_60 = arith.constant dense<0.000000e+00> : vector<8x128xf32>
    %147 = tpu.matmul %146, %145, %cst_60 {dimension_numbers = #tpu.dot_dimension_numbers<[1], [0], [0], [1], [0, 0, 1, 1], [], []>} : vector<8x32xbf16>, vector<32x128xbf16>, vector<8x128xf32> -> vector<8x128xf32>
    %c0_61 = arith.constant 0 : index
    %c0_62 = arith.constant 0 : index
    %c0_63 = arith.constant 0 : index
    %148 = vector.load %arg12[%c0_61, %c0_62, %c0_63] : memref<1x1x128xf32, #tpu.memory_space<vmem>>, vector<1x1x128xf32>
    %149 = vector.shape_cast %148 : vector<1x1x128xf32> to vector<1x128xf32>
    %150 = vector.broadcast %149 : vector<1x128xf32> to vector<8x128xf32>
    %151 = arith.addf %147, %150 : vector<8x128xf32>
    %cst_64 = arith.constant 5.000000e-01 : f32
    %152 = vector.broadcast %cst_64 : f32 to vector<8x128xf32>
    %153 = arith.mulf %152, %151 : vector<8x128xf32>
    %154 = arith.mulf %151, %151 : vector<8x128xf32>
    %155 = arith.mulf %154, %151 : vector<8x128xf32>
    %cst_65 = arith.constant 4.471500e-02 : f32
    %156 = vector.broadcast %cst_65 : f32 to vector<8x128xf32>
    %157 = arith.mulf %156, %155 : vector<8x128xf32>
    %158 = arith.addf %151, %157 : vector<8x128xf32>
    %cst_66 = arith.constant 0.797884583 : f32
    %159 = vector.broadcast %cst_66 : f32 to vector<8x128xf32>
    %160 = arith.mulf %159, %158 : vector<8x128xf32>
    %161 = math.tanh %160 : vector<8x128xf32>
    %cst_67 = arith.constant 1.000000e+00 : f32
    %162 = vector.broadcast %cst_67 : f32 to vector<8x128xf32>
    %163 = arith.addf %162, %161 : vector<8x128xf32>
    %164 = arith.mulf %153, %163 : vector<8x128xf32>
    %c0_68 = arith.constant 0 : index
    %c0_69 = arith.constant 0 : index
    %c0_70 = arith.constant 0 : index
    %165 = vector.load %arg13[%c0_68, %c0_69, %c0_70] : memref<1x128x32xbf16, #tpu.memory_space<vmem>>, vector<1x128x32xbf16>
    %166 = vector.shape_cast %165 : vector<1x128x32xbf16> to vector<128x32xbf16>
    %167 = arith.truncf %164 : vector<8x128xf32> to vector<8x128xbf16>
    %cst_71 = arith.constant dense<0.000000e+00> : vector<8x32xf32>
    %168 = tpu.matmul %167, %166, %cst_71 {dimension_numbers = #tpu.dot_dimension_numbers<[1], [0], [0], [1], [0, 0, 1, 1], [], []>} : vector<8x128xbf16>, vector<128x32xbf16>, vector<8x32xf32> -> vector<8x32xf32>
    %c0_72 = arith.constant 0 : index
    %c0_73 = arith.constant 0 : index
    %c0_74 = arith.constant 0 : index
    %169 = vector.load %arg14[%c0_72, %c0_73, %c0_74] : memref<1x1x32xf32, #tpu.memory_space<vmem>>, vector<1x1x32xf32>
    %170 = vector.shape_cast %169 : vector<1x1x32xf32> to vector<1x32xf32>
    %171 = vector.broadcast %170 : vector<1x32xf32> to vector<8x32xf32>
    %172 = arith.addf %168, %171 : vector<8x32xf32>
    %cst_75 = arith.constant 5.000000e-01 : f32
    %173 = vector.broadcast %cst_75 : f32 to vector<8x32xf32>
    %174 = arith.mulf %173, %172 : vector<8x32xf32>
    %175 = arith.mulf %172, %172 : vector<8x32xf32>
    %176 = arith.mulf %175, %172 : vector<8x32xf32>
    %cst_76 = arith.constant 4.471500e-02 : f32
    %177 = vector.broadcast %cst_76 : f32 to vector<8x32xf32>
    %178 = arith.mulf %177, %176 : vector<8x32xf32>
    %179 = arith.addf %172, %178 : vector<8x32xf32>
    %cst_77 = arith.constant 0.797884583 : f32
    %180 = vector.broadcast %cst_77 : f32 to vector<8x32xf32>
    %181 = arith.mulf %180, %179 : vector<8x32xf32>
    %182 = math.tanh %181 : vector<8x32xf32>
    %cst_78 = arith.constant 1.000000e+00 : f32
    %183 = vector.broadcast %cst_78 : f32 to vector<8x32xf32>
    %184 = arith.addf %183, %182 : vector<8x32xf32>
    %185 = arith.mulf %174, %184 : vector<8x32xf32>
    %186 = arith.addf %185, %129 : vector<8x32xf32>
    %c0_79 = arith.constant 0 : index
    %c0_80 = arith.constant 0 : index
    %187 = vector.load %arg15[%c0_79, %c0_80] : memref<32x32xbf16, #tpu.memory_space<vmem>>, vector<32x32xbf16>
    %188 = arith.truncf %186 : vector<8x32xf32> to vector<8x32xbf16>
    %cst_81 = arith.constant dense<0.000000e+00> : vector<8x32xf32>
    %189 = tpu.matmul %188, %187, %cst_81 {dimension_numbers = #tpu.dot_dimension_numbers<[1], [0], [0], [1], [0, 0, 1, 1], [], []>} : vector<8x32xbf16>, vector<32x32xbf16>, vector<8x32xf32> -> vector<8x32xf32>
    %c0_82 = arith.constant 0 : index
    %c0_83 = arith.constant 0 : index
    %190 = vector.load %arg16[%c0_82, %c0_83] : memref<1x32xf32, #tpu.memory_space<vmem>>, vector<1x32xf32>
    %191 = vector.broadcast %190 : vector<1x32xf32> to vector<8x32xf32>
    %192 = arith.addf %189, %191 : vector<8x32xf32>
    %193 = vector.shape_cast %192 : vector<8x32xf32> to vector<1x8x32xf32>
    %c0_84 = arith.constant 0 : index
    %c0_85 = arith.constant 0 : index
    %c0_86 = arith.constant 0 : index
    %194 = vector.load %arg17[%c0_84, %c0_85, %c0_86] : memref<1x8x32xf32, #tpu.memory_space<vmem>>, vector<1x8x32xf32>
    tpu.vector_store %arg17[%c0_84, %c0_85, %c0_86], %193 {strides = array<i32>} : memref<1x8x32xf32, #tpu.memory_space<vmem>>, vector<1x8x32xf32>,
    return
  }
  func.func @transform_0(%arg0: i32) -> (i32, i32, i32) {
    %c0_i32 = arith.constant 0 : i32
    %c0_i32_0 = arith.constant 0 : i32
    %c0_i32_1 = arith.constant 0 : i32
    return %arg0, %c0_i32, %c0_i32_0 : i32, i32, i32
  }
  func.func @transform_1(%arg0: i32) -> (i32, i32) {
    %c0_i32 = arith.constant 0 : i32
    %c0_i32_0 = arith.constant 0 : i32
    %c0_i32_1 = arith.constant 0 : i32
    return %c0_i32, %c0_i32_0 : i32, i32
  }
  func.func @transform_2(%arg0: i32) -> (i32, i32) {
    %c0_i32 = arith.constant 0 : i32
    %c0_i32_0 = arith.constant 0 : i32
    %c0_i32_1 = arith.constant 0 : i32
    return %c0_i32, %c0_i32_0 : i32, i32
  }
  func.func @transform_3(%arg0: i32) -> (i32, i32) {
    %c0_i32 = arith.constant 0 : i32
    %c0_i32_0 = arith.constant 0 : i32
    %c0_i32_1 = arith.constant 0 : i32
    return %c0_i32, %c0_i32_0 : i32, i32
  }
  func.func @transform_4(%arg0: i32) -> (i32, i32, i32) {
    %c0_i32 = arith.constant 0 : i32
    %c0_i32_0 = arith.constant 0 : i32
    %c0_i32_1 = arith.constant 0 : i32
    %c0_i32_2 = arith.constant 0 : i32
    return %c0_i32, %c0_i32_0, %c0_i32_1 : i32, i32, i32
  }
  func.func @transform_5(%arg0: i32) -> (i32, i32, i32) {
    %c0_i32 = arith.constant 0 : i32
    %c0_i32_0 = arith.constant 0 : i32
    %c0_i32_1 = arith.constant 0 : i32
    %c0_i32_2 = arith.constant 0 : i32
    return %c0_i32, %c0_i32_0, %c0_i32_1 : i32, i32, i32
  }
  func.func @transform_6(%arg0: i32) -> (i32, i32, i32) {
    %c0_i32 = arith.constant 0 : i32
    %c0_i32_0 = arith.constant 0 : i32
    %c0_i32_1 = arith.constant 0 : i32
    %c0_i32_2 = arith.constant 0 : i32
    return %c0_i32, %c0_i32_0, %c0_i32_1 : i32, i32, i32
  }
  func.func @transform_7(%arg0: i32) -> (i32, i32, i32) {
    %c0_i32 = arith.constant 0 : i32
    %c0_i32_0 = arith.constant 0 : i32
    %c0_i32_1 = arith.constant 0 : i32
    %c0_i32_2 = arith.constant 0 : i32
    return %c0_i32, %c0_i32_0, %c0_i32_1 : i32, i32, i32
  }
  func.func @transform_8(%arg0: i32) -> (i32, i32) {
    %c0_i32 = arith.constant 0 : i32
    %c0_i32_0 = arith.constant 0 : i32
    %c0_i32_1 = arith.constant 0 : i32
    return %c0_i32, %c0_i32_0 : i32, i32
  }
  func.func @transform_9(%arg0: i32) -> (i32, i32) {
    %c0_i32 = arith.constant 0 : i32
    %c0_i32_0 = arith.constant 0 : i32
    %c0_i32_1 = arith.constant 0 : i32
    return %c0_i32, %c0_i32_0 : i32, i32
  }
  func.func @transform_10(%arg0: i32) -> (i32, i32, i32) {
    %c0_i32 = arith.constant 0 : i32
    %c0_i32_0 = arith.constant 0 : i32
    %c0_i32_1 = arith.constant 0 : i32
    %c0_i32_2 = arith.constant 0 : i32
    return %c0_i32, %c0_i32_0, %c0_i32_1 : i32, i32, i32
  }
  func.func @transform_11(%arg0: i32) -> (i32, i32, i32) {
    %c0_i32 = arith.constant 0 : i32
    %c0_i32_0 = arith.constant 0 : i32
    %c0_i32_1 = arith.constant 0 : i32
    %c0_i32_2 = arith.constant 0 : i32
    return %c0_i32, %c0_i32_0, %c0_i32_1 : i32, i32, i32
  }
  func.func @transform_12(%arg0: i32) -> (i32, i32, i32) {
    %c0_i32 = arith.constant 0 : i32
    %c0_i32_0 = arith.constant 0 : i32
    %c0_i32_1 = arith.constant 0 : i32
    %c0_i32_2 = arith.constant 0 : i32
    return %c0_i32, %c0_i32_0, %c0_i32_1 : i32, i32, i32
  }
  func.func @transform_13(%arg0: i32) -> (i32, i32, i32) {
    %c0_i32 = arith.constant 0 : i32
    %c0_i32_0 = arith.constant 0 : i32
    %c0_i32_1 = arith.constant 0 : i32
    %c0_i32_2 = arith.constant 0 : i32
    return %c0_i32, %c0_i32_0, %c0_i32_1 : i32, i32, i32
  }
  func.func @transform_14(%arg0: i32) -> (i32, i32) {
    %c0_i32 = arith.constant 0 : i32
    %c0_i32_0 = arith.constant 0 : i32
    %c0_i32_1 = arith.constant 0 : i32
    return %c0_i32, %c0_i32_0 : i32, i32
  }
  func.func @transform_15(%arg0: i32) -> (i32, i32) {
    %c0_i32 = arith.constant 0 : i32
    %c0_i32_0 = arith.constant 0 : i32
    %c0_i32_1 = arith.constant 0 : i32
    return %c0_i32, %c0_i32_0 : i32, i32
  }
  func.func @transform_16(%arg0: i32) -> (i32, i32, i32) {
    %c0_i32 = arith.constant 0 : i32
    %c0_i32_0 = arith.constant 0 : i32
    %c0_i32_1 = arith.constant 0 : i32
    return %arg0, %c0_i32, %c0_i32_0 : i32, i32, i32
  }
}

module attributes {stable_mosaic.version = 11 : i64} {
  func.func @encoder_kernel(%arg0: i32, %arg1: memref<1x8x32xf32, #tpu.memory_space<vmem>>, %arg2: memref<32x32xbf16, #tpu.memory_space<vmem>>, %arg3: memref<1x32xf32, #tpu.memory_space<vmem>>, %arg4: memref<1x32xf32, #tpu.memory_space<vmem>>, %arg5: memref<1x32x96xbf16, #tpu.memory_space<vmem>>, %arg6: memref<1x1x96xf32, #tpu.memory_space<vmem>>, %arg7: memref<1x32x32xbf16, #tpu.memory_space<vmem>>, %arg8: memref<1x1x32xf32, #tpu.memory_space<vmem>>, %arg9: memref<1x32xf32, #tpu.memory_space<vmem>>, %arg10: memref<1x32xf32, #tpu.memory_space<vmem>>, %arg11: memref<1x32x128xbf16, #tpu.memory_space<vmem>>, %arg12: memref<1x1x128xf32, #tpu.memory_space<vmem>>, %arg13: memref<1x128x32xbf16, #tpu.memory_space<vmem>>, %arg14: memref<1x1x32xf32, #tpu.memory_space<vmem>>, %arg15: memref<32x32xbf16, #tpu.memory_space<vmem>>, %arg16: memref<1x32xf32, #tpu.memory_space<vmem>>, %arg17: memref<1x8x32xf32, #tpu.memory_space<vmem>>) attributes {dimension_semantics = [#tpu.dimension_semantics<parallel>], iteration_bounds = array<i64: 2>, scalar_prefetch = 0 : i64, scratch_operands = 0 : i64, tpu.core_type = #tpu.core_type<tc>, window_params = [{transform_indices = @transform_0, window_bounds = array<i64: 1, 8, 32>}, {pipeline_mode = #tpu.pipeline_mode<synchronous>, transform_indices = @transform_1, window_bounds = array<i64: 32, 32>}, {pipeline_mode = #tpu.pipeline_mode<synchronous>, transform_indices = @transform_2, window_bounds = array<i64: 1, 32>}, {pipeline_mode = #tpu.pipeline_mode<synchronous>, transform_indices = @transform_3, window_bounds = array<i64: 1, 32>}, {pipeline_mode = #tpu.pipeline_mode<synchronous>, transform_indices = @transform_4, window_bounds = array<i64: 1, 32, 96>}, {pipeline_mode = #tpu.pipeline_mode<synchronous>, transform_indices = @transform_5, window_bounds = array<i64: 1, 1, 96>}, {pipeline_mode = #tpu.pipeline_mode<synchronous>, transform_indices = @transform_6, window_bounds = array<i64: 1, 32, 32>}, {pipeline_mode = #tpu.pipeline_mode<synchronous>, transform_indices = @transform_7, window_bounds = array<i64: 1, 1, 32>}, {pipeline_mode = #tpu.pipeline_mode<synchronous>, transform_indices = @transform_8, window_bounds = array<i64: 1, 32>}, {pipeline_mode = #tpu.pipeline_mode<synchronous>, transform_indices = @transform_9, window_bounds = array<i64: 1, 32>}, {pipeline_mode = #tpu.pipeline_mode<synchronous>, transform_indices = @transform_10, window_bounds = array<i64: 1, 32, 128>}, {pipeline_mode = #tpu.pipeline_mode<synchronous>, transform_indices = @transform_11, window_bounds = array<i64: 1, 1, 128>}, {pipeline_mode = #tpu.pipeline_mode<synchronous>, transform_indices = @transform_12, window_bounds = array<i64: 1, 128, 32>}, {pipeline_mode = #tpu.pipeline_mode<synchronous>, transform_indices = @transform_13, window_bounds = array<i64: 1, 1, 32>}, {pipeline_mode = #tpu.pipeline_mode<synchronous>, transform_indices = @transform_14, window_bounds = array<i64: 32, 32>}, {pipeline_mode = #tpu.pipeline_mode<synchronous>, transform_indices = @transform_15, window_bounds = array<i64: 1, 32>}, {transform_indices = @transform_16, window_bounds = array<i64: 1, 8, 32>}]} {
    %c0 = arith.constant 0 : index
    %c0_0 = arith.constant 0 : index
    %c0_1 = arith.constant 0 : index
    %0 = vector.load %arg1[%c0, %c0_0, %c0_1] : memref<1x8x32xf32, #tpu.memory_space<vmem>>, vector<1x8x32xf32>
    %1 = vector.shape_cast %0 : vector<1x8x32xf32> to vector<8x32xf32>
    %c0_2 = arith.constant 0 : index
    %c0_3 = arith.constant 0 : index
    %2 = vector.load %arg2[%c0_2, %c0_3] : memref<32x32xbf16, #tpu.memory_space<vmem>>, vector<32x32xbf16>
    %c0_4 = arith.constant 0 : index
    %c0_5 = arith.constant 0 : index
    %3 = vector.load %arg3[%c0_4, %c0_5] : memref<1x32xf32, #tpu.memory_space<vmem>>, vector<1x32xf32>
    %c0_6 = arith.constant 0 : index
    %c0_7 = arith.constant 0 : index
    %4 = vector.load %arg4[%c0_6, %c0_7] : memref<1x32xf32, #tpu.memory_space<vmem>>, vector<1x32xf32>
    %c0_8 = arith.constant 0 : index
    %c0_9 = arith.constant 0 : index
    %5 = vector.load %arg9[%c0_8, %c0_9] : memref<1x32xf32, #tpu.memory_space<vmem>>, vector<1x32xf32>
    %c0_10 = arith.constant 0 : index
    %c0_11 = arith.constant 0 : index
    %6 = vector.load %arg10[%c0_10, %c0_11] : memref<1x32xf32, #tpu.memory_space<vmem>>, vector<1x32xf32>
    %7 = arith.truncf %1 : vector<8x32xf32> to vector<8x32xbf16>
    %cst = arith.constant dense<0.000000e+00> : vector<8x32xf32>
    %8 = tpu.matmul %7, %2, %cst {dimension_numbers = #tpu.dot_dimension_numbers<[1], [0], [0], [1], [0, 0, 1, 1], [], []>} : vector<8x32xbf16>, vector<32x32xbf16>, vector<8x32xf32> -> vector<8x32xf32>
    %9 = arith.subf %1, %8 : vector<8x32xf32>
    %10 = arith.mulf %9, %9 : vector<8x32xf32>
    %11 = arith.truncf %10 : vector<8x32xf32> to vector<8x32xbf16>
    %cst_12 = arith.constant dense<0.000000e+00> : vector<8x32xf32>
    %12 = tpu.matmul %11, %2, %cst_12 {dimension_numbers = #tpu.dot_dimension_numbers<[1], [0], [0], [1], [0, 0, 1, 1], [], []>} : vector<8x32xbf16>, vector<32x32xbf16>, vector<8x32xf32> -> vector<8x32xf32>
    %cst_13 = arith.constant 9.99999974E-6 : f32
    %13 = vector.broadcast %cst_13 : f32 to vector<8x32xf32>
    %14 = arith.addf %12, %13 : vector<8x32xf32>
    %15 = math.rsqrt %14 : vector<8x32xf32>
    %16 = arith.mulf %9, %15 : vector<8x32xf32>
    %17 = vector.broadcast %3 : vector<1x32xf32> to vector<8x32xf32>
    %18 = arith.mulf %16, %17 : vector<8x32xf32>
    %19 = vector.broadcast %4 : vector<1x32xf32> to vector<8x32xf32>
    %20 = arith.addf %18, %19 : vector<8x32xf32>
    %c0_14 = arith.constant 0 : index
    %c0_15 = arith.constant 0 : index
    %c0_16 = arith.constant 0 : index
    %21 = vector.load %arg5[%c0_14, %c0_15, %c0_16] : memref<1x32x96xbf16, #tpu.memory_space<vmem>>, vector<1x32x96xbf16>
    %22 = vector.shape_cast %21 : vector<1x32x96xbf16> to vector<32x96xbf16>
    %23 = arith.truncf %20 : vector<8x32xf32> to vector<8x32xbf16>
    %cst_17 = arith.constant dense<0.000000e+00> : vector<8x96xf32>
    %24 = tpu.matmul %23, %22, %cst_17 {dimension_numbers = #tpu.dot_dimension_numbers<[1], [0], [0], [1], [0, 0, 1, 1], [], []>} : vector<8x32xbf16>, vector<32x96xbf16>, vector<8x96xf32> -> vector<8x96xf32>
    %c0_18 = arith.constant 0 : index
    %c0_19 = arith.constant 0 : index
    %c0_20 = arith.constant 0 : index
    %25 = vector.load %arg6[%c0_18, %c0_19, %c0_20] : memref<1x1x96xf32, #tpu.memory_space<vmem>>, vector<1x1x96xf32>
    %26 = vector.shape_cast %25 : vector<1x1x96xf32> to vector<1x96xf32>
    %27 = vector.broadcast %26 : vector<1x96xf32> to vector<8x96xf32>
    %28 = arith.addf %24, %27 : vector<8x96xf32>
    %29 = arith.truncf %28 : vector<8x96xf32> to vector<8x96xbf16>
    %30 = vector.extract_strided_slice %29 {offsets = [0, 0], sizes = [8, 32], strides = [1, 1]} : vector<8x96xbf16> to vector<8x32xbf16>
    %31 = vector.shape_cast %30 : vector<8x32xbf16> to vector<1x8x32xbf16>
    %32 = vector.extract_strided_slice %29 {offsets = [0, 32], sizes = [8, 32], strides = [1, 1]} : vector<8x96xbf16> to vector<8x32xbf16>
    %33 = vector.shape_cast %32 : vector<8x32xbf16> to vector<1x8x32xbf16>
    %34 = vector.extract_strided_slice %29 {offsets = [0, 64], sizes = [8, 32], strides = [1, 1]} : vector<8x96xbf16> to vector<8x32xbf16>
    %35 = vector.shape_cast %34 : vector<8x32xbf16> to vector<1x8x32xbf16>
    %cst_21 = arith.constant 0.000000e+00 : f32
    %36 = vector.broadcast %cst_21 : f32 to vector<8x32xf32>
    %37 = vector.extract_strided_slice %31 {offsets = [0, 0, 0], sizes = [1, 8, 8], strides = [1, 1, 1]} : vector<1x8x32xbf16> to vector<1x8x8xbf16>
    %38 = vector.extract_strided_slice %33 {offsets = [0, 0, 0], sizes = [1, 8, 8], strides = [1, 1, 1]} : vector<1x8x32xbf16> to vector<1x8x8xbf16>
    %39 = vector.extract_strided_slice %35 {offsets = [0, 0, 0], sizes = [1, 8, 8], strides = [1, 1, 1]} : vector<1x8x32xbf16> to vector<1x8x8xbf16>
    "tpu.trace_start"() <{level = 10 : i32, message = "bqd,bkd->bqk"}> : () -> ()
    %cst_22 = arith.constant dense<0.000000e+00> : vector<1x8x8xf32>
    %40 = tpu.matmul %37, %38, %cst_22 {dimension_numbers = #tpu.dot_dimension_numbers<[2], [2], [1], [1], [0, 0, 0, 1, 1, 1], [0], [0]>} : vector<1x8x8xbf16>, vector<1x8x8xbf16>, vector<1x8x8xf32> -> vector<1x8x8xf32>
    "tpu.trace_stop"() : () -> ()
    %cst_23 = arith.constant dense<0xFF800000> : vector<1x8xf32>
    %41 = vector.multi_reduction <maximumf>, %40, %cst_23 [2] : vector<1x8x8xf32> to vector<1x8xf32>
    %42 = vector.shape_cast %41 : vector<1x8xf32> to vector<1x8x1xf32>
    %43 = vector.broadcast %42 : vector<1x8x1xf32> to vector<1x8x8xf32>
    %44 = arith.subf %40, %43 : vector<1x8x8xf32>
    %45 = math.exp %44 : vector<1x8x8xf32>
    %cst_24 = arith.constant dense<0.000000e+00> : vector<1x8xf32>
    %46 = vector.multi_reduction <add>, %45, %cst_24 [2] : vector<1x8x8xf32> to vector<1x8xf32>
    %47 = vector.shape_cast %46 : vector<1x8xf32> to vector<1x8x1xf32>
    %48 = tpu.reciprocal %47 {approx = true} : vector<1x8x1xf32> -> vector<1x8x1xf32>
    %49 = vector.broadcast %48 : vector<1x8x1xf32> to vector<1x8x8xf32>
    %50 = arith.mulf %45, %49 : vector<1x8x8xf32>
    %51 = arith.truncf %50 : vector<1x8x8xf32> to vector<1x8x8xbf16>
    "tpu.trace_start"() <{level = 10 : i32, message = "bqk,bkd->bqd"}> : () -> ()
    %cst_25 = arith.constant dense<0.000000e+00> : vector<1x8x8xf32>
    %52 = tpu.matmul %51, %39, %cst_25 {dimension_numbers = #tpu.dot_dimension_numbers<[2], [1], [1], [2], [0, 0, 0, 1, 1, 2], [0], [0]>} : vector<1x8x8xbf16>, vector<1x8x8xbf16>, vector<1x8x8xf32> -> vector<1x8x8xf32>
    "tpu.trace_stop"() : () -> ()
    %53 = vector.shape_cast %52 : vector<1x8x8xf32> to vector<8x8xf32>
    %c0_26 = arith.constant 0 : index
    %c0_27 = arith.constant 0 : index
    %c0_28 = arith.constant 0 : index
    %54 = vector.load %arg7[%c0_26, %c0_27, %c0_28] : memref<1x32x32xbf16, #tpu.memory_space<vmem>>, vector<1x8x32xbf16>
    %55 = vector.shape_cast %54 : vector<1x8x32xbf16> to vector<8x32xbf16>
    %56 = arith.truncf %53 : vector<8x8xf32> to vector<8x8xbf16>
    %cst_29 = arith.constant dense<0.000000e+00> : vector<8x32xf32>
    %57 = tpu.matmul %56, %55, %cst_29 {dimension_numbers = #tpu.dot_dimension_numbers<[1], [0], [0], [1], [0, 0, 1, 1], [], []>} : vector<8x8xbf16>, vector<8x32xbf16>, vector<8x32xf32> -> vector<8x32xf32>
    %58 = arith.addf %36, %57 : vector<8x32xf32>
    %59 = vector.extract_strided_slice %31 {offsets = [0, 0, 8], sizes = [1, 8, 8], strides = [1, 1, 1]} : vector<1x8x32xbf16> to vector<1x8x8xbf16>
    %60 = vector.extract_strided_slice %33 {offsets = [0, 0, 8], sizes = [1, 8, 8], strides = [1, 1, 1]} : vector<1x8x32xbf16> to vector<1x8x8xbf16>
    %61 = vector.extract_strided_slice %35 {offsets = [0, 0, 8], sizes = [1, 8, 8], strides = [1, 1, 1]} : vector<1x8x32xbf16> to vector<1x8x8xbf16>
    "tpu.trace_start"() <{level = 10 : i32, message = "bqd,bkd->bqk"}> : () -> ()
    %cst_30 = arith.constant dense<0.000000e+00> : vector<1x8x8xf32>
    %62 = tpu.matmul %59, %60, %cst_30 {dimension_numbers = #tpu.dot_dimension_numbers<[2], [2], [1], [1], [0, 0, 0, 1, 1, 1], [0], [0]>} : vector<1x8x8xbf16>, vector<1x8x8xbf16>, vector<1x8x8xf32> -> vector<1x8x8xf32>
    "tpu.trace_stop"() : () -> ()
    %cst_31 = arith.constant dense<0xFF800000> : vector<1x8xf32>
    %63 = vector.multi_reduction <maximumf>, %62, %cst_31 [2] : vector<1x8x8xf32> to vector<1x8xf32>
    %64 = vector.shape_cast %63 : vector<1x8xf32> to vector<1x8x1xf32>
    %65 = vector.broadcast %64 : vector<1x8x1xf32> to vector<1x8x8xf32>
    %66 = arith.subf %62, %65 : vector<1x8x8xf32>
    %67 = math.exp %66 : vector<1x8x8xf32>
    %cst_32 = arith.constant dense<0.000000e+00> : vector<1x8xf32>
    %68 = vector.multi_reduction <add>, %67, %cst_32 [2] : vector<1x8x8xf32> to vector<1x8xf32>
    %69 = vector.shape_cast %68 : vector<1x8xf32> to vector<1x8x1xf32>
    %70 = tpu.reciprocal %69 {approx = true} : vector<1x8x1xf32> -> vector<1x8x1xf32>
    %71 = vector.broadcast %70 : vector<1x8x1xf32> to vector<1x8x8xf32>
    %72 = arith.mulf %67, %71 : vector<1x8x8xf32>
    %73 = arith.truncf %72 : vector<1x8x8xf32> to vector<1x8x8xbf16>
    "tpu.trace_start"() <{level = 10 : i32, message = "bqk,bkd->bqd"}> : () -> ()
    %cst_33 = arith.constant dense<0.000000e+00> : vector<1x8x8xf32>
    %74 = tpu.matmul %73, %61, %cst_33 {dimension_numbers = #tpu.dot_dimension_numbers<[2], [1], [1], [2], [0, 0, 0, 1, 1, 2], [0], [0]>} : vector<1x8x8xbf16>, vector<1x8x8xbf16>, vector<1x8x8xf32> -> vector<1x8x8xf32>
    "tpu.trace_stop"() : () -> ()
    %75 = vector.shape_cast %74 : vector<1x8x8xf32> to vector<8x8xf32>
    %c0_34 = arith.constant 0 : index
    %c8 = arith.constant 8 : index
    %c0_35 = arith.constant 0 : index
    %76 = vector.load %arg7[%c0_34, %c8, %c0_35] : memref<1x32x32xbf16, #tpu.memory_space<vmem>>, vector<1x8x32xbf16>
    %77 = vector.shape_cast %76 : vector<1x8x32xbf16> to vector<8x32xbf16>
    %78 = arith.truncf %75 : vector<8x8xf32> to vector<8x8xbf16>
    %cst_36 = arith.constant dense<0.000000e+00> : vector<8x32xf32>
    %79 = tpu.matmul %78, %77, %cst_36 {dimension_numbers = #tpu.dot_dimension_numbers<[1], [0], [0], [1], [0, 0, 1, 1], [], []>} : vector<8x8xbf16>, vector<8x32xbf16>, vector<8x32xf32> -> vector<8x32xf32>
    %80 = arith.addf %58, %79 : vector<8x32xf32>
    %81 = vector.extract_strided_slice %31 {offsets = [0, 0, 16], sizes = [1, 8, 8], strides = [1, 1, 1]} : vector<1x8x32xbf16> to vector<1x8x8xbf16>
    %82 = vector.extract_strided_slice %33 {offsets = [0, 0, 16], sizes = [1, 8, 8], strides = [1, 1, 1]} : vector<1x8x32xbf16> to vector<1x8x8xbf16>
    %83 = vector.extract_strided_slice %35 {offsets = [0, 0, 16], sizes = [1, 8, 8], strides = [1, 1, 1]} : vector<1x8x32xbf16> to vector<1x8x8xbf16>
    "tpu.trace_start"() <{level = 10 : i32, message = "bqd,bkd->bqk"}> : () -> ()
    %cst_37 = arith.constant dense<0.000000e+00> : vector<1x8x8xf32>
    %84 = tpu.matmul %81, %82, %cst_37 {dimension_numbers = #tpu.dot_dimension_numbers<[2], [2], [1], [1], [0, 0, 0, 1, 1, 1], [0], [0]>} : vector<1x8x8xbf16>, vector<1x8x8xbf16>, vector<1x8x8xf32> -> vector<1x8x8xf32>
    "tpu.trace_stop"() : () -> ()
    %cst_38 = arith.constant dense<0xFF800000> : vector<1x8xf32>
    %85 = vector.multi_reduction <maximumf>, %84, %cst_38 [2] : vector<1x8x8xf32> to vector<1x8xf32>
    %86 = vector.shape_cast %85 : vector<1x8xf32> to vector<1x8x1xf32>
    %87 = vector.broadcast %86 : vector<1x8x1xf32> to vector<1x8x8xf32>
    %88 = arith.subf %84, %87 : vector<1x8x8xf32>
    %89 = math.exp %88 : vector<1x8x8xf32>
    %cst_39 = arith.constant dense<0.000000e+00> : vector<1x8xf32>
    %90 = vector.multi_reduction <add>, %89, %cst_39 [2] : vector<1x8x8xf32> to vector<1x8xf32>
    %91 = vector.shape_cast %90 : vector<1x8xf32> to vector<1x8x1xf32>
    %92 = tpu.reciprocal %91 {approx = true} : vector<1x8x1xf32> -> vector<1x8x1xf32>
    %93 = vector.broadcast %92 : vector<1x8x1xf32> to vector<1x8x8xf32>
    %94 = arith.mulf %89, %93 : vector<1x8x8xf32>
    %95 = arith.truncf %94 : vector<1x8x8xf32> to vector<1x8x8xbf16>
    "tpu.trace_start"() <{level = 10 : i32, message = "bqk,bkd->bqd"}> : () -> ()
    %cst_40 = arith.constant dense<0.000000e+00> : vector<1x8x8xf32>
    %96 = tpu.matmul %95, %83, %cst_40 {dimension_numbers = #tpu.dot_dimension_numbers<[2], [1], [1], [2], [0, 0, 0, 1, 1, 2], [0], [0]>} : vector<1x8x8xbf16>, vector<1x8x8xbf16>, vector<1x8x8xf32> -> vector<1x8x8xf32>
    "tpu.trace_stop"() : () -> ()
    %97 = vector.shape_cast %96 : vector<1x8x8xf32> to vector<8x8xf32>
    %c0_41 = arith.constant 0 : index
    %c16 = arith.constant 16 : index
    %c0_42 = arith.constant 0 : index
    %98 = vector.load %arg7[%c0_41, %c16, %c0_42] : memref<1x32x32xbf16, #tpu.memory_space<vmem>>, vector<1x8x32xbf16>
    %99 = vector.shape_cast %98 : vector<1x8x32xbf16> to vector<8x32xbf16>
    %100 = arith.truncf %97 : vector<8x8xf32> to vector<8x8xbf16>
    %cst_43 = arith.constant dense<0.000000e+00> : vector<8x32xf32>
    %101 = tpu.matmul %100, %99, %cst_43 {dimension_numbers = #tpu.dot_dimension_numbers<[1], [0], [0], [1], [0, 0, 1, 1], [], []>} : vector<8x8xbf16>, vector<8x32xbf16>, vector<8x32xf32> -> vector<8x32xf32>
    %102 = arith.addf %80, %101 : vector<8x32xf32>
    %103 = vector.extract_strided_slice %31 {offsets = [0, 0, 24], sizes = [1, 8, 8], strides = [1, 1, 1]} : vector<1x8x32xbf16> to vector<1x8x8xbf16>
    %104 = vector.extract_strided_slice %33 {offsets = [0, 0, 24], sizes = [1, 8, 8], strides = [1, 1, 1]} : vector<1x8x32xbf16> to vector<1x8x8xbf16>
    %105 = vector.extract_strided_slice %35 {offsets = [0, 0, 24], sizes = [1, 8, 8], strides = [1, 1, 1]} : vector<1x8x32xbf16> to vector<1x8x8xbf16>
    "tpu.trace_start"() <{level = 10 : i32, message = "bqd,bkd->bqk"}> : () -> ()
    %cst_44 = arith.constant dense<0.000000e+00> : vector<1x8x8xf32>
    %106 = tpu.matmul %103, %104, %cst_44 {dimension_numbers = #tpu.dot_dimension_numbers<[2], [2], [1], [1], [0, 0, 0, 1, 1, 1], [0], [0]>} : vector<1x8x8xbf16>, vector<1x8x8xbf16>, vector<1x8x8xf32> -> vector<1x8x8xf32>
    "tpu.trace_stop"() : () -> ()
    %cst_45 = arith.constant dense<0xFF800000> : vector<1x8xf32>
    %107 = vector.multi_reduction <maximumf>, %106, %cst_45 [2] : vector<1x8x8xf32> to vector<1x8xf32>
    %108 = vector.shape_cast %107 : vector<1x8xf32> to vector<1x8x1xf32>
    %109 = vector.broadcast %108 : vector<1x8x1xf32> to vector<1x8x8xf32>
    %110 = arith.subf %106, %109 : vector<1x8x8xf32>
    %111 = math.exp %110 : vector<1x8x8xf32>
    %cst_46 = arith.constant dense<0.000000e+00> : vector<1x8xf32>
    %112 = vector.multi_reduction <add>, %111, %cst_46 [2] : vector<1x8x8xf32> to vector<1x8xf32>
    %113 = vector.shape_cast %112 : vector<1x8xf32> to vector<1x8x1xf32>
    %114 = tpu.reciprocal %113 {approx = true} : vector<1x8x1xf32> -> vector<1x8x1xf32>
    %115 = vector.broadcast %114 : vector<1x8x1xf32> to vector<1x8x8xf32>
    %116 = arith.mulf %111, %115 : vector<1x8x8xf32>
    %117 = arith.truncf %116 : vector<1x8x8xf32> to vector<1x8x8xbf16>
    "tpu.trace_start"() <{level = 10 : i32, message = "bqk,bkd->bqd"}> : () -> ()
    %cst_47 = arith.constant dense<0.000000e+00> : vector<1x8x8xf32>
    %118 = tpu.matmul %117, %105, %cst_47 {dimension_numbers = #tpu.dot_dimension_numbers<[2], [1], [1], [2], [0, 0, 0, 1, 1, 2], [0], [0]>} : vector<1x8x8xbf16>, vector<1x8x8xbf16>, vector<1x8x8xf32> -> vector<1x8x8xf32>
    "tpu.trace_stop"() : () -> ()
    %119 = vector.shape_cast %118 : vector<1x8x8xf32> to vector<8x8xf32>
    %c0_48 = arith.constant 0 : index
    %c24 = arith.constant 24 : index
    %c0_49 = arith.constant 0 : index
    %120 = vector.load %arg7[%c0_48, %c24, %c0_49] : memref<1x32x32xbf16, #tpu.memory_space<vmem>>, vector<1x8x32xbf16>
    %121 = vector.shape_cast %120 : vector<1x8x32xbf16> to vector<8x32xbf16>
    %122 = arith.truncf %119 : vector<8x8xf32> to vector<8x8xbf16>
    %cst_50 = arith.constant dense<0.000000e+00> : vector<8x32xf32>
    %123 = tpu.matmul %122, %121, %cst_50 {dimension_numbers = #tpu.dot_dimension_numbers<[1], [0], [0], [1], [0, 0, 1, 1], [], []>} : vector<8x8xbf16>, vector<8x32xbf16>, vector<8x32xf32> -> vector<8x32xf32>
    %124 = arith.addf %102, %123 : vector<8x32xf32>
    %c0_51 = arith.constant 0 : index
    %c0_52 = arith.constant 0 : index
    %c0_53 = arith.constant 0 : index
    %125 = vector.load %arg8[%c0_51, %c0_52, %c0_53] : memref<1x1x32xf32, #tpu.memory_space<vmem>>, vector<1x1x32xf32>
    %126 = vector.shape_cast %125 : vector<1x1x32xf32> to vector<1x32xf32>
    %127 = vector.broadcast %126 : vector<1x32xf32> to vector<8x32xf32>
    %128 = arith.addf %124, %127 : vector<8x32xf32>
    %129 = arith.addf %128, %1 : vector<8x32xf32>
    %130 = arith.truncf %129 : vector<8x32xf32> to vector<8x32xbf16>
    %cst_54 = arith.constant dense<0.000000e+00> : vector<8x32xf32>
    %131 = tpu.matmul %130, %2, %cst_54 {dimension_numbers = #tpu.dot_dimension_numbers<[1], [0], [0], [1], [0, 0, 1, 1], [], []>} : vector<8x32xbf16>, vector<32x32xbf16>, vector<8x32xf32> -> vector<8x32xf32>
    %132 = arith.subf %129, %131 : vector<8x32xf32>
    %133 = arith.mulf %132, %132 : vector<8x32xf32>
    %134 = arith.truncf %133 : vector<8x32xf32> to vector<8x32xbf16>
    %cst_55 = arith.constant dense<0.000000e+00> : vector<8x32xf32>
    %135 = tpu.matmul %134, %2, %cst_55 {dimension_numbers = #tpu.dot_dimension_numbers<[1], [0], [0], [1], [0, 0, 1, 1], [], []>} : vector<8x32xbf16>, vector<32x32xbf16>, vector<8x32xf32> -> vector<8x32xf32>
    %cst_56 = arith.constant 9.99999974E-6 : f32
    %136 = vector.broadcast %cst_56 : f32 to vector<8x32xf32>
    %137 = arith.addf %135, %136 : vector<8x32xf32>
    %138 = math.rsqrt %137 : vector<8x32xf32>
    %139 = arith.mulf %132, %138 : vector<8x32xf32>
    %140 = vector.broadcast %5 : vector<1x32xf32> to vector<8x32xf32>
    %141 = arith.mulf %139, %140 : vector<8x32xf32>
    %142 = vector.broadcast %6 : vector<1x32xf32> to vector<8x32xf32>
    %143 = arith.addf %141, %142 : vector<8x32xf32>
    %c0_57 = arith.constant 0 : index
    %c0_58 = arith.constant 0 : index
    %c0_59 = arith.constant 0 : index
    %144 = vector.load %arg11[%c0_57, %c0_58, %c0_59] : memref<1x32x128xbf16, #tpu.memory_space<vmem>>, vector<1x32x128xbf16>
    %145 = vector.shape_cast %144 : vector<1x32x128xbf16> to vector<32x128xbf16>
    %146 = arith.truncf %143 : vector<8x32xf32> to vector<8x32xbf16>
    %cst_60 = arith.constant dense<0.000000e+00> : vector<8x128xf32>
    %147 = tpu.matmul %146, %145, %cst_60 {dimension_numbers = #tpu.dot_dimension_numbers<[1], [0], [0], [1], [0, 0, 1, 1], [], []>} : vector<8x32xbf16>, vector<32x128xbf16>, vector<8x128xf32> -> vector<8x128xf32>
    %c0_61 = arith.constant 0 : index
    %c0_62 = arith.constant 0 : index
    %c0_63 = arith.constant 0 : index
    %148 = vector.load %arg12[%c0_61, %c0_62, %c0_63] : memref<1x1x128xf32, #tpu.memory_space<vmem>>, vector<1x1x128xf32>
    %149 = vector.shape_cast %148 : vector<1x1x128xf32> to vector<1x128xf32>
    %150 = vector.broadcast %149 : vector<1x128xf32> to vector<8x128xf32>
    %151 = arith.addf %147, %150 : vector<8x128xf32>
    %cst_64 = arith.constant 5.000000e-01 : f32
    %152 = vector.broadcast %cst_64 : f32 to vector<8x128xf32>
    %153 = arith.mulf %152, %151 : vector<8x128xf32>
    %154 = arith.mulf %151, %151 : vector<8x128xf32>
    %155 = arith.mulf %154, %151 : vector<8x128xf32>
    %cst_65 = arith.constant 4.471500e-02 : f32
    %156 = vector.broadcast %cst_65 : f32 to vector<8x128xf32>
    %157 = arith.mulf %156, %155 : vector<8x128xf32>
    %158 = arith.addf %151, %157 : vector<8x128xf32>
    %cst_66 = arith.constant 0.797884583 : f32
    %159 = vector.broadcast %cst_66 : f32 to vector<8x128xf32>
    %160 = arith.mulf %159, %158 : vector<8x128xf32>
    %161 = math.tanh %160 : vector<8x128xf32>
    %cst_67 = arith.constant 1.000000e+00 : f32
    %162 = vector.broadcast %cst_67 : f32 to vector<8x128xf32>
    %163 = arith.addf %162, %161 : vector<8x128xf32>
    %164 = arith.mulf %153, %163 : vector<8x128xf32>
    %c0_68 = arith.constant 0 : index
    %c0_69 = arith.constant 0 : index
    %c0_70 = arith.constant 0 : index
    %165 = vector.load %arg13[%c0_68, %c0_69, %c0_70] : memref<1x128x32xbf16, #tpu.memory_space<vmem>>, vector<1x128x32xbf16>
    %166 = vector.shape_cast %165 : vector<1x128x32xbf16> to vector<128x32xbf16>
    %167 = arith.truncf %164 : vector<8x128xf32> to vector<8x128xbf16>
    %cst_71 = arith.constant dense<0.000000e+00> : vector<8x32xf32>
    %168 = tpu.matmul %167, %166, %cst_71 {dimension_numbers = #tpu.dot_dimension_numbers<[1], [0], [0], [1], [0, 0, 1, 1], [], []>} : vector<8x128xbf16>, vector<128x32xbf16>, vector<8x32xf32> -> vector<8x32xf32>
    %c0_72 = arith.constant 0 : index
    %c0_73 = arith.constant 0 : index
    %c0_74 = arith.constant 0 : index
    %169 = vector.load %arg14[%c0_72, %c0_73, %c0_74] : memref<1x1x32xf32, #tpu.memory_space<vmem>>, vector<1x1x32xf32>
    %170 = vector.shape_cast %169 : vector<1x1x32xf32> to vector<1x32xf32>
    %171 = vector.broadcast %170 : vector<1x32xf32> to vector<8x32xf32>
    %172 = arith.addf %168, %171 : vector<8x32xf32>
    %cst_75 = arith.constant 5.000000e-01 : f32
    %173 = vector.broadcast %cst_75 : f32 to vector<8x32xf32>
    %174 = arith.mulf %173, %172 : vector<8x32xf32>
    %175 = arith.mulf %172, %172 : vector<8x32xf32>
    %176 = arith.mulf %175, %172 : vector<8x32xf32>
    %cst_76 = arith.constant 4.471500e-02 : f32
    %177 = vector.broadcast %cst_76 : f32 to vector<8x32xf32>
    %178 = arith.mulf %177, %176 : vector<8x32xf32>
    %179 = arith.addf %172, %178 : vector<8x32xf32>
    %cst_77 = arith.constant 0.797884583 : f32
    %180 = vector.broadcast %cst_77 : f32 to vector<8x32xf32>
    %181 = arith.mulf %180, %179 : vector<8x32xf32>
    %182 = math.tanh %181 : vector<8x32xf32>
    %cst_78 = arith.constant 1.000000e+00 : f32
    %183 = vector.broadcast %cst_78 : f32 to vector<8x32xf32>
    %184 = arith.addf %183, %182 : vector<8x32xf32>
    %185 = arith.mulf %174, %184 : vector<8x32xf32>
    %186 = arith.addf %185, %129 : vector<8x32xf32>
    %c0_79 = arith.constant 0 : index
    %c0_80 = arith.constant 0 : index
    %187 = vector.load %arg15[%c0_79, %c0_80] : memref<32x32xbf16, #tpu.memory_space<vmem>>, vector<32x32xbf16>
    %188 = arith.truncf %186 : vector<8x32xf32> to vector<8x32xbf16>
    %cst_81 = arith.constant dense<0.000000e+00> : vector<8x32xf32>
    %189 = tpu.matmul %188, %187, %cst_81 {dimension_numbers = #tpu.dot_dimension_numbers<[1], [0], [0], [1], [0, 0, 1, 1], [], []>} : vector<8x32xbf16>, vector<32x32xbf16>, vector<8x32xf32> -> vector<8x32xf32>
    %c0_82 = arith.constant 0 : index
    %c0_83 = arith.constant 0 : index
    %190 = vector.load %arg16[%c0_82, %c0_83] : memref<1x32xf32, #tpu.memory_space<vmem>>, vector<1x32xf32>
    %191 = vector.broadcast %190 : vector<1x32xf32> to vector<8x32xf32>
    %192 = arith.addf %189, %191 : vector<8x32xf32>
    %193 = vector.shape_cast %192 : vector<8x32xf32> to vector<1x8x32xf32>
    %c0_84 = arith.constant 0 : index
    %c0_85 = arith.constant 0 : index
    %c0_86 = arith.constant 0 : index
    %194 = vector.load %arg17[%c0_84, %c0_85, %c0_86] : memref<1x8x32xf32, #tpu.memory_space<vmem>>, vector<1x8x32xf32>
    tpu.vector_store %arg17[%c0_84, %c0_85, %c0_86], %193 {strides = array<i32>} : memref<1x8x32xf32, #tpu.memory_space<vmem>>, vector<1x8x32xf32>,
    return
  }
  func.func @transform_0(%arg0: i32) -> (i32, i32, i32) {
    %c0_i32 = arith.constant 0 : i32
    %c0_i32_0 = arith.constant 0 : i32
    %c0_i32_1 = arith.constant 0 : i32
    return %arg0, %c0_i32, %c0_i32_0 : i32, i32, i32
  }
  func.func @transform_1(%arg0: i32) -> (i32, i32) {
    %c0_i32 = arith.constant 0 : i32
    %c0_i32_0 = arith.constant 0 : i32
    %c0_i32_1 = arith.constant 0 : i32
    return %c0_i32, %c0_i32_0 : i32, i32
  }
  func.func @transform_2(%arg0: i32) -> (i32, i32) {
    %c0_i32 = arith.constant 0 : i32
    %c0_i32_0 = arith.constant 0 : i32
    %c0_i32_1 = arith.constant 0 : i32
    return %c0_i32, %c0_i32_0 : i32, i32
  }
  func.func @transform_3(%arg0: i32) -> (i32, i32) {
    %c0_i32 = arith.constant 0 : i32
    %c0_i32_0 = arith.constant 0 : i32
    %c0_i32_1 = arith.constant 0 : i32
    return %c0_i32, %c0_i32_0 : i32, i32
  }
  func.func @transform_4(%arg0: i32) -> (i32, i32, i32) {
    %c0_i32 = arith.constant 0 : i32
    %c0_i32_0 = arith.constant 0 : i32
    %c0_i32_1 = arith.constant 0 : i32
    %c0_i32_2 = arith.constant 0 : i32
    return %c0_i32, %c0_i32_0, %c0_i32_1 : i32, i32, i32
  }
  func.func @transform_5(%arg0: i32) -> (i32, i32, i32) {
    %c0_i32 = arith.constant 0 : i32
    %c0_i32_0 = arith.constant 0 : i32
    %c0_i32_1 = arith.constant 0 : i32
    %c0_i32_2 = arith.constant 0 : i32
    return %c0_i32, %c0_i32_0, %c0_i32_1 : i32, i32, i32
  }
  func.func @transform_6(%arg0: i32) -> (i32, i32, i32) {
    %c0_i32 = arith.constant 0 : i32
    %c0_i32_0 = arith.constant 0 : i32
    %c0_i32_1 = arith.constant 0 : i32
    %c0_i32_2 = arith.constant 0 : i32
    return %c0_i32, %c0_i32_0, %c0_i32_1 : i32, i32, i32
  }
  func.func @transform_7(%arg0: i32) -> (i32, i32, i32) {
    %c0_i32 = arith.constant 0 : i32
    %c0_i32_0 = arith.constant 0 : i32
    %c0_i32_1 = arith.constant 0 : i32
    %c0_i32_2 = arith.constant 0 : i32
    return %c0_i32, %c0_i32_0, %c0_i32_1 : i32, i32, i32
  }
  func.func @transform_8(%arg0: i32) -> (i32, i32) {
    %c0_i32 = arith.constant 0 : i32
    %c0_i32_0 = arith.constant 0 : i32
    %c0_i32_1 = arith.constant 0 : i32
    return %c0_i32, %c0_i32_0 : i32, i32
  }
  func.func @transform_9(%arg0: i32) -> (i32, i32) {
    %c0_i32 = arith.constant 0 : i32
    %c0_i32_0 = arith.constant 0 : i32
    %c0_i32_1 = arith.constant 0 : i32
    return %c0_i32, %c0_i32_0 : i32, i32
  }
  func.func @transform_10(%arg0: i32) -> (i32, i32, i32) {
    %c0_i32 = arith.constant 0 : i32
    %c0_i32_0 = arith.constant 0 : i32
    %c0_i32_1 = arith.constant 0 : i32
    %c0_i32_2 = arith.constant 0 : i32
    return %c0_i32, %c0_i32_0, %c0_i32_1 : i32, i32, i32
  }
  func.func @transform_11(%arg0: i32) -> (i32, i32, i32) {
    %c0_i32 = arith.constant 0 : i32
    %c0_i32_0 = arith.constant 0 : i32
    %c0_i32_1 = arith.constant 0 : i32
    %c0_i32_2 = arith.constant 0 : i32
    return %c0_i32, %c0_i32_0, %c0_i32_1 : i32, i32, i32
  }
  func.func @transform_12(%arg0: i32) -> (i32, i32, i32) {
    %c0_i32 = arith.constant 0 : i32
    %c0_i32_0 = arith.constant 0 : i32
    %c0_i32_1 = arith.constant 0 : i32
    %c0_i32_2 = arith.constant 0 : i32
    return %c0_i32, %c0_i32_0, %c0_i32_1 : i32, i32, i32
  }
  func.func @transform_13(%arg0: i32) -> (i32, i32, i32) {
    %c0_i32 = arith.constant 0 : i32
    %c0_i32_0 = arith.constant 0 : i32
    %c0_i32_1 = arith.constant 0 : i32
    %c0_i32_2 = arith.constant 0 : i32
    return %c0_i32, %c0_i32_0, %c0_i32_1 : i32, i32, i32
  }
  func.func @transform_14(%arg0: i32) -> (i32, i32) {
    %c0_i32 = arith.constant 0 : i32
    %c0_i32_0 = arith.constant 0 : i32
    %c0_i32_1 = arith.constant 0 : i32
    return %c0_i32, %c0_i32_0 : i32, i32
  }
  func.func @transform_15(%arg0: i32) -> (i32, i32) {
    %c0_i32 = arith.constant 0 : i32
    %c0_i32_0 = arith.constant 0 : i32
    %c0_i32_1 = arith.constant 0 : i32
    return %c0_i32, %c0_i32_0 : i32, i32
  }
  func.func @transform_16(%arg0: i32) -> (i32, i32, i32) {
    %c0_i32 = arith.constant 0 : i32
    %c0_i32_0 = arith.constant 0 : i32
    %c0_i32_1 = arith.constant 0 : i32
    return %arg0, %c0_i32, %c0_i32_0 : i32, i32, i32
  }
}

</mosaic_0001>

<llo_original>
// kernel: tpu_custom_call.1
$region0: #{tpu_custom_call.1}
  #allocation0 [shape = 'u32[]', space=smem, size = 0x4, offset = 0x4, fixed_abs, tag = 'smem constant byte address 0x4 - core index']
  #allocation1 [shape = 'u32[144,128]{1,0:T(1,128)}', space=vmem, size = 0x12000, scoped, tag = 'internal scratch']
  %s0 = inlined_call_operand.vmem [shape: f32[2,8,32], index: 0, kind: input, shape index: {}]
  %s1 = inlined_call_operand.vmem [shape: bf16[32,32], index: 1, kind: input, shape index: {}]
  %s2 = inlined_call_operand.hbm [shape: f32[1,32], index: 2, kind: input, shape index: {}]
  %s3 = inlined_call_operand.hbm [shape: f32[1,32], index: 3, kind: input, shape index: {}]
  %s4 = inlined_call_operand.vmem [shape: bf16[1,32,96], index: 4, kind: input, shape index: {}]
  %s5 = inlined_call_operand.hbm [shape: f32[1,1,96], index: 5, kind: input, shape index: {}]
  %s6 = inlined_call_operand.vmem [shape: bf16[1,32,32], index: 6, kind: input, shape index: {}]
  %s7 = inlined_call_operand.hbm [shape: f32[1,1,32], index: 7, kind: input, shape index: {}]
  %s8 = inlined_call_operand.hbm [shape: f32[1,32], index: 8, kind: input, shape index: {}]
  %s9 = inlined_call_operand.hbm [shape: f32[1,32], index: 9, kind: input, shape index: {}]
  %s10 = inlined_call_operand.vmem [shape: bf16[1,32,128], index: 10, kind: input, shape index: {}]
  %s11 = inlined_call_operand.vmem [shape: f32[1,1,128], index: 11, kind: input, shape index: {}]
  %s12 = inlined_call_operand.vmem [shape: bf16[1,128,32], index: 12, kind: input, shape index: {}]
  %s13 = inlined_call_operand.vmem [shape: f32[1,1,32], index: 13, kind: input, shape index: {}]
  %s14 = inlined_call_operand.vmem [shape: bf16[32,32], index: 14, kind: input, shape index: {}]
  %s15 = inlined_call_operand.vmem [shape: f32[1,32], index: 15, kind: input, shape index: {}]
  %s16 = inlined_call_operand.hbm [shape: f32[2,8,32], index: 16, kind: output, shape index: {}]
  %s17 = sld [smem:[#allocation0]]
  $region121: #{tpu_custom_call.1} parent=0
    _
  %s19 = ssub.s32 1, %s17
  %s20 = scalar_select 0, %s19, %s17
  $region1: #{tpu_custom_call.1} parent=0
    #allocation2 [shape = 'u8[512]{0}', space=vmem, size = 0x400, scoped, tag = 'input window, operand 2, single buffered']
    #allocation3 [shape = 's32[2]{0}', space=sflag, size = 0x8, scoped, tag = 'scoped memory for tpu_custom_call.1']
    #allocation4 [shape = 's32[2]{0}', space=sflag, size = 0x8, scoped, tag = 'scoped memory for tpu_custom_call.1']
    #allocation5 [shape = 'u8[512]{0}', space=vmem, size = 0x400, scoped, tag = 'input window, operand 3, single buffered']
    #allocation6 [shape = 's32[1]{0}', space=sflag, size = 0x4, scoped, tag = 'scoped memory for tpu_custom_call.1']
    #allocation7 [shape = 'u8[512]{0}', space=vmem, size = 0x400, scoped, tag = 'input window, operand 5, single buffered']
    #allocation8 [shape = 'u8[512]{0}', space=vmem, size = 0x400, scoped, tag = 'input window, operand 7, single buffered']
    #allocation9 [shape = 's32[1]{0}', space=sflag, size = 0x4, scoped, tag = 'scoped memory for tpu_custom_call.1']
    #allocation10 [shape = 'u8[512]{0}', space=vmem, size = 0x400, scoped, tag = 'input window, operand 8, single buffered']
    #allocation11 [shape = 'u8[512]{0}', space=vmem, size = 0x400, scoped, tag = 'input window, operand 9, single buffered']
    #allocation12 [shape = 's32[1]{0}', space=sflag, size = 0x4, scoped, tag = 'scoped memory for tpu_custom_call.1']
    #allocation13 [shape = 'u8[8192]{0}', space=vmem, size = 0x2000, scoped, tag = 'output window, operand 0']
    %21 = vsyncpa [#allocation3], 0
    %22 = vsyncpa [#allocation6], 0
    %23 = vsyncpa [#allocation9], 0
    %24 = vsyncpa [#allocation12], 0
    %25 = vsyncpa [#allocation4], 0
    %s26 = scalar_lea.sflag [#allocation4], 1
    %27 = vsyncpa %s26, 0
    loop: start=0, step=1, limit=4
    $region2: #{tpu_custom_call.1} parent=1 // loop_pre_header
      _
    $region3: #{tpu_custom_call.1} parent=1 // loop_header
      %s29 = sphi 0, %s33
      %p30 = scmp.ge.s32.totalorder %s29, 4
      %s39 = sphi 0, %s41
      %s42 = sphi 0, %s39
      %s43 = sphi 0, %s42
      %s59 = sphi 0, %s43
      %s63 = sphi 0, %s63
      %s65 = sphi 0, %s63
      %s66 = sphi 0, %s65
      %s80 = sphi 0, %s66
      %s84 = sphi 0, %s84
      %s86 = sphi 0, %s84
      %s87 = sphi 0, %s86
      %s101 = sphi 0, %s87
      %s105 = sphi 0, %s105
      %s107 = sphi 0, %s105
      %s108 = sphi 0, %s107
      %s122 = sphi 0, %s108
      %s126 = sphi 0, %s126
      %s128 = sphi 0, %s126
      %s129 = sphi 0, %s128
      %s143 = sphi 0, %s129
      %s147 = sphi 0, %s147
      %s149 = sphi 0, %s147
      %s150 = sphi 0, %s149
      %s164 = sphi 0, %s150
      %s168 = sphi 0, %s168
      %s170 = sphi 0, %s168
      %s171 = sphi 0, %s170
      %s185 = sphi 0, %s171
      %s189 = sphi 0, %s189
      %s191 = sphi 0, %s189
      %s192 = sphi 0, %s191
      %s206 = sphi 0, %s192
      %s210 = sphi 0, %s210
      %s212 = sphi 0, %s210
      %s213 = sphi 0, %s212
      %s227 = sphi 0, %s213
      %s231 = sphi 0, %s231
      %s233 = sphi 0, %s231
      %s234 = sphi 0, %s233
      %s248 = sphi 0, %s234
      %s252 = sphi 0, %s252
      %s254 = sphi 0, %s252
      %s255 = sphi 0, %s254
      %s269 = sphi 0, %s255
      %s273 = sphi 0, %s273
      %s275 = sphi 0, %s273
      %s276 = sphi 0, %s275
      %s290 = sphi 0, %s276
      %s294 = sphi 0, %s294
      %s296 = sphi 0, %s294
      %s297 = sphi 0, %s296
      %s311 = sphi 0, %s297
      %s315 = sphi 0, %s315
      %s317 = sphi 0, %s315
      %s318 = sphi 0, %s317
      %s332 = sphi 0, %s318
      %s336 = sphi 0, %s336
      %s338 = sphi 0, %s336
      %s339 = sphi 0, %s338
      %s353 = sphi 0, %s339
      %s357 = sphi 0, %s357
      %s359 = sphi 0, %s357
      %s360 = sphi 0, %s359
      %s374 = sphi 0, %s360
      %s380 = sphi 0, %s382
      %s383 = sphi 0, %s380
      %s384 = sphi 0, %s383
      %s400 = sphi 0, %s384
    $region4: #{tpu_custom_call.1} parent=1 // loop_header_branch
      %32 = sbr.rel (%p30) target = $region8
    $region5: #{tpu_custom_call.1} parent=1 // loop_body
      %s34 = ssub.s32 %s29, 1
      %s35 = ssub.s32 %s29, 2
      %s36 = sadd.s32 %s29, 1
      %s37 = ssub.s32 %s29, %s36
      %p38 = scmp.eq.s32.totalorder %s37, 0
      %s40 = sadd.s32 %s39, 1
      %s41 = scalar_select %p38, %s39, %s40
      %p44 = pneg %p38
      %p45 = scmp.eq.s32.totalorder %s29, 1
      %p46 = por %p44, %p45
      %p47 = scmp.ne.s32.totalorder %s39, %s42
      %p48 = scmp.eq.s32.totalorder %s29, 0
      %p49 = por %p47, %p48
      %p50 = scmp.ne.s32.totalorder %s39, %s42
      %p51 = scmp.eq.s32.totalorder %s34, 1
      %p52 = por %p50, %p51
      %p53 = scmp.ne.s32.totalorder %s42, %s43
      %p54 = scmp.eq.s32.totalorder %s34, 0
      %p55 = por %p53, %p54
      %p56 = scmp.ne.s32.totalorder %s42, %s43
      %p57 = scmp.eq.s32.totalorder %s35, 1
      %p58 = por %p56, %p57
      %p60 = scmp.ne.s32.totalorder %s43, %s59
      %p61 = scmp.eq.s32.totalorder %s35, 0
      %p62 = por %p60, %p61
      %s64 = sadd.s32 %s63, 1
      %p67 = scmp.eq.s32.totalorder %s29, 1
      %p68 = scmp.ne.s32.totalorder %s63, %s65
      %p69 = scmp.eq.s32.totalorder %s29, 0
      %p70 = por %p68, %p69
      %p71 = scmp.ne.s32.totalorder %s63, %s65
      %p72 = scmp.eq.s32.totalorder %s34, 1
      %p73 = por %p71, %p72
      %p74 = scmp.ne.s32.totalorder %s65, %s66
      %p75 = scmp.eq.s32.totalorder %s34, 0
      %p76 = por %p74, %p75
      %p77 = scmp.ne.s32.totalorder %s65, %s66
      %p78 = scmp.eq.s32.totalorder %s35, 1
      %p79 = por %p77, %p78
      %p81 = scmp.ne.s32.totalorder %s66, %s80
      %p82 = scmp.eq.s32.totalorder %s35, 0
      %p83 = por %p81, %p82
      %s85 = sadd.s32 %s84, 1
      %p88 = scmp.eq.s32.totalorder %s29, 1
      %p89 = scmp.ne.s32.totalorder %s84, %s86
      %p90 = scmp.eq.s32.totalorder %s29, 0
      %p91 = por %p89, %p90
      %p92 = scmp.ne.s32.totalorder %s84, %s86
      %p93 = scmp.eq.s32.totalorder %s34, 1
      %p94 = por %p92, %p93
      %p95 = scmp.ne.s32.totalorder %s86, %s87
      %p96 = scmp.eq.s32.totalorder %s34, 0
      %p97 = por %p95, %p96
      %p98 = scmp.ne.s32.totalorder %s86, %s87
      %p99 = scmp.eq.s32.totalorder %s35, 1
      %p100 = por %p98, %p99
      %p102 = scmp.ne.s32.totalorder %s87, %s101
      %p103 = scmp.eq.s32.totalorder %s35, 0
      %p104 = por %p102, %p103
      %s106 = sadd.s32 %s105, 1
      %p109 = scmp.eq.s32.totalorder %s29, 1
      %p110 = scmp.ne.s32.totalorder %s105, %s107
      %p111 = scmp.eq.s32.totalorder %s29, 0
      %p112 = por %p110, %p111
      %p113 = scmp.ne.s32.totalorder %s105, %s107
      %p114 = scmp.eq.s32.totalorder %s34, 1
      %p115 = por %p113, %p114
      %p116 = scmp.ne.s32.totalorder %s107, %s108
      %p117 = scmp.eq.s32.totalorder %s34, 0
      %p118 = por %p116, %p117
      %p119 = scmp.ne.s32.totalorder %s107, %s108
      %p120 = scmp.eq.s32.totalorder %s35, 1
      %p121 = por %p119, %p120
      %p123 = scmp.ne.s32.totalorder %s108, %s122
      %p124 = scmp.eq.s32.totalorder %s35, 0
      %p125 = por %p123, %p124
      %s127 = sadd.s32 %s126, 1
      %p130 = scmp.eq.s32.totalorder %s29, 1
      %p131 = scmp.ne.s32.totalorder %s126, %s128
      %p132 = scmp.eq.s32.totalorder %s29, 0
      %p133 = por %p131, %p132
      %p134 = scmp.ne.s32.totalorder %s126, %s128
      %p135 = scmp.eq.s32.totalorder %s34, 1
      %p136 = por %p134, %p135
      %p137 = scmp.ne.s32.totalorder %s128, %s129
      %p138 = scmp.eq.s32.totalorder %s34, 0
      %p139 = por %p137, %p138
      %p140 = scmp.ne.s32.totalorder %s128, %s129
      %p141 = scmp.eq.s32.totalorder %s35, 1
      %p142 = por %p140, %p141
      %p144 = scmp.ne.s32.totalorder %s129, %s143
      %p145 = scmp.eq.s32.totalorder %s35, 0
      %p146 = por %p144, %p145
      %s148 = sadd.s32 %s147, 1
      %p151 = scmp.eq.s32.totalorder %s29, 1
      %p152 = scmp.ne.s32.totalorder %s147, %s149
      %p153 = scmp.eq.s32.totalorder %s29, 0
      %p154 = por %p152, %p153
      %p155 = scmp.ne.s32.totalorder %s147, %s149
      %p156 = scmp.eq.s32.totalorder %s34, 1
      %p157 = por %p155, %p156
      %p158 = scmp.ne.s32.totalorder %s149, %s150
      %p159 = scmp.eq.s32.totalorder %s34, 0
      %p160 = por %p158, %p159
      %p161 = scmp.ne.s32.totalorder %s149, %s150
      %p162 = scmp.eq.s32.totalorder %s35, 1
      %p163 = por %p161, %p162
      %p165 = scmp.ne.s32.totalorder %s150, %s164
      %p166 = scmp.eq.s32.totalorder %s35, 0
      %p167 = por %p165, %p166
      %s169 = sadd.s32 %s168, 1
      %p172 = scmp.eq.s32.totalorder %s29, 1
      %p173 = scmp.ne.s32.totalorder %s168, %s170
      %p174 = scmp.eq.s32.totalorder %s29, 0
      %p175 = por %p173, %p174
      %p176 = scmp.ne.s32.totalorder %s168, %s170
      %p177 = scmp.eq.s32.totalorder %s34, 1
      %p178 = por %p176, %p177
      %p179 = scmp.ne.s32.totalorder %s170, %s171
      %p180 = scmp.eq.s32.totalorder %s34, 0
      %p181 = por %p179, %p180
      %p182 = scmp.ne.s32.totalorder %s170, %s171
      %p183 = scmp.eq.s32.totalorder %s35, 1
      %p184 = por %p182, %p183
      %p186 = scmp.ne.s32.totalorder %s171, %s185
      %p187 = scmp.eq.s32.totalorder %s35, 0
      %p188 = por %p186, %p187
      %s190 = sadd.s32 %s189, 1
      %p193 = scmp.eq.s32.totalorder %s29, 1
      %p194 = scmp.ne.s32.totalorder %s189, %s191
      %p195 = scmp.eq.s32.totalorder %s29, 0
      %p196 = por %p194, %p195
      %p197 = scmp.ne.s32.totalorder %s189, %s191
      %p198 = scmp.eq.s32.totalorder %s34, 1
      %p199 = por %p197, %p198
      %p200 = scmp.ne.s32.totalorder %s191, %s192
      %p201 = scmp.eq.s32.totalorder %s34, 0
      %p202 = por %p200, %p201
      %p203 = scmp.ne.s32.totalorder %s191, %s192
      %p204 = scmp.eq.s32.totalorder %s35, 1
      %p205 = por %p203, %p204
      %p207 = scmp.ne.s32.totalorder %s192, %s206
      %p208 = scmp.eq.s32.totalorder %s35, 0
      %p209 = por %p207, %p208
      %s211 = sadd.s32 %s210, 1
      %p214 = scmp.eq.s32.totalorder %s29, 1
      %p215 = scmp.ne.s32.totalorder %s210, %s212
      %p216 = scmp.eq.s32.totalorder %s29, 0
      %p217 = por %p215, %p216
      %p218 = scmp.ne.s32.totalorder %s210, %s212
      %p219 = scmp.eq.s32.totalorder %s34, 1
      %p220 = por %p218, %p219
      %p221 = scmp.ne.s32.totalorder %s212, %s213
      %p222 = scmp.eq.s32.totalorder %s34, 0
      %p223 = por %p221, %p222
      %p224 = scmp.ne.s32.totalorder %s212, %s213
      %p225 = scmp.eq.s32.totalorder %s35, 1
      %p226 = por %p224, %p225
      %p228 = scmp.ne.s32.totalorder %s213, %s227
      %p229 = scmp.eq.s32.totalorder %s35, 0
      %p230 = por %p228, %p229
      %s232 = sadd.s32 %s231, 1
      %p235 = scmp.eq.s32.totalorder %s29, 1
      %p236 = scmp.ne.s32.totalorder %s231, %s233
      %p237 = scmp.eq.s32.totalorder %s29, 0
      %p238 = por %p236, %p237
      %p239 = scmp.ne.s32.totalorder %s231, %s233
      %p240 = scmp.eq.s32.totalorder %s34, 1
      %p241 = por %p239, %p240
      %p242 = scmp.ne.s32.totalorder %s233, %s234
      %p243 = scmp.eq.s32.totalorder %s34, 0
      %p244 = por %p242, %p243
      %p245 = scmp.ne.s32.totalorder %s233, %s234
      %p246 = scmp.eq.s32.totalorder %s35, 1
      %p247 = por %p245, %p246
      %p249 = scmp.ne.s32.totalorder %s234, %s248
      %p250 = scmp.eq.s32.totalorder %s35, 0
      %p251 = por %p249, %p250
      %s253 = sadd.s32 %s252, 1
      %p256 = scmp.eq.s32.totalorder %s29, 1
      %p257 = scmp.ne.s32.totalorder %s252, %s254
      %p258 = scmp.eq.s32.totalorder %s29, 0
      %p259 = por %p257, %p258
      %p260 = scmp.ne.s32.totalorder %s252, %s254
      %p261 = scmp.eq.s32.totalorder %s34, 1
      %p262 = por %p260, %p261
      %p263 = scmp.ne.s32.totalorder %s254, %s255
      %p264 = scmp.eq.s32.totalorder %s34, 0
      %p265 = por %p263, %p264
      %p266 = scmp.ne.s32.totalorder %s254, %s255
      %p267 = scmp.eq.s32.totalorder %s35, 1
      %p268 = por %p266, %p267
      %p270 = scmp.ne.s32.totalorder %s255, %s269
      %p271 = scmp.eq.s32.totalorder %s35, 0
      %p272 = por %p270, %p271
      %s274 = sadd.s32 %s273, 1
      %p277 = scmp.eq.s32.totalorder %s29, 1
      %p278 = scmp.ne.s32.totalorder %s273, %s275
      %p279 = scmp.eq.s32.totalorder %s29, 0
      %p280 = por %p278, %p279
      %p281 = scmp.ne.s32.totalorder %s273, %s275
      %p282 = scmp.eq.s32.totalorder %s34, 1
      %p283 = por %p281, %p282
      %p284 = scmp.ne.s32.totalorder %s275, %s276
      %p285 = scmp.eq.s32.totalorder %s34, 0
      %p286 = por %p284, %p285
      %p287 = scmp.ne.s32.totalorder %s275, %s276
      %p288 = scmp.eq.s32.totalorder %s35, 1
      %p289 = por %p287, %p288
      %p291 = scmp.ne.s32.totalorder %s276, %s290
      %p292 = scmp.eq.s32.totalorder %s35, 0
      %p293 = por %p291, %p292
      %s295 = sadd.s32 %s294, 1
      %p298 = scmp.eq.s32.totalorder %s29, 1
      %p299 = scmp.ne.s32.totalorder %s294, %s296
      %p300 = scmp.eq.s32.totalorder %s29, 0
      %p301 = por %p299, %p300
      %p302 = scmp.ne.s32.totalorder %s294, %s296
      %p303 = scmp.eq.s32.totalorder %s34, 1
      %p304 = por %p302, %p303
      %p305 = scmp.ne.s32.totalorder %s296, %s297
      %p306 = scmp.eq.s32.totalorder %s34, 0
      %p307 = por %p305, %p306
      %p308 = scmp.ne.s32.totalorder %s296, %s297
      %p309 = scmp.eq.s32.totalorder %s35, 1
      %p310 = por %p308, %p309
      %p312 = scmp.ne.s32.totalorder %s297, %s311
      %p313 = scmp.eq.s32.totalorder %s35, 0
      %p314 = por %p312, %p313
      %s316 = sadd.s32 %s315, 1
      %p319 = scmp.eq.s32.totalorder %s29, 1
      %p320 = scmp.ne.s32.totalorder %s315, %s317
      %p321 = scmp.eq.s32.totalorder %s29, 0
      %p322 = por %p320, %p321
      %p323 = scmp.ne.s32.totalorder %s315, %s317
      %p324 = scmp.eq.s32.totalorder %s34, 1
      %p325 = por %p323, %p324
      %p326 = scmp.ne.s32.totalorder %s317, %s318
      %p327 = scmp.eq.s32.totalorder %s34, 0
      %p328 = por %p326, %p327
      %p329 = scmp.ne.s32.totalorder %s317, %s318
      %p330 = scmp.eq.s32.totalorder %s35, 1
      %p331 = por %p329, %p330
      %p333 = scmp.ne.s32.totalorder %s318, %s332
      %p334 = scmp.eq.s32.totalorder %s35, 0
      %p335 = por %p333, %p334
      %s337 = sadd.s32 %s336, 1
      %p340 = scmp.eq.s32.totalorder %s29, 1
      %p341 = scmp.ne.s32.totalorder %s336, %s338
      %p342 = scmp.eq.s32.totalorder %s29, 0
      %p343 = por %p341, %p342
      %p344 = scmp.ne.s32.totalorder %s336, %s338
      %p345 = scmp.eq.s32.totalorder %s34, 1
      %p346 = por %p344, %p345
      %p347 = scmp.ne.s32.totalorder %s338, %s339
      %p348 = scmp.eq.s32.totalorder %s34, 0
      %p349 = por %p347, %p348
      %p350 = scmp.ne.s32.totalorder %s338, %s339
      %p351 = scmp.eq.s32.totalorder %s35, 1
      %p352 = por %p350, %p351
      %p354 = scmp.ne.s32.totalorder %s339, %s353
      %p355 = scmp.eq.s32.totalorder %s35, 0
      %p356 = por %p354, %p355
      %s358 = sadd.s32 %s357, 1
      %p361 = scmp.eq.s32.totalorder %s29, 1
      %p362 = scmp.ne.s32.totalorder %s357, %s359
      %p363 = scmp.eq.s32.totalorder %s29, 0
      %p364 = por %p362, %p363
      %p365 = scmp.ne.s32.totalorder %s357, %s359
      %p366 = scmp.eq.s32.totalorder %s34, 1
      %p367 = por %p365, %p366
      %p368 = scmp.ne.s32.totalorder %s359, %s360
      %p369 = scmp.eq.s32.totalorder %s34, 0
      %p370 = por %p368, %p369
      %p371 = scmp.ne.s32.totalorder %s359, %s360
      %p372 = scmp.eq.s32.totalorder %s35, 1
      %p373 = por %p371, %p372
      %p375 = scmp.ne.s32.totalorder %s360, %s374
      %p376 = scmp.eq.s32.totalorder %s35, 0
      %p377 = por %p375, %p376
      %s378 = ssub.s32 %s29, %s36
      %p379 = scmp.eq.s32.totalorder %s378, 0
      %s381 = sadd.s32 %s380, 1
      %s382 = scalar_select %p379, %s380, %s381
      %p385 = pneg %p379
      %p386 = scmp.eq.s32.totalorder %s29, 1
      %p387 = por %p385, %p386
      %p388 = scmp.ne.s32.totalorder %s380, %s383
      %p389 = scmp.eq.s32.totalorder %s29, 0
      %p390 = por %p388, %p389
      %p391 = scmp.ne.s32.totalorder %s380, %s383
      %p392 = scmp.eq.s32.totalorder %s34, 1
      %p393 = por %p391, %p392
      %p394 = scmp.ne.s32.totalorder %s383, %s384
      %p395 = scmp.eq.s32.totalorder %s34, 0
      %p396 = por %p394, %p395
      %p397 = scmp.ne.s32.totalorder %s383, %s384
      %p398 = scmp.eq.s32.totalorder %s35, 1
      %p399 = por %p397, %p398
      %p401 = scmp.ne.s32.totalorder %s384, %s400
      %p402 = scmp.eq.s32.totalorder %s35, 0
      %p403 = por %p401, %p402
      %p404 = scmp.le.s32.totalorder 1, %s29
      %p405 = scmp.lt.s32.totalorder %s29, 3
      %p406 = pnand %p404, %p405
      %p407 = pneg %p406
      // Predicated region
      $region9: #{tpu_custom_call.1} parent=5 // pred_check
        _
      $region10: #{tpu_custom_call.1} parent=5 // pred_check_branch
        %409 = sbr.rel (%p406) target = $region12
      $region11: #{tpu_custom_call.1} parent=5 // pred_region
        %s410 = ssub.s32 %s29, 1
        // Predicated region
        $region13: #{tpu_custom_call.1} parent=11 // pred_check
          %p411 = pneg %p76
        $region14: #{tpu_custom_call.1} parent=11 // pred_check_branch
          %413 = sbr.rel (%p411) target = $region16
        $region15: #{tpu_custom_call.1} parent=11 // pred_region
          _
        $region16: #{tpu_custom_call.1} parent=11 // pred_fallthru
          _
        // Predicated region
        $region17: #{tpu_custom_call.1} parent=11 // pred_check
          %p414 = pneg %p97
        $region18: #{tpu_custom_call.1} parent=11 // pred_check_branch
          %416 = sbr.rel (%p414) target = $region20
        $region19: #{tpu_custom_call.1} parent=11 // pred_region
          %s418 = ssub.s32 16, 16
          %419 = vsyncadd [#allocation3], %s418
          %s421 = sshll.u32 [#allocation2], 4
          %s422 = int_to_ptr.vmem [resolvable:$true] %s421
          %424 = dma.hbm_to_vmem [thread:$0]  %s2, 16, %s422, [#allocation3]
        $region20: #{tpu_custom_call.1} parent=11 // pred_fallthru
          _
        // Predicated region
        $region21: #{tpu_custom_call.1} parent=11 // pred_check
          %p425 = pneg %p118
        $region22: #{tpu_custom_call.1} parent=11 // pred_check_branch
          %427 = sbr.rel (%p425) target = $region24
        $region23: #{tpu_custom_call.1} parent=11 // pred_region
          %s429 = ssub.s32 16, 16
          %430 = vsyncadd [#allocation6], %s429
          %s432 = sshll.u32 [#allocation5], 4
          %s433 = int_to_ptr.vmem [resolvable:$true] %s432
          %435 = dma.hbm_to_vmem [thread:$0]  %s3, 16, %s433, [#allocation6]
        $region24: #{tpu_custom_call.1} parent=11 // pred_fallthru
          _
        // Predicated region
        $region25: #{tpu_custom_call.1} parent=11 // pred_check
          %p436 = pneg %p139
        $region26: #{tpu_custom_call.1} parent=11 // pred_check_branch
          %438 = sbr.rel (%p436) target = $region28
        $region27: #{tpu_custom_call.1} parent=11 // pred_region
          _
        $region28: #{tpu_custom_call.1} parent=11 // pred_fallthru
          _
        // Predicated region
        $region29: #{tpu_custom_call.1} parent=11 // pred_check
          %p439 = pneg %p160
        $region30: #{tpu_custom_call.1} parent=11 // pred_check_branch
          %441 = sbr.rel (%p439) target = $region32
        $region31: #{tpu_custom_call.1} parent=11 // pred_region
          %s443 = ssub.s32 16, 16
          %444 = vsyncadd [#allocation6], %s443
          %s446 = sshll.u32 [#allocation7], 4
          %s447 = int_to_ptr.vmem [resolvable:$true] %s446
          %449 = dma.hbm_to_vmem [thread:$0]  %s5, 16, %s447, [#allocation6]
        $region32: #{tpu_custom_call.1} parent=11 // pred_fallthru
          _
        // Predicated region
        $region33: #{tpu_custom_call.1} parent=11 // pred_check
          %p450 = pneg %p181
        $region34: #{tpu_custom_call.1} parent=11 // pred_check_branch
          %452 = sbr.rel (%p450) target = $region36
        $region35: #{tpu_custom_call.1} parent=11 // pred_region
          _
        $region36: #{tpu_custom_call.1} parent=11 // pred_fallthru
          _
        // Predicated region
        $region37: #{tpu_custom_call.1} parent=11 // pred_check
          %p453 = pneg %p202
        $region38: #{tpu_custom_call.1} parent=11 // pred_check_branch
          %455 = sbr.rel (%p453) target = $region40
        $region39: #{tpu_custom_call.1} parent=11 // pred_region
          %s457 = ssub.s32 16, 16
          %458 = vsyncadd [#allocation9], %s457
          %s460 = sshll.u32 [#allocation8], 4
          %s461 = int_to_ptr.vmem [resolvable:$true] %s460
          %463 = dma.hbm_to_vmem [thread:$0]  %s7, 16, %s461, [#allocation9]
        $region40: #{tpu_custom_call.1} parent=11 // pred_fallthru
          _
        // Predicated region
        $region41: #{tpu_custom_call.1} parent=11 // pred_check
          %p464 = pneg %p223
        $region42: #{tpu_custom_call.1} parent=11 // pred_check_branch
          %466 = sbr.rel (%p464) target = $region44
        $region43: #{tpu_custom_call.1} parent=11 // pred_region
          %s468 = ssub.s32 16, 16
          %469 = vsyncadd [#allocation9], %s468
          %s471 = sshll.u32 [#allocation10], 4
          %s472 = int_to_ptr.vmem [resolvable:$true] %s471
          %474 = dma.hbm_to_vmem [thread:$0]  %s8, 16, %s472, [#allocation9]
        $region44: #{tpu_custom_call.1} parent=11 // pred_fallthru
          _
        // Predicated region
        $region45: #{tpu_custom_call.1} parent=11 // pred_check
          %p475 = pneg %p244
        $region46: #{tpu_custom_call.1} parent=11 // pred_check_branch
          %477 = sbr.rel (%p475) target = $region48
        $region47: #{tpu_custom_call.1} parent=11 // pred_region
          %s479 = ssub.s32 16, 16
          %480 = vsyncadd [#allocation12], %s479
          %s482 = sshll.u32 [#allocation11], 4
          %s483 = int_to_ptr.vmem [resolvable:$true] %s482
          %485 = dma.hbm_to_vmem [thread:$0]  %s9, 16, %s483, [#allocation12]
        $region48: #{tpu_custom_call.1} parent=11 // pred_fallthru
          _
        // Predicated region
        $region49: #{tpu_custom_call.1} parent=11 // pred_check
          %p486 = pneg %p265
        $region50: #{tpu_custom_call.1} parent=11 // pred_check_branch
          %488 = sbr.rel (%p486) target = $region52
        $region51: #{tpu_custom_call.1} parent=11 // pred_region
          _
        $region52: #{tpu_custom_call.1} parent=11 // pred_fallthru
          _
        // Predicated region
        $region53: #{tpu_custom_call.1} parent=11 // pred_check
          %p489 = pneg %p286
        $region54: #{tpu_custom_call.1} parent=11 // pred_check_branch
          %491 = sbr.rel (%p489) target = $region56
        $region55: #{tpu_custom_call.1} parent=11 // pred_region
          _
        $region56: #{tpu_custom_call.1} parent=11 // pred_fallthru
          _
        // Predicated region
        $region57: #{tpu_custom_call.1} parent=11 // pred_check
          %p492 = pneg %p307
        $region58: #{tpu_custom_call.1} parent=11 // pred_check_branch
          %494 = sbr.rel (%p492) target = $region60
        $region59: #{tpu_custom_call.1} parent=11 // pred_region
          _
        $region60: #{tpu_custom_call.1} parent=11 // pred_fallthru
          _
        // Predicated region
        $region61: #{tpu_custom_call.1} parent=11 // pred_check
          %p495 = pneg %p328
        $region62: #{tpu_custom_call.1} parent=11 // pred_check_branch
          %497 = sbr.rel (%p495) target = $region64
        $region63: #{tpu_custom_call.1} parent=11 // pred_region
          _
        $region64: #{tpu_custom_call.1} parent=11 // pred_fallthru
          _
        // Predicated region
        $region65: #{tpu_custom_call.1} parent=11 // pred_check
          %p498 = pneg %p349
        $region66: #{tpu_custom_call.1} parent=11 // pred_check_branch
          %500 = sbr.rel (%p498) target = $region68
        $region67: #{tpu_custom_call.1} parent=11 // pred_region
          _
        $region68: #{tpu_custom_call.1} parent=11 // pred_fallthru
          _
        // Predicated region
        $region69: #{tpu_custom_call.1} parent=11 // pred_check
          %p501 = pneg %p370
        $region70: #{tpu_custom_call.1} parent=11 // pred_check_branch
          %503 = sbr.rel (%p501) target = $region72
        $region71: #{tpu_custom_call.1} parent=11 // pred_region
          _
        $region72: #{tpu_custom_call.1} parent=11 // pred_fallthru
          _
      $region12: #{tpu_custom_call.1} parent=5 // pred_fallthru
        _
      %p504 = scmp.lt.s32.totalorder %s29, 2
      // Predicated region
      $region73: #{tpu_custom_call.1} parent=5 // pred_check
        %p505 = pneg %p504
      $region74: #{tpu_custom_call.1} parent=5 // pred_check_branch
        %507 = sbr.rel (%p505) target = $region76
      $region75: #{tpu_custom_call.1} parent=5 // pred_region
        // Predicated region
        $region77: #{tpu_custom_call.1} parent=75 // pred_check
          %p508 = pneg %p49
        $region78: #{tpu_custom_call.1} parent=75 // pred_check_branch
          %510 = sbr.rel (%p508) target = $region80
        $region79: #{tpu_custom_call.1} parent=75 // pred_region
          %p511 = scmp.lt.s32.totalorder %s29, 1
          %s512 = scalar_select %p511, %s29, 1
          %s513 = smul.addr %s512, 8
          %s514 = scalar_lea.vmem %s0, %s513
        $region80: #{tpu_custom_call.1} parent=75 // pred_fallthru
          _
      $region76: #{tpu_custom_call.1} parent=5 // pred_fallthru
        _
      %p515 = scmp.le.s32.totalorder 1, %s29
      %p516 = scmp.lt.s32.totalorder %s29, 3
      %p517 = pnand %p515, %p516
      %p518 = pneg %p517
      // Predicated region
      $region81: #{tpu_custom_call.1} parent=5 // pred_check
        _
      $region82: #{tpu_custom_call.1} parent=5 // pred_check_branch
        %520 = sbr.rel (%p517) target = $region84
      $region83: #{tpu_custom_call.1} parent=5 // pred_region
        %s521 = ssub.s32 %s29, 1
        // Predicated region
        $region85: #{tpu_custom_call.1} parent=83 // pred_check
          %p522 = pneg %p97
        $region86: #{tpu_custom_call.1} parent=83 // pred_check_branch
          %524 = sbr.rel (%p522) target = $region88
        $region87: #{tpu_custom_call.1} parent=83 // pred_region
          %525 = dma.done [#allocation3], 16
        $region88: #{tpu_custom_call.1} parent=83 // pred_fallthru
          _
        // Predicated region
        $region89: #{tpu_custom_call.1} parent=83 // pred_check
          %p526 = pneg %p118
        $region90: #{tpu_custom_call.1} parent=83 // pred_check_branch
          %528 = sbr.rel (%p526) target = $region92
        $region91: #{tpu_custom_call.1} parent=83 // pred_region
          %529 = dma.done [#allocation6], 16
        $region92: #{tpu_custom_call.1} parent=83 // pred_fallthru
          _
        // Predicated region
        $region93: #{tpu_custom_call.1} parent=83 // pred_check
          %p530 = pneg %p160
        $region94: #{tpu_custom_call.1} parent=83 // pred_check_branch
          %532 = sbr.rel (%p530) target = $region96
        $region95: #{tpu_custom_call.1} parent=83 // pred_region
          %533 = dma.done [#allocation6], 16
        $region96: #{tpu_custom_call.1} parent=83 // pred_fallthru
          _
        // Predicated region
        $region97: #{tpu_custom_call.1} parent=83 // pred_check
          %p534 = pneg %p202
        $region98: #{tpu_custom_call.1} parent=83 // pred_check_branch
          %536 = sbr.rel (%p534) target = $region100
        $region99: #{tpu_custom_call.1} parent=83 // pred_region
          %537 = dma.done [#allocation9], 16
        $region100: #{tpu_custom_call.1} parent=83 // pred_fallthru
          _
        // Predicated region
        $region101: #{tpu_custom_call.1} parent=83 // pred_check
          %p538 = pneg %p223
        $region102: #{tpu_custom_call.1} parent=83 // pred_check_branch
          %540 = sbr.rel (%p538) target = $region104
        $region103: #{tpu_custom_call.1} parent=83 // pred_region
          %541 = dma.done [#allocation9], 16
        $region104: #{tpu_custom_call.1} parent=83 // pred_fallthru
          _
        // Predicated region
        $region105: #{tpu_custom_call.1} parent=83 // pred_check
          %p542 = pneg %p244
        $region106: #{tpu_custom_call.1} parent=83 // pred_check_branch
          %544 = sbr.rel (%p542) target = $region108
        $region107: #{tpu_custom_call.1} parent=83 // pred_region
          %545 = dma.done [#allocation12], 16
        $region108: #{tpu_custom_call.1} parent=83 // pred_fallthru
          _
        %p546 = scmp.lt.s32.totalorder %s34, 1
        %s547 = scalar_select %p546, %s34, 1
        %s548 = smul.addr %s547, 8
        %s549 = scalar_lea.vmem %s0, %s548
        %p550 = pneg %p55
        %p551 = pneg %p52
        %p552 = pneg %p76
        %p553 = pneg %p73
        %p554 = pneg %p97
        %p555 = pneg %p94
        %p556 = pneg %p118
        %p557 = pneg %p115
        %p558 = pneg %p139
        %p559 = pneg %p136
        %p560 = pneg %p160
        %p561 = pneg %p157
        %p562 = pneg %p181
        %p563 = pneg %p178
        %p564 = pneg %p202
        %p565 = pneg %p199
        %p566 = pneg %p223
        %p567 = pneg %p220
        %p568 = pneg %p244
        %p569 = pneg %p241
        %p570 = pneg %p265
        %p571 = pneg %p262
        %p572 = pneg %p286
        %p573 = pneg %p283
        %p574 = pneg %p307
        %p575 = pneg %p304
        %p576 = pneg %p328
        %p577 = pneg %p325
        %p578 = pneg %p349
        %p579 = pneg %p346
        %p580 = pneg %p370
        %p581 = pneg %p367
        %p582 = pneg %p396
        %p583 = pneg %p393
        %s584 = sand.u32 %s383, 1
        %s585 = scalar_lea.sflag [#allocation4], %s584
        %s586 = sand.u32 %s383, 1
        %s587 = smul.addr %s586, 8
        %s588 = scalar_lea.vmem [#allocation13], %s587
        %p589 = scmp.lt.s32.totalorder %s34, 1
        %s590 = scalar_select %p589, %s34, 1
        %s591 = smul.addr %s590, 8
        %s592 = scalar_lea.vmem %s0, %s591
        %v594 = vld [vmem:[%s592] sm:$0xff]
        %v595 = vld [vmem:[%s1] sm:$0xf]
        %v596 = vld [vmem:[%s1 + $0x4] sm:$0xf]
        %v597 = vld [vmem:[%s1 + $0x8] sm:$0xf]
        %v598 = vld [vmem:[%s1 + $0xc] sm:$0xf]
        %v599 = vld [vmem:[#allocation2] sm:$0x1]
        %v600 = vld [vmem:[#allocation5] sm:$0x1]
        %v601 = vld [vmem:[#allocation10] sm:$0x1]
        %v602 = vld [vmem:[#allocation11] sm:$0x1]
        %v603 = vpack.c.bf16 %v594, %v594
        %v608 = vunpack.c.l.b16 %v595
        %v609 = vunpack.c.l.b16 %v596
        %v610 = vunpack.c.l.b16 %v597
        %v611 = vunpack.c.l.b16 %v598
        %v612 = vpack.c.b16 %v609, %v608
        %v613 = vpack.c.b16 %v611, %v610
        %vm616 = vcmask 261120
        %v618 = vsel %vm616, %v603, 0
        %620 = vmatprep.subr.bf16.mxu0 0
        %621 = vmatpush1.bf16.msra.mxu0 0
        %622 = vmatprep.subr.bf16.mxu0 0
        %623 = vmatpush1.bf16.msra.mxu0 0
        %624 = vmatprep.subr.bf16.mxu0 0
        %625 = vmatpush1.bf16.msra.mxu0 0
        %626 = vmatprep.subr.bf16.mxu0 0
        %627 = vmatpush1.bf16.msra.mxu0 0
        %628 = vmatprep.subr.bf16.mxu0 0
        %629 = vmatpush1.bf16.msra.mxu0 0
        %630 = vmatprep.subr.bf16.mxu0 0
        %631 = vmatpush1.bf16.msra.mxu0 0
        %632 = vmatprep.subr.bf16.mxu0 0
        %633 = vmatpush1.bf16.msra.mxu0 %v613
        %634 = vmatprep.subr.bf16.mxu0 0
        %635 = vmatpush1.bf16.msra.mxu0 %v612
        %636 = vmatprep.subr.bf16.mxu0 0
        %637 = vmatpush2.bf16.msra.mxu0 0
        %638 = vmatprep.subr.bf16.mxu0 0
        %639 = vmatpush2.bf16.msra.mxu0 0
        %640 = vmatprep.subr.bf16.mxu0 0
        %641 = vmatpush2.bf16.msra.mxu0 0
        %642 = vmatprep.subr.bf16.mxu0 0
        %643 = vmatpush2.bf16.msra.mxu0 0
        %644 = vmatprep.subr.bf16.mxu0 0
        %645 = vmatpush2.bf16.msra.mxu0 0
        %646 = vmatprep.subr.bf16.mxu0 0
        %647 = vmatpush2.bf16.msra.mxu0 0
        %648 = vmatprep.subr.bf16.mxu0 0
        %649 = vmatpush2.bf16.msra.mxu0 0
        %650 = vmatprep.subr.bf16.mxu0 0
        %651 = vmatpush2.bf16.msra.mxu0 0
        %652 = vmatprep.mubr.bf16.mxu0 0
        %653 = vmatmul.mubr.bf16.gmra.mxu0 %v618
        %v654 = vpop.f32.mrf.mxu0
        %v655 = vadd.f32 0.0, %v654
        %v656 = vpop.f32.mrf.mxu0
        %v657 = vpop.f32.mrf.mxu0
        %v658 = vpop.f32.mrf.mxu0
        %659 = vdwg.mxu0
        %v660 = vsub.f32 %v594, %v655
        %v661 = vmul.f32 %v660, %v660
        %v662 = vpack.c.bf16 %v661, %v661
        %v664 = vsel %vm616, %v662, 0
        %666 = vmatprep.subr.bf16.mxu0 0
        %667 = vmatpush1.bf16.msra.mxu0 0
        %668 = vmatprep.subr.bf16.mxu0 0
        %669 = vmatpush1.bf16.msra.mxu0 0
        %670 = vmatprep.subr.bf16.mxu0 0
        %671 = vmatpush1.bf16.msra.mxu0 0
        %672 = vmatprep.subr.bf16.mxu0 0
        %673 = vmatpush1.bf16.msra.mxu0 0
        %674 = vmatprep.subr.bf16.mxu0 0
        %675 = vmatpush1.bf16.msra.mxu0 0
        %676 = vmatprep.subr.bf16.mxu0 0
        %677 = vmatpush1.bf16.msra.mxu0 0
        %678 = vmatprep.subr.bf16.mxu0 0
        %679 = vmatpush1.bf16.msra.mxu0 %v613
        %680 = vmatprep.subr.bf16.mxu0 0
        %681 = vmatpush1.bf16.msra.mxu0 %v612
        %682 = vmatprep.subr.bf16.mxu0 0
        %683 = vmatpush2.bf16.msra.mxu0 0
        %684 = vmatprep.subr.bf16.mxu0 0
        %685 = vmatpush2.bf16.msra.mxu0 0
        %686 = vmatprep.subr.bf16.mxu0 0
        %687 = vmatpush2.bf16.msra.mxu0 0
        %688 = vmatprep.subr.bf16.mxu0 0
        %689 = vmatpush2.bf16.msra.mxu0 0
        %690 = vmatprep.subr.bf16.mxu0 0
        %691 = vmatpush2.bf16.msra.mxu0 0
        %692 = vmatprep.subr.bf16.mxu0 0
        %693 = vmatpush2.bf16.msra.mxu0 0
        %694 = vmatprep.subr.bf16.mxu0 0
        %695 = vmatpush2.bf16.msra.mxu0 0
        %696 = vmatprep.subr.bf16.mxu0 0
        %697 = vmatpush2.bf16.msra.mxu0 0
        %698 = vmatprep.mubr.bf16.mxu0 0
        %699 = vmatmul.mubr.bf16.gmra.mxu0 %v664
        %v700 = vpop.f32.mrf.mxu0
        %v701 = vadd.f32 1e-05, %v700
        %v702 = vpop.f32.mrf.mxu0
        %v703 = vpop.f32.mrf.mxu0
        %v704 = vpop.f32.mrf.mxu0
        %705 = vdwg.mxu0
        %v706 = vrsqrt.pop %v701
        %v707 = vmul.f32 %v660, %v706
        %v709 = vlaneseq
        %v710 = vshrl.u32 %v709, 7
        %v711 = vsub.s32 0, %v710
        %v712 = vrot.slane %v599, %v711
        %v714 = vmul.f32 %v707, %v712
        %v716 = vlaneseq
        %v717 = vshrl.u32 %v716, 7
        %v718 = vsub.s32 0, %v717
        %v719 = vrot.slane %v600, %v718
        %v721 = vadd.f32 %v714, %v719
        %v722 = vld [vmem:[%s4] sm:$0xf]
        %v723 = vld [vmem:[%s4 + $0x4] sm:$0xf]
        %v724 = vld [vmem:[%s4 + $0x8] sm:$0xf]
        %v725 = vld [vmem:[%s4 + $0xc] sm:$0xf]
        %v726 = vpack.c.bf16 %v721, %v721
        %v727 = vld [vmem:[#allocation7] sm:$0x1]
        %v729 = vlaneseq
        %v730 = vshrl.u32 %v729, 7
        %v731 = vsub.s32 0, %v730
        %v732 = vrot.slane %v727, %v731
        %v738 = vunpack.c.l.b16 %v722
        %v739 = vunpack.c.l.b16 %v723
        %v740 = vunpack.c.l.b16 %v724
        %v741 = vunpack.c.l.b16 %v725
        %v742 = vpack.c.b16 %v739, %v738
        %v743 = vpack.c.b16 %v741, %v740
        %v747 = vsel %vm616, %v726, 0
        %749 = vmatprep.subr.bf16.mxu0 0
        %750 = vmatpush1.bf16.msra.mxu0 0
        %751 = vmatprep.subr.bf16.mxu0 0
        %752 = vmatpush1.bf16.msra.mxu0 0
        %753 = vmatprep.subr.bf16.mxu0 0
        %754 = vmatpush1.bf16.msra.mxu0 0
        %755 = vmatprep.subr.bf16.mxu0 0
        %756 = vmatpush1.bf16.msra.mxu0 0
        %757 = vmatprep.subr.bf16.mxu0 0
        %758 = vmatpush1.bf16.msra.mxu0 0
        %759 = vmatprep.subr.bf16.mxu0 0
        %760 = vmatpush1.bf16.msra.mxu0 0
        %761 = vmatprep.subr.bf16.mxu0 0
        %762 = vmatpush1.bf16.msra.mxu0 %v743
        %763 = vmatprep.subr.bf16.mxu0 0
        %764 = vmatpush1.bf16.msra.mxu0 %v742
        %765 = vmatprep.subr.bf16.mxu0 0
        %766 = vmatpush2.bf16.msra.mxu0 0
        %767 = vmatprep.subr.bf16.mxu0 0
        %768 = vmatpush2.bf16.msra.mxu0 0
        %769 = vmatprep.subr.bf16.mxu0 0
        %770 = vmatpush2.bf16.msra.mxu0 0
        %771 = vmatprep.subr.bf16.mxu0 0
        %772 = vmatpush2.bf16.msra.mxu0 0
        %773 = vmatprep.subr.bf16.mxu0 0
        %774 = vmatpush2.bf16.msra.mxu0 0
        %775 = vmatprep.subr.bf16.mxu0 0
        %776 = vmatpush2.bf16.msra.mxu0 0
        %777 = vmatprep.subr.bf16.mxu0 0
        %778 = vmatpush2.bf16.msra.mxu0 0
        %779 = vmatprep.subr.bf16.mxu0 0
        %780 = vmatpush2.bf16.msra.mxu0 0
        %781 = vmatprep.mubr.bf16.mxu0 0
        %782 = vmatmul.mubr.bf16.gmra.mxu0 %v747
        %v783 = vpop.f32.mrf.mxu0
        %v784 = vadd.f32 %v732, %v783
        %v785 = vpop.f32.mrf.mxu0
        %v786 = vpop.f32.mrf.mxu0
        %v787 = vpop.f32.mrf.mxu0
        %788 = vdwg.mxu0
        %v789 = vpack.c.bf16 %v784, %v784
        %791 = vrot.lane.b32.xlu0 %v789, 96
        %v792 = vpop.permute.xlu0 %791
        %vm793 = vcmask 64512
        %v795 = vsel %vm793, %v789, 0
        %v798 = vsel %vm793, %v792, 0
        %800 = vmatprep.subr.bf16.mxu0 0
        %801 = vmatpush1.bf16.xpose.msra.mxu0 0
        %802 = vmatprep.subr.bf16.mxu0 0
        %803 = vmatpush1.bf16.xpose.msra.mxu0 0
        %804 = vmatprep.subr.bf16.mxu0 0
        %805 = vmatpush1.bf16.xpose.msra.mxu0 0
        %806 = vmatprep.subr.bf16.mxu0 0
        %807 = vmatpush1.bf16.xpose.msra.mxu0 0
        %808 = vmatprep.subr.bf16.mxu0 0
        %809 = vmatpush1.bf16.xpose.msra.mxu0 0
        %810 = vmatprep.subr.bf16.mxu0 0
        %811 = vmatpush1.bf16.xpose.msra.mxu0 0
        %812 = vmatprep.subr.bf16.mxu0 0
        %813 = vmatpush1.bf16.xpose.msra.mxu0 0
        %814 = vmatprep.subr.bf16.mxu0 0
        %815 = vmatpush1.bf16.xpose.msra.mxu0 %v798
        %816 = vmatprep.subr.bf16.mxu0 0
        %817 = vmatpush2.bf16.xpose.msra.mxu0 0
        %818 = vmatprep.subr.bf16.mxu0 0
        %819 = vmatpush2.bf16.xpose.msra.mxu0 0
        %820 = vmatprep.subr.bf16.mxu0 0
        %821 = vmatpush2.bf16.xpose.msra.mxu0 0
        %822 = vmatprep.subr.bf16.mxu0 0
        %823 = vmatpush2.bf16.xpose.msra.mxu0 0
        %824 = vmatprep.subr.bf16.mxu0 0
        %825 = vmatpush2.bf16.xpose.msra.mxu0 0
        %826 = vmatprep.subr.bf16.mxu0 0
        %827 = vmatpush2.bf16.xpose.msra.mxu0 0
        %828 = vmatprep.subr.bf16.mxu0 0
        %829 = vmatpush2.bf16.xpose.msra.mxu0 0
        %830 = vmatprep.subr.bf16.mxu0 0
        %831 = vmatpush2.bf16.xpose.msra.mxu0 0
        %832 = vmatprep.mubr.bf16.mxu0 0
        %833 = vmatmul.mubr.bf16.gmra.mxu0 %v795
        %v834 = vpop.f32.mrf.mxu0
        %v835 = vadd.f32 0.0, %v834
        %v836 = vpop.f32.mrf.mxu0
        %v837 = vpop.f32.mrf.mxu0
        %v838 = vpop.f32.mrf.mxu0
        %839 = vdwg.mxu0
        %v840 = vsel %vm793, %v835, -inf
        %841 = vmax.xlane.f32.xlu0 %v840
        %v842 = vpop.xlane.xlu0 %841
        %v843 = vsub.f32 %v835, %v842
        %v844 = vmul.f32 %v843, 1.442695
        %v845 = vpow.pop %v844
        %v846 = vsel %vm793, %v845, 0.0
        %847 = vadd.xlane.f32.xlu0 %v846
        %v848 = vpop.xlane.xlu0 %847
        %v849 = vrcp.pop %v848
        %v850 = vmul.f32 %v845, %v849
        %v851 = vpack.c.bf16 %v850, %v850
        %852 = vrot.lane.b32.xlu0 %v789, 64
        %v853 = vpop.permute.xlu0 %852
        %v855 = vsel %vm793, %v851, 0
        %vm857 = vcmask 1043456
        %v859 = vsel %vm857, %v853, 0
        %861 = vmatprep.subr.bf16.mxu0 0
        %862 = vmatpush1.bf16.msra.mxu0 0
        %863 = vmatprep.subr.bf16.mxu0 0
        %864 = vmatpush1.bf16.msra.mxu0 0
        %865 = vmatprep.subr.bf16.mxu0 0
        %866 = vmatpush1.bf16.msra.mxu0 0
        %867 = vmatprep.subr.bf16.mxu0 0
        %868 = vmatpush1.bf16.msra.mxu0 0
        %869 = vmatprep.subr.bf16.mxu0 0
        %870 = vmatpush1.bf16.msra.mxu0 0
        %871 = vmatprep.subr.bf16.mxu0 0
        %872 = vmatpush1.bf16.msra.mxu0 0
        %873 = vmatprep.subr.bf16.mxu0 0
        %874 = vmatpush1.bf16.msra.mxu0 0
        %875 = vmatprep.subr.bf16.mxu0 0
        %876 = vmatpush1.bf16.msra.mxu0 %v859
        %877 = vmatprep.subr.bf16.mxu0 0
        %878 = vmatpush2.bf16.msra.mxu0 0
        %879 = vmatprep.subr.bf16.mxu0 0
        %880 = vmatpush2.bf16.msra.mxu0 0
        %881 = vmatprep.subr.bf16.mxu0 0
        %882 = vmatpush2.bf16.msra.mxu0 0
        %883 = vmatprep.subr.bf16.mxu0 0
        %884 = vmatpush2.bf16.msra.mxu0 0
        %885 = vmatprep.subr.bf16.mxu0 0
        %886 = vmatpush2.bf16.msra.mxu0 0
        %887 = vmatprep.subr.bf16.mxu0 0
        %888 = vmatpush2.bf16.msra.mxu0 0
        %889 = vmatprep.subr.bf16.mxu0 0
        %890 = vmatpush2.bf16.msra.mxu0 0
        %891 = vmatprep.subr.bf16.mxu0 0
        %892 = vmatpush2.bf16.msra.mxu0 0
        %893 = vmatprep.mubr.bf16.mxu0 0
        %894 = vmatmul.mubr.bf16.gmra.mxu0 %v855
        %v895 = vpop.f32.mrf.mxu0
        %v896 = vadd.f32 0.0, %v895
        %v897 = vpop.f32.mrf.mxu0
        %v898 = vpop.f32.mrf.mxu0
        %v899 = vpop.f32.mrf.mxu0
        %900 = vdwg.mxu0
        %v901 = vld [vmem:[%s6] sm:$0xf]
        %v902 = vpack.c.bf16 %v896, %v896
        %903 = vrot.lane.b32.xlu0 %v789, 120
        %v904 = vpop.permute.xlu0 %903
        %905 = vrot.lane.b32.xlu0 %v789, 88
        %v906 = vpop.permute.xlu0 %905
        %v908 = vsel %vm793, %v904, 0
        %v911 = vsel %vm793, %v906, 0
        %913 = vmatprep.subr.bf16.mxu0 0
        %914 = vmatpush1.bf16.xpose.msra.mxu0 0
        %915 = vmatprep.subr.bf16.mxu0 0
        %916 = vmatpush1.bf16.xpose.msra.mxu0 0
        %917 = vmatprep.subr.bf16.mxu0 0
        %918 = vmatpush1.bf16.xpose.msra.mxu0 0
        %919 = vmatprep.subr.bf16.mxu0 0
        %920 = vmatpush1.bf16.xpose.msra.mxu0 0
        %921 = vmatprep.subr.bf16.mxu0 0
        %922 = vmatpush1.bf16.xpose.msra.mxu0 0
        %923 = vmatprep.subr.bf16.mxu0 0
        %924 = vmatpush1.bf16.xpose.msra.mxu0 0
        %925 = vmatprep.subr.bf16.mxu0 0
        %926 = vmatpush1.bf16.xpose.msra.mxu0 0
        %927 = vmatprep.subr.bf16.mxu0 0
        %928 = vmatpush1.bf16.xpose.msra.mxu0 %v911
        %929 = vmatprep.subr.bf16.mxu0 0
        %930 = vmatpush2.bf16.xpose.msra.mxu0 0
        %931 = vmatprep.subr.bf16.mxu0 0
        %932 = vmatpush2.bf16.xpose.msra.mxu0 0
        %933 = vmatprep.subr.bf16.mxu0 0
        %934 = vmatpush2.bf16.xpose.msra.mxu0 0
        %935 = vmatprep.subr.bf16.mxu0 0
        %936 = vmatpush2.bf16.xpose.msra.mxu0 0
        %937 = vmatprep.subr.bf16.mxu0 0
        %938 = vmatpush2.bf16.xpose.msra.mxu0 0
        %939 = vmatprep.subr.bf16.mxu0 0
        %940 = vmatpush2.bf16.xpose.msra.mxu0 0
        %941 = vmatprep.subr.bf16.mxu0 0
        %942 = vmatpush2.bf16.xpose.msra.mxu0 0
        %943 = vmatprep.subr.bf16.mxu0 0
        %944 = vmatpush2.bf16.xpose.msra.mxu0 0
        %945 = vmatprep.mubr.bf16.mxu0 0
        %946 = vmatmul.mubr.bf16.gmra.mxu0 %v908
        %v947 = vpop.f32.mrf.mxu0
        %v948 = vadd.f32 0.0, %v947
        %v949 = vpop.f32.mrf.mxu0
        %v950 = vpop.f32.mrf.mxu0
        %v951 = vpop.f32.mrf.mxu0
        %952 = vdwg.mxu0
        %v953 = vsel %vm793, %v948, -inf
        %954 = vmax.xlane.f32.xlu0 %v953
        %v955 = vpop.xlane.xlu0 %954
        %v956 = vsub.f32 %v948, %v955
        %v957 = vmul.f32 %v956, 1.442695
        %v958 = vpow.pop %v957
        %v959 = vsel %vm793, %v958, 0.0
        %960 = vadd.xlane.f32.xlu0 %v959
        %v961 = vpop.xlane.xlu0 %960
        %v962 = vrcp.pop %v961
        %v963 = vmul.f32 %v958, %v962
        %v964 = vpack.c.bf16 %v963, %v963
        %965 = vrot.lane.b32.xlu0 %v789, 56
        %v966 = vpop.permute.xlu0 %965
        %v968 = vsel %vm793, %v964, 0
        %v971 = vsel %vm857, %v966, 0
        %973 = vmatprep.subr.bf16.mxu0 0
        %974 = vmatpush1.bf16.msra.mxu0 0
        %975 = vmatprep.subr.bf16.mxu0 0
        %976 = vmatpush1.bf16.msra.mxu0 0
        %977 = vmatprep.subr.bf16.mxu0 0
        %978 = vmatpush1.bf16.msra.mxu0 0
        %979 = vmatprep.subr.bf16.mxu0 0
        %980 = vmatpush1.bf16.msra.mxu0 0
        %981 = vmatprep.subr.bf16.mxu0 0
        %982 = vmatpush1.bf16.msra.mxu0 0
        %983 = vmatprep.subr.bf16.mxu0 0
        %984 = vmatpush1.bf16.msra.mxu0 0
        %985 = vmatprep.subr.bf16.mxu0 0
        %986 = vmatpush1.bf16.msra.mxu0 0
        %987 = vmatprep.subr.bf16.mxu0 0
        %988 = vmatpush1.bf16.msra.mxu0 %v971
        %989 = vmatprep.subr.bf16.mxu0 0
        %990 = vmatpush2.bf16.msra.mxu0 0
        %991 = vmatprep.subr.bf16.mxu0 0
        %992 = vmatpush2.bf16.msra.mxu0 0
        %993 = vmatprep.subr.bf16.mxu0 0
        %994 = vmatpush2.bf16.msra.mxu0 0
        %995 = vmatprep.subr.bf16.mxu0 0
        %996 = vmatpush2.bf16.msra.mxu0 0
        %997 = vmatprep.subr.bf16.mxu0 0
        %998 = vmatpush2.bf16.msra.mxu0 0
        %999 = vmatprep.subr.bf16.mxu0 0
        %1000 = vmatpush2.bf16.msra.mxu0 0
        %1001 = vmatprep.subr.bf16.mxu0 0
        %1002 = vmatpush2.bf16.msra.mxu0 0
        %1003 = vmatprep.subr.bf16.mxu0 0
        %1004 = vmatpush2.bf16.msra.mxu0 0
        %1005 = vmatprep.mubr.bf16.mxu0 0
        %1006 = vmatmul.mubr.bf16.gmra.mxu0 %v968
        %v1007 = vpop.f32.mrf.mxu0
        %v1008 = vadd.f32 0.0, %v1007
        %v1009 = vpop.f32.mrf.mxu0
        %v1010 = vpop.f32.mrf.mxu0
        %v1011 = vpop.f32.mrf.mxu0
        %1012 = vdwg.mxu0
        %v1013 = vld [vmem:[%s6 + $0x4] sm:$0xf]
        %v1014 = vpack.c.bf16 %v1008, %v1008
        %v1016 = vsel %vm793, %v1014, 0
        %v1019 = vsel %vm857, %v1013, 0
        %1021 = vmatprep.subr.bf16.mxu0 0
        %1022 = vmatpush1.bf16.msra.mxu0 0
        %1023 = vmatprep.subr.bf16.mxu0 0
        %1024 = vmatpush1.bf16.msra.mxu0 0
        %1025 = vmatprep.subr.bf16.mxu0 0
        %1026 = vmatpush1.bf16.msra.mxu0 0
        %1027 = vmatprep.subr.bf16.mxu0 0
        %1028 = vmatpush1.bf16.msra.mxu0 0
        %1029 = vmatprep.subr.bf16.mxu0 0
        %1030 = vmatpush1.bf16.msra.mxu0 0
        %1031 = vmatprep.subr.bf16.mxu0 0
        %1032 = vmatpush1.bf16.msra.mxu0 0
        %1033 = vmatprep.subr.bf16.mxu0 0
        %1034 = vmatpush1.bf16.msra.mxu0 0
        %1035 = vmatprep.subr.bf16.mxu0 0
        %1036 = vmatpush1.bf16.msra.mxu0 %v1019
        %1037 = vmatprep.subr.bf16.mxu0 0
        %1038 = vmatpush2.bf16.msra.mxu0 0
        %1039 = vmatprep.subr.bf16.mxu0 0
        %1040 = vmatpush2.bf16.msra.mxu0 0
        %1041 = vmatprep.subr.bf16.mxu0 0
        %1042 = vmatpush2.bf16.msra.mxu0 0
        %1043 = vmatprep.subr.bf16.mxu0 0
        %1044 = vmatpush2.bf16.msra.mxu0 0
        %1045 = vmatprep.subr.bf16.mxu0 0
        %1046 = vmatpush2.bf16.msra.mxu0 0
        %1047 = vmatprep.subr.bf16.mxu0 0
        %1048 = vmatpush2.bf16.msra.mxu0 0
        %1049 = vmatprep.subr.bf16.mxu0 0
        %1050 = vmatpush2.bf16.msra.mxu0 0
        %1051 = vmatprep.subr.bf16.mxu0 0
        %1052 = vmatpush2.bf16.msra.mxu0 0
        %1053 = vmatprep.mubr.bf16.mxu0 0
        %1054 = vmatmul.mubr.bf16.gmra.mxu0 %v1016
        %v1055 = vpop.f32.mrf.mxu0
        %v1056 = vadd.f32 0.0, %v1055
        %v1057 = vpop.f32.mrf.mxu0
        %v1058 = vpop.f32.mrf.mxu0
        %v1059 = vpop.f32.mrf.mxu0
        %1060 = vdwg.mxu0
        %v1062 = vsel %vm793, %v902, 0
        %v1065 = vsel %vm857, %v901, 0
        %1067 = vmatprep.subr.bf16.mxu0 0
        %1068 = vmatpush1.bf16.msra.mxu0 0
        %1069 = vmatprep.subr.bf16.mxu0 0
        %1070 = vmatpush1.bf16.msra.mxu0 0
        %1071 = vmatprep.subr.bf16.mxu0 0
        %1072 = vmatpush1.bf16.msra.mxu0 0
        %1073 = vmatprep.subr.bf16.mxu0 0
        %1074 = vmatpush1.bf16.msra.mxu0 0
        %1075 = vmatprep.subr.bf16.mxu0 0
        %1076 = vmatpush1.bf16.msra.mxu0 0
        %1077 = vmatprep.subr.bf16.mxu0 0
        %1078 = vmatpush1.bf16.msra.mxu0 0
        %1079 = vmatprep.subr.bf16.mxu0 0
        %1080 = vmatpush1.bf16.msra.mxu0 0
        %1081 = vmatprep.subr.bf16.mxu0 0
        %1082 = vmatpush1.bf16.msra.mxu0 %v1065
        %1083 = vmatprep.subr.bf16.mxu0 0
        %1084 = vmatpush2.bf16.msra.mxu0 0
        %1085 = vmatprep.subr.bf16.mxu0 0
        %1086 = vmatpush2.bf16.msra.mxu0 0
        %1087 = vmatprep.subr.bf16.mxu0 0
        %1088 = vmatpush2.bf16.msra.mxu0 0
        %1089 = vmatprep.subr.bf16.mxu0 0
        %1090 = vmatpush2.bf16.msra.mxu0 0
        %1091 = vmatprep.subr.bf16.mxu0 0
        %1092 = vmatpush2.bf16.msra.mxu0 0
        %1093 = vmatprep.subr.bf16.mxu0 0
        %1094 = vmatpush2.bf16.msra.mxu0 0
        %1095 = vmatprep.subr.bf16.mxu0 0
        %1096 = vmatpush2.bf16.msra.mxu0 0
        %1097 = vmatprep.subr.bf16.mxu0 0
        %1098 = vmatpush2.bf16.msra.mxu0 0
        %1099 = vmatprep.mubr.bf16.mxu0 0
        %1100 = vmatmul.mubr.bf16.gmra.mxu0 %v1062
        %v1101 = vpop.f32.mrf.mxu0
        %v1102 = vadd.f32 %v1056, %v1101
        %v1103 = vpop.f32.mrf.mxu0
        %v1104 = vpop.f32.mrf.mxu0
        %v1105 = vpop.f32.mrf.mxu0
        %1106 = vdwg.mxu0
        %1107 = vrot.lane.b32.xlu0 %v789, 112
        %v1108 = vpop.permute.xlu0 %1107
        %1109 = vrot.lane.b32.xlu0 %v789, 80
        %v1110 = vpop.permute.xlu0 %1109
        %v1112 = vsel %vm793, %v1108, 0
        %v1115 = vsel %vm793, %v1110, 0
        %1117 = vmatprep.subr.bf16.mxu0 0
        %1118 = vmatpush1.bf16.xpose.msra.mxu0 0
        %1119 = vmatprep.subr.bf16.mxu0 0
        %1120 = vmatpush1.bf16.xpose.msra.mxu0 0
        %1121 = vmatprep.subr.bf16.mxu0 0
        %1122 = vmatpush1.bf16.xpose.msra.mxu0 0
        %1123 = vmatprep.subr.bf16.mxu0 0
        %1124 = vmatpush1.bf16.xpose.msra.mxu0 0
        %1125 = vmatprep.subr.bf16.mxu0 0
        %1126 = vmatpush1.bf16.xpose.msra.mxu0 0
        %1127 = vmatprep.subr.bf16.mxu0 0
        %1128 = vmatpush1.bf16.xpose.msra.mxu0 0
        %1129 = vmatprep.subr.bf16.mxu0 0
        %1130 = vmatpush1.bf16.xpose.msra.mxu0 0
        %1131 = vmatprep.subr.bf16.mxu0 0
        %1132 = vmatpush1.bf16.xpose.msra.mxu0 %v1115
        %1133 = vmatprep.subr.bf16.mxu0 0
        %1134 = vmatpush2.bf16.xpose.msra.mxu0 0
        %1135 = vmatprep.subr.bf16.mxu0 0
        %1136 = vmatpush2.bf16.xpose.msra.mxu0 0
        %1137 = vmatprep.subr.bf16.mxu0 0
        %1138 = vmatpush2.bf16.xpose.msra.mxu0 0
        %1139 = vmatprep.subr.bf16.mxu0 0
        %1140 = vmatpush2.bf16.xpose.msra.mxu0 0
        %1141 = vmatprep.subr.bf16.mxu0 0
        %1142 = vmatpush2.bf16.xpose.msra.mxu0 0
        %1143 = vmatprep.subr.bf16.mxu0 0
        %1144 = vmatpush2.bf16.xpose.msra.mxu0 0
        %1145 = vmatprep.subr.bf16.mxu0 0
        %1146 = vmatpush2.bf16.xpose.msra.mxu0 0
        %1147 = vmatprep.subr.bf16.mxu0 0
        %1148 = vmatpush2.bf16.xpose.msra.mxu0 0
        %1149 = vmatprep.mubr.bf16.mxu0 0
        %1150 = vmatmul.mubr.bf16.gmra.mxu0 %v1112
        %v1151 = vpop.f32.mrf.mxu0
        %v1152 = vadd.f32 0.0, %v1151
        %v1153 = vpop.f32.mrf.mxu0
        %v1154 = vpop.f32.mrf.mxu0
        %v1155 = vpop.f32.mrf.mxu0
        %1156 = vdwg.mxu0
        %v1157 = vsel %vm793, %v1152, -inf
        %1158 = vmax.xlane.f32.xlu0 %v1157
        %v1159 = vpop.xlane.xlu0 %1158
        %v1160 = vsub.f32 %v1152, %v1159
        %v1161 = vmul.f32 %v1160, 1.442695
        %v1162 = vpow.pop %v1161
        %v1163 = vsel %vm793, %v1162, 0.0
        %1164 = vadd.xlane.f32.xlu0 %v1163
        %v1165 = vpop.xlane.xlu0 %1164
        %v1166 = vrcp.pop %v1165
        %v1167 = vmul.f32 %v1162, %v1166
        %v1168 = vpack.c.bf16 %v1167, %v1167
        %1169 = vrot.lane.b32.xlu0 %v789, 48
        %v1170 = vpop.permute.xlu0 %1169
        %v1172 = vsel %vm793, %v1168, 0
        %v1175 = vsel %vm857, %v1170, 0
        %1177 = vmatprep.subr.bf16.mxu0 0
        %1178 = vmatpush1.bf16.msra.mxu0 0
        %1179 = vmatprep.subr.bf16.mxu0 0
        %1180 = vmatpush1.bf16.msra.mxu0 0
        %1181 = vmatprep.subr.bf16.mxu0 0
        %1182 = vmatpush1.bf16.msra.mxu0 0
        %1183 = vmatprep.subr.bf16.mxu0 0
        %1184 = vmatpush1.bf16.msra.mxu0 0
        %1185 = vmatprep.subr.bf16.mxu0 0
        %1186 = vmatpush1.bf16.msra.mxu0 0
        %1187 = vmatprep.subr.bf16.mxu0 0
        %1188 = vmatpush1.bf16.msra.mxu0 0
        %1189 = vmatprep.subr.bf16.mxu0 0
        %1190 = vmatpush1.bf16.msra.mxu0 0
        %1191 = vmatprep.subr.bf16.mxu0 0
        %1192 = vmatpush1.bf16.msra.mxu0 %v1175
        %1193 = vmatprep.subr.bf16.mxu0 0
        %1194 = vmatpush2.bf16.msra.mxu0 0
        %1195 = vmatprep.subr.bf16.mxu0 0
        %1196 = vmatpush2.bf16.msra.mxu0 0
        %1197 = vmatprep.subr.bf16.mxu0 0
        %1198 = vmatpush2.bf16.msra.mxu0 0
        %1199 = vmatprep.subr.bf16.mxu0 0
        %1200 = vmatpush2.bf16.msra.mxu0 0
        %1201 = vmatprep.subr.bf16.mxu0 0
        %1202 = vmatpush2.bf16.msra.mxu0 0
        %1203 = vmatprep.subr.bf16.mxu0 0
        %1204 = vmatpush2.bf16.msra.mxu0 0
        %1205 = vmatprep.subr.bf16.mxu0 0
        %1206 = vmatpush2.bf16.msra.mxu0 0
        %1207 = vmatprep.subr.bf16.mxu0 0
        %1208 = vmatpush2.bf16.msra.mxu0 0
        %1209 = vmatprep.mubr.bf16.mxu0 0
        %1210 = vmatmul.mubr.bf16.gmra.mxu0 %v1172
        %v1211 = vpop.f32.mrf.mxu0
        %v1212 = vadd.f32 0.0, %v1211
        %v1213 = vpop.f32.mrf.mxu0
        %v1214 = vpop.f32.mrf.mxu0
        %v1215 = vpop.f32.mrf.mxu0
        %1216 = vdwg.mxu0
        %v1217 = vld [vmem:[%s6 + $0x8] sm:$0xf]
        %v1218 = vpack.c.bf16 %v1212, %v1212
        %v1220 = vsel %vm793, %v1218, 0
        %v1223 = vsel %vm857, %v1217, 0
        %1225 = vmatprep.subr.bf16.mxu0 0
        %1226 = vmatpush1.bf16.msra.mxu0 0
        %1227 = vmatprep.subr.bf16.mxu0 0
        %1228 = vmatpush1.bf16.msra.mxu0 0
        %1229 = vmatprep.subr.bf16.mxu0 0
        %1230 = vmatpush1.bf16.msra.mxu0 0
        %1231 = vmatprep.subr.bf16.mxu0 0
        %1232 = vmatpush1.bf16.msra.mxu0 0
        %1233 = vmatprep.subr.bf16.mxu0 0
        %1234 = vmatpush1.bf16.msra.mxu0 0
        %1235 = vmatprep.subr.bf16.mxu0 0
        %1236 = vmatpush1.bf16.msra.mxu0 0
        %1237 = vmatprep.subr.bf16.mxu0 0
        %1238 = vmatpush1.bf16.msra.mxu0 0
        %1239 = vmatprep.subr.bf16.mxu0 0
        %1240 = vmatpush1.bf16.msra.mxu0 %v1223
        %1241 = vmatprep.subr.bf16.mxu0 0
        %1242 = vmatpush2.bf16.msra.mxu0 0
        %1243 = vmatprep.subr.bf16.mxu0 0
        %1244 = vmatpush2.bf16.msra.mxu0 0
        %1245 = vmatprep.subr.bf16.mxu0 0
        %1246 = vmatpush2.bf16.msra.mxu0 0
        %1247 = vmatprep.subr.bf16.mxu0 0
        %1248 = vmatpush2.bf16.msra.mxu0 0
        %1249 = vmatprep.subr.bf16.mxu0 0
        %1250 = vmatpush2.bf16.msra.mxu0 0
        %1251 = vmatprep.subr.bf16.mxu0 0
        %1252 = vmatpush2.bf16.msra.mxu0 0
        %1253 = vmatprep.subr.bf16.mxu0 0
        %1254 = vmatpush2.bf16.msra.mxu0 0
        %1255 = vmatprep.subr.bf16.mxu0 0
        %1256 = vmatpush2.bf16.msra.mxu0 0
        %1257 = vmatprep.mubr.bf16.mxu0 0
        %1258 = vmatmul.mubr.bf16.gmra.mxu0 %v1220
        %v1259 = vpop.f32.mrf.mxu0
        %v1260 = vadd.f32 0.0, %v1259
        %v1261 = vpop.f32.mrf.mxu0
        %v1262 = vpop.f32.mrf.mxu0
        %v1263 = vpop.f32.mrf.mxu0
        %1264 = vdwg.mxu0
        %v1265 = vadd.f32 %v1102, %v1260
        %1266 = vrot.lane.b32.xlu0 %v789, 104
        %v1267 = vpop.permute.xlu0 %1266
        %1268 = vrot.lane.b32.xlu0 %v789, 72
        %v1269 = vpop.permute.xlu0 %1268
        %v1271 = vsel %vm793, %v1267, 0
        %v1274 = vsel %vm793, %v1269, 0
        %1276 = vmatprep.subr.bf16.mxu0 0
        %1277 = vmatpush1.bf16.xpose.msra.mxu0 0
        %1278 = vmatprep.subr.bf16.mxu0 0
        %1279 = vmatpush1.bf16.xpose.msra.mxu0 0
        %1280 = vmatprep.subr.bf16.mxu0 0
        %1281 = vmatpush1.bf16.xpose.msra.mxu0 0
        %1282 = vmatprep.subr.bf16.mxu0 0
        %1283 = vmatpush1.bf16.xpose.msra.mxu0 0
        %1284 = vmatprep.subr.bf16.mxu0 0
        %1285 = vmatpush1.bf16.xpose.msra.mxu0 0
        %1286 = vmatprep.subr.bf16.mxu0 0
        %1287 = vmatpush1.bf16.xpose.msra.mxu0 0
        %1288 = vmatprep.subr.bf16.mxu0 0
        %1289 = vmatpush1.bf16.xpose.msra.mxu0 0
        %1290 = vmatprep.subr.bf16.mxu0 0
        %1291 = vmatpush1.bf16.xpose.msra.mxu0 %v1274
        %1292 = vmatprep.subr.bf16.mxu0 0
        %1293 = vmatpush2.bf16.xpose.msra.mxu0 0
        %1294 = vmatprep.subr.bf16.mxu0 0
        %1295 = vmatpush2.bf16.xpose.msra.mxu0 0
        %1296 = vmatprep.subr.bf16.mxu0 0
        %1297 = vmatpush2.bf16.xpose.msra.mxu0 0
        %1298 = vmatprep.subr.bf16.mxu0 0
        %1299 = vmatpush2.bf16.xpose.msra.mxu0 0
        %1300 = vmatprep.subr.bf16.mxu0 0
        %1301 = vmatpush2.bf16.xpose.msra.mxu0 0
        %1302 = vmatprep.subr.bf16.mxu0 0
        %1303 = vmatpush2.bf16.xpose.msra.mxu0 0
        %1304 = vmatprep.subr.bf16.mxu0 0
        %1305 = vmatpush2.bf16.xpose.msra.mxu0 0
        %1306 = vmatprep.subr.bf16.mxu0 0
        %1307 = vmatpush2.bf16.xpose.msra.mxu0 0
        %1308 = vmatprep.mubr.bf16.mxu0 0
        %1309 = vmatmul.mubr.bf16.gmra.mxu0 %v1271
        %v1310 = vpop.f32.mrf.mxu0
        %v1311 = vadd.f32 0.0, %v1310
        %v1312 = vpop.f32.mrf.mxu0
        %v1313 = vpop.f32.mrf.mxu0
        %v1314 = vpop.f32.mrf.mxu0
        %1315 = vdwg.mxu0
        %v1316 = vsel %vm793, %v1311, -inf
        %1317 = vmax.xlane.f32.xlu0 %v1316
        %v1318 = vpop.xlane.xlu0 %1317
        %v1319 = vsub.f32 %v1311, %v1318
        %v1320 = vmul.f32 %v1319, 1.442695
        %v1321 = vpow.pop %v1320
        %v1322 = vsel %vm793, %v1321, 0.0
        %1323 = vadd.xlane.f32.xlu0 %v1322
        %v1324 = vpop.xlane.xlu0 %1323
        %v1325 = vrcp.pop %v1324
        %v1326 = vmul.f32 %v1321, %v1325
        %v1327 = vpack.c.bf16 %v1326, %v1326
        %1328 = vrot.lane.b32.xlu0 %v789, 40
        %v1329 = vpop.permute.xlu0 %1328
        %v1331 = vsel %vm793, %v1327, 0
        %v1334 = vsel %vm857, %v1329, 0
        %1336 = vmatprep.subr.bf16.mxu0 0
        %1337 = vmatpush1.bf16.msra.mxu0 0
        %1338 = vmatprep.subr.bf16.mxu0 0
        %1339 = vmatpush1.bf16.msra.mxu0 0
        %1340 = vmatprep.subr.bf16.mxu0 0
        %1341 = vmatpush1.bf16.msra.mxu0 0
        %1342 = vmatprep.subr.bf16.mxu0 0
        %1343 = vmatpush1.bf16.msra.mxu0 0
        %1344 = vmatprep.subr.bf16.mxu0 0
        %1345 = vmatpush1.bf16.msra.mxu0 0
        %1346 = vmatprep.subr.bf16.mxu0 0
        %1347 = vmatpush1.bf16.msra.mxu0 0
        %1348 = vmatprep.subr.bf16.mxu0 0
        %1349 = vmatpush1.bf16.msra.mxu0 0
        %1350 = vmatprep.subr.bf16.mxu0 0
        %1351 = vmatpush1.bf16.msra.mxu0 %v1334
        %1352 = vmatprep.subr.bf16.mxu0 0
        %1353 = vmatpush2.bf16.msra.mxu0 0
        %1354 = vmatprep.subr.bf16.mxu0 0
        %1355 = vmatpush2.bf16.msra.mxu0 0
        %1356 = vmatprep.subr.bf16.mxu0 0
        %1357 = vmatpush2.bf16.msra.mxu0 0
        %1358 = vmatprep.subr.bf16.mxu0 0
        %1359 = vmatpush2.bf16.msra.mxu0 0
        %1360 = vmatprep.subr.bf16.mxu0 0
        %1361 = vmatpush2.bf16.msra.mxu0 0
        %1362 = vmatprep.subr.bf16.mxu0 0
        %1363 = vmatpush2.bf16.msra.mxu0 0
        %1364 = vmatprep.subr.bf16.mxu0 0
        %1365 = vmatpush2.bf16.msra.mxu0 0
        %1366 = vmatprep.subr.bf16.mxu0 0
        %1367 = vmatpush2.bf16.msra.mxu0 0
        %1368 = vmatprep.mubr.bf16.mxu0 0
        %1369 = vmatmul.mubr.bf16.gmra.mxu0 %v1331
        %v1370 = vpop.f32.mrf.mxu0
        %v1371 = vadd.f32 0.0, %v1370
        %v1372 = vpop.f32.mrf.mxu0
        %v1373 = vpop.f32.mrf.mxu0
        %v1374 = vpop.f32.mrf.mxu0
        %1375 = vdwg.mxu0
        %v1376 = vld [vmem:[%s6 + $0xc] sm:$0xf]
        %v1377 = vpack.c.bf16 %v1371, %v1371
        %v1379 = vsel %vm793, %v1377, 0
        %v1382 = vsel %vm857, %v1376, 0
        %1384 = vmatprep.subr.bf16.mxu0 0
        %1385 = vmatpush1.bf16.msra.mxu0 0
        %1386 = vmatprep.subr.bf16.mxu0 0
        %1387 = vmatpush1.bf16.msra.mxu0 0
        %1388 = vmatprep.subr.bf16.mxu0 0
        %1389 = vmatpush1.bf16.msra.mxu0 0
        %1390 = vmatprep.subr.bf16.mxu0 0
        %1391 = vmatpush1.bf16.msra.mxu0 0
        %1392 = vmatprep.subr.bf16.mxu0 0
        %1393 = vmatpush1.bf16.msra.mxu0 0
        %1394 = vmatprep.subr.bf16.mxu0 0
        %1395 = vmatpush1.bf16.msra.mxu0 0
        %1396 = vmatprep.subr.bf16.mxu0 0
        %1397 = vmatpush1.bf16.msra.mxu0 0
        %1398 = vmatprep.subr.bf16.mxu0 0
        %1399 = vmatpush1.bf16.msra.mxu0 %v1382
        %1400 = vmatprep.subr.bf16.mxu0 0
        %1401 = vmatpush2.bf16.msra.mxu0 0
        %1402 = vmatprep.subr.bf16.mxu0 0
        %1403 = vmatpush2.bf16.msra.mxu0 0
        %1404 = vmatprep.subr.bf16.mxu0 0
        %1405 = vmatpush2.bf16.msra.mxu0 0
        %1406 = vmatprep.subr.bf16.mxu0 0
        %1407 = vmatpush2.bf16.msra.mxu0 0
        %1408 = vmatprep.subr.bf16.mxu0 0
        %1409 = vmatpush2.bf16.msra.mxu0 0
        %1410 = vmatprep.subr.bf16.mxu0 0
        %1411 = vmatpush2.bf16.msra.mxu0 0
        %1412 = vmatprep.subr.bf16.mxu0 0
        %1413 = vmatpush2.bf16.msra.mxu0 0
        %1414 = vmatprep.subr.bf16.mxu0 0
        %1415 = vmatpush2.bf16.msra.mxu0 0
        %1416 = vmatprep.mubr.bf16.mxu0 0
        %1417 = vmatmul.mubr.bf16.gmra.mxu0 %v1379
        %v1418 = vpop.f32.mrf.mxu0
        %v1419 = vadd.f32 0.0, %v1418
        %v1420 = vpop.f32.mrf.mxu0
        %v1421 = vpop.f32.mrf.mxu0
        %v1422 = vpop.f32.mrf.mxu0
        %1423 = vdwg.mxu0
        %v1424 = vadd.f32 %v1265, %v1419
        %v1425 = vld [vmem:[#allocation8] sm:$0x1]
        %v1427 = vlaneseq
        %v1428 = vshrl.u32 %v1427, 7
        %v1429 = vsub.s32 0, %v1428
        %v1430 = vrot.slane %v1425, %v1429
        %v1432 = vadd.f32 %v1424, %v1430
        %v1433 = vadd.f32 %v1432, %v594
        %v1434 = vpack.c.bf16 %v1433, %v1433
        %v1436 = vsel %vm616, %v1434, 0
        %1438 = vmatprep.subr.bf16.mxu0 0
        %1439 = vmatpush1.bf16.msra.mxu0 0
        %1440 = vmatprep.subr.bf16.mxu0 0
        %1441 = vmatpush1.bf16.msra.mxu0 0
        %1442 = vmatprep.subr.bf16.mxu0 0
        %1443 = vmatpush1.bf16.msra.mxu0 0
        %1444 = vmatprep.subr.bf16.mxu0 0
        %1445 = vmatpush1.bf16.msra.mxu0 0
        %1446 = vmatprep.subr.bf16.mxu0 0
        %1447 = vmatpush1.bf16.msra.mxu0 0
        %1448 = vmatprep.subr.bf16.mxu0 0
        %1449 = vmatpush1.bf16.msra.mxu0 0
        %1450 = vmatprep.subr.bf16.mxu0 0
        %1451 = vmatpush1.bf16.msra.mxu0 %v613
        %1452 = vmatprep.subr.bf16.mxu0 0
        %1453 = vmatpush1.bf16.msra.mxu0 %v612
        %1454 = vmatprep.subr.bf16.mxu0 0
        %1455 = vmatpush2.bf16.msra.mxu0 0
        %1456 = vmatprep.subr.bf16.mxu0 0
        %1457 = vmatpush2.bf16.msra.mxu0 0
        %1458 = vmatprep.subr.bf16.mxu0 0
        %1459 = vmatpush2.bf16.msra.mxu0 0
        %1460 = vmatprep.subr.bf16.mxu0 0
        %1461 = vmatpush2.bf16.msra.mxu0 0
        %1462 = vmatprep.subr.bf16.mxu0 0
        %1463 = vmatpush2.bf16.msra.mxu0 0
        %1464 = vmatprep.subr.bf16.mxu0 0
        %1465 = vmatpush2.bf16.msra.mxu0 0
        %1466 = vmatprep.subr.bf16.mxu0 0
        %1467 = vmatpush2.bf16.msra.mxu0 0
        %1468 = vmatprep.subr.bf16.mxu0 0
        %1469 = vmatpush2.bf16.msra.mxu0 0
        %1470 = vmatprep.mubr.bf16.mxu0 0
        %1471 = vmatmul.mubr.bf16.gmra.mxu0 %v1436
        %v1472 = vpop.f32.mrf.mxu0
        %v1473 = vadd.f32 0.0, %v1472
        %v1474 = vpop.f32.mrf.mxu0
        %v1475 = vpop.f32.mrf.mxu0
        %v1476 = vpop.f32.mrf.mxu0
        %1477 = vdwg.mxu0
        %v1478 = vsub.f32 %v1433, %v1473
        %v1479 = vmul.f32 %v1478, %v1478
        %v1480 = vpack.c.bf16 %v1479, %v1479
        %v1482 = vsel %vm616, %v1480, 0
        %1484 = vmatprep.subr.bf16.mxu0 0
        %1485 = vmatpush1.bf16.msra.mxu0 0
        %1486 = vmatprep.subr.bf16.mxu0 0
        %1487 = vmatpush1.bf16.msra.mxu0 0
        %1488 = vmatprep.subr.bf16.mxu0 0
        %1489 = vmatpush1.bf16.msra.mxu0 0
        %1490 = vmatprep.subr.bf16.mxu0 0
        %1491 = vmatpush1.bf16.msra.mxu0 0
        %1492 = vmatprep.subr.bf16.mxu0 0
        %1493 = vmatpush1.bf16.msra.mxu0 0
        %1494 = vmatprep.subr.bf16.mxu0 0
        %1495 = vmatpush1.bf16.msra.mxu0 0
        %1496 = vmatprep.subr.bf16.mxu0 0
        %1497 = vmatpush1.bf16.msra.mxu0 %v613
        %1498 = vmatprep.subr.bf16.mxu0 0
        %1499 = vmatpush1.bf16.msra.mxu0 %v612
        %1500 = vmatprep.subr.bf16.mxu0 0
        %1501 = vmatpush2.bf16.msra.mxu0 0
        %1502 = vmatprep.subr.bf16.mxu0 0
        %1503 = vmatpush2.bf16.msra.mxu0 0
        %1504 = vmatprep.subr.bf16.mxu0 0
        %1505 = vmatpush2.bf16.msra.mxu0 0
        %1506 = vmatprep.subr.bf16.mxu0 0
        %1507 = vmatpush2.bf16.msra.mxu0 0
        %1508 = vmatprep.subr.bf16.mxu0 0
        %1509 = vmatpush2.bf16.msra.mxu0 0
        %1510 = vmatprep.subr.bf16.mxu0 0
        %1511 = vmatpush2.bf16.msra.mxu0 0
        %1512 = vmatprep.subr.bf16.mxu0 0
        %1513 = vmatpush2.bf16.msra.mxu0 0
        %1514 = vmatprep.subr.bf16.mxu0 0
        %1515 = vmatpush2.bf16.msra.mxu0 0
        %1516 = vmatprep.mubr.bf16.mxu0 0
        %1517 = vmatmul.mubr.bf16.gmra.mxu0 %v1482
        %v1518 = vpop.f32.mrf.mxu0
        %v1519 = vadd.f32 1e-05, %v1518
        %v1520 = vpop.f32.mrf.mxu0
        %v1521 = vpop.f32.mrf.mxu0
        %v1522 = vpop.f32.mrf.mxu0
        %1523 = vdwg.mxu0
        %v1524 = vrsqrt.pop %v1519
        %v1525 = vmul.f32 %v1478, %v1524
        %v1527 = vlaneseq
        %v1528 = vshrl.u32 %v1527, 7
        %v1529 = vsub.s32 0, %v1528
        %v1530 = vrot.slane %v601, %v1529
        %v1532 = vmul.f32 %v1525, %v1530
        %v1534 = vlaneseq
        %v1535 = vshrl.u32 %v1534, 7
        %v1536 = vsub.s32 0, %v1535
        %v1537 = vrot.slane %v602, %v1536
        %v1539 = vadd.f32 %v1532, %v1537
        %v1540 = vld [vmem:[%s10] sm:$0xf]
        %v1541 = vld [vmem:[%s10 + $0x4] sm:$0xf]
        %v1542 = vld [vmem:[%s10 + $0x8] sm:$0xf]
        %v1543 = vld [vmem:[%s10 + $0xc] sm:$0xf]
        %v1544 = vpack.c.bf16 %v1539, %v1539
        %v1545 = vld [vmem:[%s11] sm:$0x1]
        %v1547 = vlaneseq
        %v1548 = vshrl.u32 %v1547, 7
        %v1549 = vsub.s32 0, %v1548
        %v1550 = vrot.slane %v1545, %v1549
        %v1556 = vunpack.c.l.b16 %v1540
        %v1557 = vunpack.c.l.b16 %v1541
        %v1558 = vunpack.c.l.b16 %v1542
        %v1559 = vunpack.c.l.b16 %v1543
        %v1560 = vpack.c.b16 %v1557, %v1556
        %v1561 = vpack.c.b16 %v1559, %v1558
        %v1565 = vsel %vm616, %v1544, 0
        %1567 = vmatprep.subr.bf16.mxu0 0
        %1568 = vmatpush1.bf16.msra.mxu0 0
        %1569 = vmatprep.subr.bf16.mxu0 0
        %1570 = vmatpush1.bf16.msra.mxu0 0
        %1571 = vmatprep.subr.bf16.mxu0 0
        %1572 = vmatpush1.bf16.msra.mxu0 0
        %1573 = vmatprep.subr.bf16.mxu0 0
        %1574 = vmatpush1.bf16.msra.mxu0 0
        %1575 = vmatprep.subr.bf16.mxu0 0
        %1576 = vmatpush1.bf16.msra.mxu0 0
        %1577 = vmatprep.subr.bf16.mxu0 0
        %1578 = vmatpush1.bf16.msra.mxu0 0
        %1579 = vmatprep.subr.bf16.mxu0 0
        %1580 = vmatpush1.bf16.msra.mxu0 %v1561
        %1581 = vmatprep.subr.bf16.mxu0 0
        %1582 = vmatpush1.bf16.msra.mxu0 %v1560
        %1583 = vmatprep.subr.bf16.mxu0 0
        %1584 = vmatpush2.bf16.msra.mxu0 0
        %1585 = vmatprep.subr.bf16.mxu0 0
        %1586 = vmatpush2.bf16.msra.mxu0 0
        %1587 = vmatprep.subr.bf16.mxu0 0
        %1588 = vmatpush2.bf16.msra.mxu0 0
        %1589 = vmatprep.subr.bf16.mxu0 0
        %1590 = vmatpush2.bf16.msra.mxu0 0
        %1591 = vmatprep.subr.bf16.mxu0 0
        %1592 = vmatpush2.bf16.msra.mxu0 0
        %1593 = vmatprep.subr.bf16.mxu0 0
        %1594 = vmatpush2.bf16.msra.mxu0 0
        %1595 = vmatprep.subr.bf16.mxu0 0
        %1596 = vmatpush2.bf16.msra.mxu0 0
        %1597 = vmatprep.subr.bf16.mxu0 0
        %1598 = vmatpush2.bf16.msra.mxu0 0
        %1599 = vmatprep.mubr.bf16.mxu0 0
        %1600 = vmatmul.mubr.bf16.gmra.mxu0 %v1565
        %v1601 = vpop.f32.mrf.mxu0
        %v1602 = vadd.f32 %v1550, %v1601
        %v1603 = vpop.f32.mrf.mxu0
        %v1604 = vpop.f32.mrf.mxu0
        %v1605 = vpop.f32.mrf.mxu0
        %1606 = vdwg.mxu0
        %v1607 = vmul.f32 %v1602, 0.5
        %v1608 = vmul.f32 %v1602, %v1602
        %v1609 = vmul.f32 %v1608, %v1602
        %v1610 = vmul.f32 %v1609, 0.044715
        %v1611 = vadd.f32 %v1602, %v1610
        %v1612 = vmul.f32 %v1611, 0.7978846
        %v1613 = vtanh.pop %v1612
        %v1614 = vadd.f32 %v1613, 1.0
        %v1615 = vmul.f32 %v1607, %v1614
        %v1616 = vld [vmem:[%s12] sm:$0xf]
        %v1617 = vld [vmem:[%s12 + $0x4] sm:$0xf]
        %v1618 = vld [vmem:[%s12 + $0x8] sm:$0xf]
        %v1619 = vld [vmem:[%s12 + $0xc] sm:$0xf]
        %v1620 = vld [vmem:[%s12 + $0x10] sm:$0xf]
        %v1621 = vld [vmem:[%s12 + $0x14] sm:$0xf]
        %v1622 = vld [vmem:[%s12 + $0x18] sm:$0xf]
        %v1623 = vld [vmem:[%s12 + $0x1c] sm:$0xf]
        %v1624 = vld [vmem:[%s12 + $0x20] sm:$0xf]
        %v1625 = vld [vmem:[%s12 + $0x24] sm:$0xf]
        %v1626 = vld [vmem:[%s12 + $0x28] sm:$0xf]
        %v1627 = vld [vmem:[%s12 + $0x2c] sm:$0xf]
        %v1628 = vld [vmem:[%s12 + $0x30] sm:$0xf]
        %v1629 = vld [vmem:[%s12 + $0x34] sm:$0xf]
        %v1630 = vld [vmem:[%s12 + $0x38] sm:$0xf]
        %v1631 = vld [vmem:[%s12 + $0x3c] sm:$0xf]
        %v1632 = vpack.c.bf16 %v1615, %v1615
        %v1633 = vld [vmem:[%s13] sm:$0x1]
        %v1635 = vlaneseq
        %v1636 = vshrl.u32 %v1635, 7
        %v1637 = vsub.s32 0, %v1636
        %v1638 = vrot.slane %v1633, %v1637
        %v1656 = vunpack.c.l.b16 %v1616
        %v1657 = vunpack.c.l.b16 %v1617
        %v1658 = vunpack.c.l.b16 %v1618
        %v1659 = vunpack.c.l.b16 %v1619
        %v1660 = vunpack.c.l.b16 %v1620
        %v1661 = vunpack.c.l.b16 %v1621
        %v1662 = vunpack.c.l.b16 %v1622
        %v1663 = vunpack.c.l.b16 %v1623
        %v1664 = vunpack.c.l.b16 %v1624
        %v1665 = vunpack.c.l.b16 %v1625
        %v1666 = vunpack.c.l.b16 %v1626
        %v1667 = vunpack.c.l.b16 %v1627
        %v1668 = vunpack.c.l.b16 %v1628
        %v1669 = vunpack.c.l.b16 %v1629
        %v1670 = vunpack.c.l.b16 %v1630
        %v1671 = vunpack.c.l.b16 %v1631
        %v1672 = vpack.c.b16 %v1657, %v1656
        %v1673 = vpack.c.b16 %v1659, %v1658
        %v1674 = vpack.c.b16 %v1661, %v1660
        %v1675 = vpack.c.b16 %v1663, %v1662
        %v1676 = vpack.c.b16 %v1665, %v1664
        %v1677 = vpack.c.b16 %v1667, %v1666
        %v1678 = vpack.c.b16 %v1669, %v1668
        %v1679 = vpack.c.b16 %v1671, %v1670
        %1688 = vmatprep.subr.bf16.mxu0 0
        %1689 = vmatpush1.bf16.msra.mxu0 %v1679
        %1690 = vmatprep.subr.bf16.mxu0 0
        %1691 = vmatpush1.bf16.msra.mxu0 %v1678
        %1692 = vmatprep.subr.bf16.mxu0 0
        %1693 = vmatpush1.bf16.msra.mxu0 %v1677
        %1694 = vmatprep.subr.bf16.mxu0 0
        %1695 = vmatpush1.bf16.msra.mxu0 %v1676
        %1696 = vmatprep.subr.bf16.mxu0 0
        %1697 = vmatpush1.bf16.msra.mxu0 %v1675
        %1698 = vmatprep.subr.bf16.mxu0 0
        %1699 = vmatpush1.bf16.msra.mxu0 %v1674
        %1700 = vmatprep.subr.bf16.mxu0 0
        %1701 = vmatpush1.bf16.msra.mxu0 %v1673
        %1702 = vmatprep.subr.bf16.mxu0 0
        %1703 = vmatpush1.bf16.msra.mxu0 %v1672
        %1704 = vmatprep.subr.bf16.mxu0 0
        %1705 = vmatpush2.bf16.msra.mxu0 0
        %1706 = vmatprep.subr.bf16.mxu0 0
        %1707 = vmatpush2.bf16.msra.mxu0 0
        %1708 = vmatprep.subr.bf16.mxu0 0
        %1709 = vmatpush2.bf16.msra.mxu0 0
        %1710 = vmatprep.subr.bf16.mxu0 0
        %1711 = vmatpush2.bf16.msra.mxu0 0
        %1712 = vmatprep.subr.bf16.mxu0 0
        %1713 = vmatpush2.bf16.msra.mxu0 0
        %1714 = vmatprep.subr.bf16.mxu0 0
        %1715 = vmatpush2.bf16.msra.mxu0 0
        %1716 = vmatprep.subr.bf16.mxu0 0
        %1717 = vmatpush2.bf16.msra.mxu0 0
        %1718 = vmatprep.subr.bf16.mxu0 0
        %1719 = vmatpush2.bf16.msra.mxu0 0
        %1720 = vmatprep.mubr.bf16.mxu0 0
        %1721 = vmatmul.mubr.bf16.gmra.mxu0 %v1632
        %v1722 = vpop.f32.mrf.mxu0
        %v1723 = vadd.f32 %v1638, %v1722
        %v1724 = vpop.f32.mrf.mxu0
        %v1725 = vpop.f32.mrf.mxu0
        %v1726 = vpop.f32.mrf.mxu0
        %1727 = vdwg.mxu0
        %v1728 = vmul.f32 %v1723, 0.5
        %v1729 = vmul.f32 %v1723, %v1723
        %v1730 = vmul.f32 %v1729, %v1723
        %v1731 = vmul.f32 %v1730, 0.044715
        %v1732 = vadd.f32 %v1723, %v1731
        %v1733 = vmul.f32 %v1732, 0.7978846
        %v1734 = vtanh.pop %v1733
        %v1735 = vadd.f32 %v1734, 1.0
        %v1736 = vmul.f32 %v1728, %v1735
        %v1737 = vadd.f32 %v1736, %v1433
        %v1738 = vld [vmem:[%s14] sm:$0xf]
        %v1739 = vld [vmem:[%s14 + $0x4] sm:$0xf]
        %v1740 = vld [vmem:[%s14 + $0x8] sm:$0xf]
        %v1741 = vld [vmem:[%s14 + $0xc] sm:$0xf]
        %v1742 = vpack.c.bf16 %v1737, %v1737
        %v1743 = vld [vmem:[%s15] sm:$0x1]
        %v1745 = vlaneseq
        %v1746 = vshrl.u32 %v1745, 7
        %v1747 = vsub.s32 0, %v1746
        %v1748 = vrot.slane %v1743, %v1747
        %v1754 = vunpack.c.l.b16 %v1738
        %v1755 = vunpack.c.l.b16 %v1739
        %v1756 = vunpack.c.l.b16 %v1740
        %v1757 = vunpack.c.l.b16 %v1741
        %v1758 = vpack.c.b16 %v1755, %v1754
        %v1759 = vpack.c.b16 %v1757, %v1756
        %v1763 = vsel %vm616, %v1742, 0
        %1765 = vmatprep.subr.bf16.mxu0 0
        %1766 = vmatpush1.bf16.msra.mxu0 0
        %1767 = vmatprep.subr.bf16.mxu0 0
        %1768 = vmatpush1.bf16.msra.mxu0 0
        %1769 = vmatprep.subr.bf16.mxu0 0
        %1770 = vmatpush1.bf16.msra.mxu0 0
        %1771 = vmatprep.subr.bf16.mxu0 0
        %1772 = vmatpush1.bf16.msra.mxu0 0
        %1773 = vmatprep.subr.bf16.mxu0 0
        %1774 = vmatpush1.bf16.msra.mxu0 0
        %1775 = vmatprep.subr.bf16.mxu0 0
        %1776 = vmatpush1.bf16.msra.mxu0 0
        %1777 = vmatprep.subr.bf16.mxu0 0
        %1778 = vmatpush1.bf16.msra.mxu0 %v1759
        %1779 = vmatprep.subr.bf16.mxu0 0
        %1780 = vmatpush1.bf16.msra.mxu0 %v1758
        %1781 = vmatprep.subr.bf16.mxu0 0
        %1782 = vmatpush2.bf16.msra.mxu0 0
        %1783 = vmatprep.subr.bf16.mxu0 0
        %1784 = vmatpush2.bf16.msra.mxu0 0
        %1785 = vmatprep.subr.bf16.mxu0 0
        %1786 = vmatpush2.bf16.msra.mxu0 0
        %1787 = vmatprep.subr.bf16.mxu0 0
        %1788 = vmatpush2.bf16.msra.mxu0 0
        %1789 = vmatprep.subr.bf16.mxu0 0
        %1790 = vmatpush2.bf16.msra.mxu0 0
        %1791 = vmatprep.subr.bf16.mxu0 0
        %1792 = vmatpush2.bf16.msra.mxu0 0
        %1793 = vmatprep.subr.bf16.mxu0 0
        %1794 = vmatpush2.bf16.msra.mxu0 0
        %1795 = vmatprep.subr.bf16.mxu0 0
        %1796 = vmatpush2.bf16.msra.mxu0 0
        %1797 = vmatprep.mubr.bf16.mxu0 0
        %1798 = vmatmul.mubr.bf16.gmra.mxu0 %v1763
        %v1799 = vpop.f32.mrf.mxu0
        %v1800 = vadd.f32 %v1748, %v1799
        %v1801 = vpop.f32.mrf.mxu0
        %v1802 = vpop.f32.mrf.mxu0
        %v1803 = vpop.f32.mrf.mxu0
        %1804 = vdwg.mxu0
        %1805 = vst.msk [vmem:[%s588] sm:$0xff] %vm616, %v1800
        %s1806 = sand.u32 %s383, 1
        %s1807 = scalar_lea.sflag [#allocation4], %s1806
        %s1808 = sand.u32 %s383, 1
        %s1809 = smul.addr %s1808, 8
        %s1810 = scalar_lea.vmem [#allocation13], %s1809
        // Predicated region
        $region109: #{tpu_custom_call.1} parent=83 // pred_check
          %p1811 = pneg %p393
        $region110: #{tpu_custom_call.1} parent=83 // pred_check_branch
          %1813 = sbr.rel (%p1811) target = $region112
        $region111: #{tpu_custom_call.1} parent=83 // pred_region
          %s1815 = ssub.s32 128, 128
          %1816 = vsyncadd %s1807, %s1815
          %s1817 = smul.addr %s34, 128
          %s1818 = scalar_lea.hbm %s16, %s1817
          %s1820 = sshll.u32 %s1810, 4
          %s1821 = int_to_ptr.vmem [resolvable:$true] %s1820
          %1823 = dma.vmem_to_hbm [thread:$0]  %s1821, 128, %s1818, %s1807
        $region112: #{tpu_custom_call.1} parent=83 // pred_fallthru
          _
      $region84: #{tpu_custom_call.1} parent=5 // pred_fallthru
        _
      %p1824 = scmp.le.s32.totalorder 2, %s29
      // Predicated region
      $region113: #{tpu_custom_call.1} parent=5 // pred_check
        %p1825 = pneg %p1824
      $region114: #{tpu_custom_call.1} parent=5 // pred_check_branch
        %1827 = sbr.rel (%p1825) target = $region116
      $region115: #{tpu_custom_call.1} parent=5 // pred_region
        %s1828 = ssub.s32 %s29, 2
        // Predicated region
        $region117: #{tpu_custom_call.1} parent=115 // pred_check
          %p1829 = pneg %p399
        $region118: #{tpu_custom_call.1} parent=115 // pred_check_branch
          %1831 = sbr.rel (%p1829) target = $region120
        $region119: #{tpu_custom_call.1} parent=115 // pred_region
          %s1832 = sand.u32 %s384, 1
          %s1833 = scalar_lea.sflag [#allocation4], %s1832
          %s1834 = sand.u32 %s384, 1
          %s1835 = smul.addr %s1834, 8
          %s1836 = scalar_lea.vmem [#allocation13], %s1835
          %1837 = dma.done %s1833, 128
        $region120: #{tpu_custom_call.1} parent=115 // pred_fallthru
          _
      $region116: #{tpu_custom_call.1} parent=5 // pred_fallthru
        _
    $region6: #{tpu_custom_call.1} parent=1 // loop_footer
      %s33 = sadd.s32 1, %s29
    $region7: #{tpu_custom_call.1} parent=1 // loop_footer_branch
      %28 = sbr.rel target = $region3
    $region8: #{tpu_custom_call.1} parent=1 // loop_exit
      _
    %1838 = vsyncpa [#allocation3], 1
    %s1839 = scalar_lea.sflag [#allocation3], 1
    %1840 = vsyncpa %s1839, 1
    %1841 = vsyncpa [#allocation6], 1
    %1842 = vsyncpa [#allocation9], 1
    %1843 = vsyncpa [#allocation12], 1
    %1844 = vsyncpa [#allocation4], 1
    %s1845 = scalar_lea.sflag [#allocation4], 1
    %1846 = vsyncpa %s1845, 1

// kernel: tpu_custom_call.1
$region0: #{tpu_custom_call.1}
  #allocation0 [shape = 'u32[]', space=smem, size = 0x4, offset = 0x4, fixed_abs, tag = 'smem constant byte address 0x4 - core index']
  #allocation1 [shape = 'u32[144,128]{1,0:T(1,128)}', space=vmem, size = 0x12000, scoped, tag = 'internal scratch']
  %s0 = inlined_call_operand.vmem [shape: f32[2,8,32], index: 0, kind: input, shape index: {}]
  %s1 = inlined_call_operand.vmem [shape: bf16[32,32], index: 1, kind: input, shape index: {}]
  %s2 = inlined_call_operand.hbm [shape: f32[1,32], index: 2, kind: input, shape index: {}]
  %s3 = inlined_call_operand.hbm [shape: f32[1,32], index: 3, kind: input, shape index: {}]
  %s4 = inlined_call_operand.vmem [shape: bf16[1,32,96], index: 4, kind: input, shape index: {}]
  %s5 = inlined_call_operand.hbm [shape: f32[1,1,96], index: 5, kind: input, shape index: {}]
  %s6 = inlined_call_operand.vmem [shape: bf16[1,32,32], index: 6, kind: input, shape index: {}]
  %s7 = inlined_call_operand.hbm [shape: f32[1,1,32], index: 7, kind: input, shape index: {}]
  %s8 = inlined_call_operand.hbm [shape: f32[1,32], index: 8, kind: input, shape index: {}]
  %s9 = inlined_call_operand.hbm [shape: f32[1,32], index: 9, kind: input, shape index: {}]
  %s10 = inlined_call_operand.vmem [shape: bf16[1,32,128], index: 10, kind: input, shape index: {}]
  %s11 = inlined_call_operand.vmem [shape: f32[1,1,128], index: 11, kind: input, shape index: {}]
  %s12 = inlined_call_operand.vmem [shape: bf16[1,128,32], index: 12, kind: input, shape index: {}]
  %s13 = inlined_call_operand.vmem [shape: f32[1,1,32], index: 13, kind: input, shape index: {}]
  %s14 = inlined_call_operand.vmem [shape: bf16[32,32], index: 14, kind: input, shape index: {}]
  %s15 = inlined_call_operand.vmem [shape: f32[1,32], index: 15, kind: input, shape index: {}]
  %s16 = inlined_call_operand.hbm [shape: f32[2,8,32], index: 16, kind: output, shape index: {}]
  %s17 = sld [smem:[#allocation0]]
  $region121: #{tpu_custom_call.1} parent=0
    _
  %s19 = ssub.s32 1, %s17
  %s20 = scalar_select 0, %s19, %s17
  $region1: #{tpu_custom_call.1} parent=0
    #allocation2 [shape = 'u8[512]{0}', space=vmem, size = 0x400, scoped, tag = 'input window, operand 2, single buffered']
    #allocation3 [shape = 's32[2]{0}', space=sflag, size = 0x8, scoped, tag = 'scoped memory for tpu_custom_call.1']
    #allocation4 [shape = 's32[2]{0}', space=sflag, size = 0x8, scoped, tag = 'scoped memory for tpu_custom_call.1']
    #allocation5 [shape = 'u8[512]{0}', space=vmem, size = 0x400, scoped, tag = 'input window, operand 3, single buffered']
    #allocation6 [shape = 's32[1]{0}', space=sflag, size = 0x4, scoped, tag = 'scoped memory for tpu_custom_call.1']
    #allocation7 [shape = 'u8[512]{0}', space=vmem, size = 0x400, scoped, tag = 'input window, operand 5, single buffered']
    #allocation8 [shape = 'u8[512]{0}', space=vmem, size = 0x400, scoped, tag = 'input window, operand 7, single buffered']
    #allocation9 [shape = 's32[1]{0}', space=sflag, size = 0x4, scoped, tag = 'scoped memory for tpu_custom_call.1']
    #allocation10 [shape = 'u8[512]{0}', space=vmem, size = 0x400, scoped, tag = 'input window, operand 8, single buffered']
    #allocation11 [shape = 'u8[512]{0}', space=vmem, size = 0x400, scoped, tag = 'input window, operand 9, single buffered']
    #allocation12 [shape = 's32[1]{0}', space=sflag, size = 0x4, scoped, tag = 'scoped memory for tpu_custom_call.1']
    #allocation13 [shape = 'u8[8192]{0}', space=vmem, size = 0x2000, scoped, tag = 'output window, operand 0']
    %21 = vsyncpa [#allocation3], 0
    %22 = vsyncpa [#allocation6], 0
    %23 = vsyncpa [#allocation9], 0
    %24 = vsyncpa [#allocation12], 0
    %25 = vsyncpa [#allocation4], 0
    %s26 = scalar_lea.sflag [#allocation4], 1
    %27 = vsyncpa %s26, 0
    loop: start=0, step=1, limit=4
    $region2: #{tpu_custom_call.1} parent=1 // loop_pre_header
      _
    $region3: #{tpu_custom_call.1} parent=1 // loop_header
      %s29 = sphi 0, %s33
      %p30 = scmp.ge.s32.totalorder %s29, 4
      %s39 = sphi 0, %s41
      %s42 = sphi 0, %s39
      %s43 = sphi 0, %s42
      %s59 = sphi 0, %s43
      %s63 = sphi 0, %s63
      %s65 = sphi 0, %s63
      %s66 = sphi 0, %s65
      %s80 = sphi 0, %s66
      %s84 = sphi 0, %s84
      %s86 = sphi 0, %s84
      %s87 = sphi 0, %s86
      %s101 = sphi 0, %s87
      %s105 = sphi 0, %s105
      %s107 = sphi 0, %s105
      %s108 = sphi 0, %s107
      %s122 = sphi 0, %s108
      %s126 = sphi 0, %s126
      %s128 = sphi 0, %s126
      %s129 = sphi 0, %s128
      %s143 = sphi 0, %s129
      %s147 = sphi 0, %s147
      %s149 = sphi 0, %s147
      %s150 = sphi 0, %s149
      %s164 = sphi 0, %s150
      %s168 = sphi 0, %s168
      %s170 = sphi 0, %s168
      %s171 = sphi 0, %s170
      %s185 = sphi 0, %s171
      %s189 = sphi 0, %s189
      %s191 = sphi 0, %s189
      %s192 = sphi 0, %s191
      %s206 = sphi 0, %s192
      %s210 = sphi 0, %s210
      %s212 = sphi 0, %s210
      %s213 = sphi 0, %s212
      %s227 = sphi 0, %s213
      %s231 = sphi 0, %s231
      %s233 = sphi 0, %s231
      %s234 = sphi 0, %s233
      %s248 = sphi 0, %s234
      %s252 = sphi 0, %s252
      %s254 = sphi 0, %s252
      %s255 = sphi 0, %s254
      %s269 = sphi 0, %s255
      %s273 = sphi 0, %s273
      %s275 = sphi 0, %s273
      %s276 = sphi 0, %s275
      %s290 = sphi 0, %s276
      %s294 = sphi 0, %s294
      %s296 = sphi 0, %s294
      %s297 = sphi 0, %s296
      %s311 = sphi 0, %s297
      %s315 = sphi 0, %s315
      %s317 = sphi 0, %s315
      %s318 = sphi 0, %s317
      %s332 = sphi 0, %s318
      %s336 = sphi 0, %s336
      %s338 = sphi 0, %s336
      %s339 = sphi 0, %s338
      %s353 = sphi 0, %s339
      %s357 = sphi 0, %s357
      %s359 = sphi 0, %s357
      %s360 = sphi 0, %s359
      %s374 = sphi 0, %s360
      %s380 = sphi 0, %s382
      %s383 = sphi 0, %s380
      %s384 = sphi 0, %s383
      %s400 = sphi 0, %s384
    $region4: #{tpu_custom_call.1} parent=1 // loop_header_branch
      %32 = sbr.rel (%p30) target = $region8
    $region5: #{tpu_custom_call.1} parent=1 // loop_body
      %s34 = ssub.s32 %s29, 1
      %s35 = ssub.s32 %s29, 2
      %s36 = sadd.s32 %s29, 1
      %s37 = ssub.s32 %s29, %s36
      %p38 = scmp.eq.s32.totalorder %s37, 0
      %s40 = sadd.s32 %s39, 1
      %s41 = scalar_select %p38, %s39, %s40
      %p44 = pneg %p38
      %p45 = scmp.eq.s32.totalorder %s29, 1
      %p46 = por %p44, %p45
      %p47 = scmp.ne.s32.totalorder %s39, %s42
      %p48 = scmp.eq.s32.totalorder %s29, 0
      %p49 = por %p47, %p48
      %p50 = scmp.ne.s32.totalorder %s39, %s42
      %p51 = scmp.eq.s32.totalorder %s34, 1
      %p52 = por %p50, %p51
      %p53 = scmp.ne.s32.totalorder %s42, %s43
      %p54 = scmp.eq.s32.totalorder %s34, 0
      %p55 = por %p53, %p54
      %p56 = scmp.ne.s32.totalorder %s42, %s43
      %p57 = scmp.eq.s32.totalorder %s35, 1
      %p58 = por %p56, %p57
      %p60 = scmp.ne.s32.totalorder %s43, %s59
      %p61 = scmp.eq.s32.totalorder %s35, 0
      %p62 = por %p60, %p61
      %s64 = sadd.s32 %s63, 1
      %p67 = scmp.eq.s32.totalorder %s29, 1
      %p68 = scmp.ne.s32.totalorder %s63, %s65
      %p69 = scmp.eq.s32.totalorder %s29, 0
      %p70 = por %p68, %p69
      %p71 = scmp.ne.s32.totalorder %s63, %s65
      %p72 = scmp.eq.s32.totalorder %s34, 1
      %p73 = por %p71, %p72
      %p74 = scmp.ne.s32.totalorder %s65, %s66
      %p75 = scmp.eq.s32.totalorder %s34, 0
      %p76 = por %p74, %p75
      %p77 = scmp.ne.s32.totalorder %s65, %s66
      %p78 = scmp.eq.s32.totalorder %s35, 1
      %p79 = por %p77, %p78
      %p81 = scmp.ne.s32.totalorder %s66, %s80
      %p82 = scmp.eq.s32.totalorder %s35, 0
      %p83 = por %p81, %p82
      %s85 = sadd.s32 %s84, 1
      %p88 = scmp.eq.s32.totalorder %s29, 1
      %p89 = scmp.ne.s32.totalorder %s84, %s86
      %p90 = scmp.eq.s32.totalorder %s29, 0
      %p91 = por %p89, %p90
      %p92 = scmp.ne.s32.totalorder %s84, %s86
      %p93 = scmp.eq.s32.totalorder %s34, 1
      %p94 = por %p92, %p93
      %p95 = scmp.ne.s32.totalorder %s86, %s87
      %p96 = scmp.eq.s32.totalorder %s34, 0
      %p97 = por %p95, %p96
      %p98 = scmp.ne.s32.totalorder %s86, %s87
      %p99 = scmp.eq.s32.totalorder %s35, 1
      %p100 = por %p98, %p99
      %p102 = scmp.ne.s32.totalorder %s87, %s101
      %p103 = scmp.eq.s32.totalorder %s35, 0
      %p104 = por %p102, %p103
      %s106 = sadd.s32 %s105, 1
      %p109 = scmp.eq.s32.totalorder %s29, 1
      %p110 = scmp.ne.s32.totalorder %s105, %s107
      %p111 = scmp.eq.s32.totalorder %s29, 0
      %p112 = por %p110, %p111
      %p113 = scmp.ne.s32.totalorder %s105, %s107
      %p114 = scmp.eq.s32.totalorder %s34, 1
      %p115 = por %p113, %p114
      %p116 = scmp.ne.s32.totalorder %s107, %s108
      %p117 = scmp.eq.s32.totalorder %s34, 0
      %p118 = por %p116, %p117
      %p119 = scmp.ne.s32.totalorder %s107, %s108
      %p120 = scmp.eq.s32.totalorder %s35, 1
      %p121 = por %p119, %p120
      %p123 = scmp.ne.s32.totalorder %s108, %s122
      %p124 = scmp.eq.s32.totalorder %s35, 0
      %p125 = por %p123, %p124
      %s127 = sadd.s32 %s126, 1
      %p130 = scmp.eq.s32.totalorder %s29, 1
      %p131 = scmp.ne.s32.totalorder %s126, %s128
      %p132 = scmp.eq.s32.totalorder %s29, 0
      %p133 = por %p131, %p132
      %p134 = scmp.ne.s32.totalorder %s126, %s128
      %p135 = scmp.eq.s32.totalorder %s34, 1
      %p136 = por %p134, %p135
      %p137 = scmp.ne.s32.totalorder %s128, %s129
      %p138 = scmp.eq.s32.totalorder %s34, 0
      %p139 = por %p137, %p138
      %p140 = scmp.ne.s32.totalorder %s128, %s129
      %p141 = scmp.eq.s32.totalorder %s35, 1
      %p142 = por %p140, %p141
      %p144 = scmp.ne.s32.totalorder %s129, %s143
      %p145 = scmp.eq.s32.totalorder %s35, 0
      %p146 = por %p144, %p145
      %s148 = sadd.s32 %s147, 1
      %p151 = scmp.eq.s32.totalorder %s29, 1
      %p152 = scmp.ne.s32.totalorder %s147, %s149
      %p153 = scmp.eq.s32.totalorder %s29, 0
      %p154 = por %p152, %p153
      %p155 = scmp.ne.s32.totalorder %s147, %s149
      %p156 = scmp.eq.s32.totalorder %s34, 1
      %p157 = por %p155, %p156
      %p158 = scmp.ne.s32.totalorder %s149, %s150
      %p159 = scmp.eq.s32.totalorder %s34, 0
      %p160 = por %p158, %p159
      %p161 = scmp.ne.s32.totalorder %s149, %s150
      %p162 = scmp.eq.s32.totalorder %s35, 1
      %p163 = por %p161, %p162
      %p165 = scmp.ne.s32.totalorder %s150, %s164
      %p166 = scmp.eq.s32.totalorder %s35, 0
      %p167 = por %p165, %p166
      %s169 = sadd.s32 %s168, 1
      %p172 = scmp.eq.s32.totalorder %s29, 1
      %p173 = scmp.ne.s32.totalorder %s168, %s170
      %p174 = scmp.eq.s32.totalorder %s29, 0
      %p175 = por %p173, %p174
      %p176 = scmp.ne.s32.totalorder %s168, %s170
      %p177 = scmp.eq.s32.totalorder %s34, 1
      %p178 = por %p176, %p177
      %p179 = scmp.ne.s32.totalorder %s170, %s171
      %p180 = scmp.eq.s32.totalorder %s34, 0
      %p181 = por %p179, %p180
      %p182 = scmp.ne.s32.totalorder %s170, %s171
      %p183 = scmp.eq.s32.totalorder %s35, 1
      %p184 = por %p182, %p183
      %p186 = scmp.ne.s32.totalorder %s171, %s185
      %p187 = scmp.eq.s32.totalorder %s35, 0
      %p188 = por %p186, %p187
      %s190 = sadd.s32 %s189, 1
      %p193 = scmp.eq.s32.totalorder %s29, 1
      %p194 = scmp.ne.s32.totalorder %s189, %s191
      %p195 = scmp.eq.s32.totalorder %s29, 0
      %p196 = por %p194, %p195
      %p197 = scmp.ne.s32.totalorder %s189, %s191
      %p198 = scmp.eq.s32.totalorder %s34, 1
      %p199 = por %p197, %p198
      %p200 = scmp.ne.s32.totalorder %s191, %s192
      %p201 = scmp.eq.s32.totalorder %s34, 0
      %p202 = por %p200, %p201
      %p203 = scmp.ne.s32.totalorder %s191, %s192
      %p204 = scmp.eq.s32.totalorder %s35, 1
      %p205 = por %p203, %p204
      %p207 = scmp.ne.s32.totalorder %s192, %s206
      %p208 = scmp.eq.s32.totalorder %s35, 0
      %p209 = por %p207, %p208
      %s211 = sadd.s32 %s210, 1
      %p214 = scmp.eq.s32.totalorder %s29, 1
      %p215 = scmp.ne.s32.totalorder %s210, %s212
      %p216 = scmp.eq.s32.totalorder %s29, 0
      %p217 = por %p215, %p216
      %p218 = scmp.ne.s32.totalorder %s210, %s212
      %p219 = scmp.eq.s32.totalorder %s34, 1
      %p220 = por %p218, %p219
      %p221 = scmp.ne.s32.totalorder %s212, %s213
      %p222 = scmp.eq.s32.totalorder %s34, 0
      %p223 = por %p221, %p222
      %p224 = scmp.ne.s32.totalorder %s212, %s213
      %p225 = scmp.eq.s32.totalorder %s35, 1
      %p226 = por %p224, %p225
      %p228 = scmp.ne.s32.totalorder %s213, %s227
      %p229 = scmp.eq.s32.totalorder %s35, 0
      %p230 = por %p228, %p229
      %s232 = sadd.s32 %s231, 1
      %p235 = scmp.eq.s32.totalorder %s29, 1
      %p236 = scmp.ne.s32.totalorder %s231, %s233
      %p237 = scmp.eq.s32.totalorder %s29, 0
      %p238 = por %p236, %p237
      %p239 = scmp.ne.s32.totalorder %s231, %s233
      %p240 = scmp.eq.s32.totalorder %s34, 1
      %p241 = por %p239, %p240
      %p242 = scmp.ne.s32.totalorder %s233, %s234
      %p243 = scmp.eq.s32.totalorder %s34, 0
      %p244 = por %p242, %p243
      %p245 = scmp.ne.s32.totalorder %s233, %s234
      %p246 = scmp.eq.s32.totalorder %s35, 1
      %p247 = por %p245, %p246
      %p249 = scmp.ne.s32.totalorder %s234, %s248
      %p250 = scmp.eq.s32.totalorder %s35, 0
      %p251 = por %p249, %p250
      %s253 = sadd.s32 %s252, 1
      %p256 = scmp.eq.s32.totalorder %s29, 1
      %p257 = scmp.ne.s32.totalorder %s252, %s254
      %p258 = scmp.eq.s32.totalorder %s29, 0
      %p259 = por %p257, %p258
      %p260 = scmp.ne.s32.totalorder %s252, %s254
      %p261 = scmp.eq.s32.totalorder %s34, 1
      %p262 = por %p260, %p261
      %p263 = scmp.ne.s32.totalorder %s254, %s255
      %p264 = scmp.eq.s32.totalorder %s34, 0
      %p265 = por %p263, %p264
      %p266 = scmp.ne.s32.totalorder %s254, %s255
      %p267 = scmp.eq.s32.totalorder %s35, 1
      %p268 = por %p266, %p267
      %p270 = scmp.ne.s32.totalorder %s255, %s269
      %p271 = scmp.eq.s32.totalorder %s35, 0
      %p272 = por %p270, %p271
      %s274 = sadd.s32 %s273, 1
      %p277 = scmp.eq.s32.totalorder %s29, 1
      %p278 = scmp.ne.s32.totalorder %s273, %s275
      %p279 = scmp.eq.s32.totalorder %s29, 0
      %p280 = por %p278, %p279
      %p281 = scmp.ne.s32.totalorder %s273, %s275
      %p282 = scmp.eq.s32.totalorder %s34, 1
      %p283 = por %p281, %p282
      %p284 = scmp.ne.s32.totalorder %s275, %s276
      %p285 = scmp.eq.s32.totalorder %s34, 0
      %p286 = por %p284, %p285
      %p287 = scmp.ne.s32.totalorder %s275, %s276
      %p288 = scmp.eq.s32.totalorder %s35, 1
      %p289 = por %p287, %p288
      %p291 = scmp.ne.s32.totalorder %s276, %s290
      %p292 = scmp.eq.s32.totalorder %s35, 0
      %p293 = por %p291, %p292
      %s295 = sadd.s32 %s294, 1
      %p298 = scmp.eq.s32.totalorder %s29, 1
      %p299 = scmp.ne.s32.totalorder %s294, %s296
      %p300 = scmp.eq.s32.totalorder %s29, 0
      %p301 = por %p299, %p300
      %p302 = scmp.ne.s32.totalorder %s294, %s296
      %p303 = scmp.eq.s32.totalorder %s34, 1
      %p304 = por %p302, %p303
      %p305 = scmp.ne.s32.totalorder %s296, %s297
      %p306 = scmp.eq.s32.totalorder %s34, 0
      %p307 = por %p305, %p306
      %p308 = scmp.ne.s32.totalorder %s296, %s297
      %p309 = scmp.eq.s32.totalorder %s35, 1
      %p310 = por %p308, %p309
      %p312 = scmp.ne.s32.totalorder %s297, %s311
      %p313 = scmp.eq.s32.totalorder %s35, 0
      %p314 = por %p312, %p313
      %s316 = sadd.s32 %s315, 1
      %p319 = scmp.eq.s32.totalorder %s29, 1
      %p320 = scmp.ne.s32.totalorder %s315, %s317
      %p321 = scmp.eq.s32.totalorder %s29, 0
      %p322 = por %p320, %p321
      %p323 = scmp.ne.s32.totalorder %s315, %s317
      %p324 = scmp.eq.s32.totalorder %s34, 1
      %p325 = por %p323, %p324
      %p326 = scmp.ne.s32.totalorder %s317, %s318
      %p327 = scmp.eq.s32.totalorder %s34, 0
      %p328 = por %p326, %p327
      %p329 = scmp.ne.s32.totalorder %s317, %s318
      %p330 = scmp.eq.s32.totalorder %s35, 1
      %p331 = por %p329, %p330
      %p333 = scmp.ne.s32.totalorder %s318, %s332
      %p334 = scmp.eq.s32.totalorder %s35, 0
      %p335 = por %p333, %p334
      %s337 = sadd.s32 %s336, 1
      %p340 = scmp.eq.s32.totalorder %s29, 1
      %p341 = scmp.ne.s32.totalorder %s336, %s338
      %p342 = scmp.eq.s32.totalorder %s29, 0
      %p343 = por %p341, %p342
      %p344 = scmp.ne.s32.totalorder %s336, %s338
      %p345 = scmp.eq.s32.totalorder %s34, 1
      %p346 = por %p344, %p345
      %p347 = scmp.ne.s32.totalorder %s338, %s339
      %p348 = scmp.eq.s32.totalorder %s34, 0
      %p349 = por %p347, %p348
      %p350 = scmp.ne.s32.totalorder %s338, %s339
      %p351 = scmp.eq.s32.totalorder %s35, 1
      %p352 = por %p350, %p351
      %p354 = scmp.ne.s32.totalorder %s339, %s353
      %p355 = scmp.eq.s32.totalorder %s35, 0
      %p356 = por %p354, %p355
      %s358 = sadd.s32 %s357, 1
      %p361 = scmp.eq.s32.totalorder %s29, 1
      %p362 = scmp.ne.s32.totalorder %s357, %s359
      %p363 = scmp.eq.s32.totalorder %s29, 0
      %p364 = por %p362, %p363
      %p365 = scmp.ne.s32.totalorder %s357, %s359
      %p366 = scmp.eq.s32.totalorder %s34, 1
      %p367 = por %p365, %p366
      %p368 = scmp.ne.s32.totalorder %s359, %s360
      %p369 = scmp.eq.s32.totalorder %s34, 0
      %p370 = por %p368, %p369
      %p371 = scmp.ne.s32.totalorder %s359, %s360
      %p372 = scmp.eq.s32.totalorder %s35, 1
      %p373 = por %p371, %p372
      %p375 = scmp.ne.s32.totalorder %s360, %s374
      %p376 = scmp.eq.s32.totalorder %s35, 0
      %p377 = por %p375, %p376
      %s378 = ssub.s32 %s29, %s36
      %p379 = scmp.eq.s32.totalorder %s378, 0
      %s381 = sadd.s32 %s380, 1
      %s382 = scalar_select %p379, %s380, %s381
      %p385 = pneg %p379
      %p386 = scmp.eq.s32.totalorder %s29, 1
      %p387 = por %p385, %p386
      %p388 = scmp.ne.s32.totalorder %s380, %s383
      %p389 = scmp.eq.s32.totalorder %s29, 0
      %p390 = por %p388, %p389
      %p391 = scmp.ne.s32.totalorder %s380, %s383
      %p392 = scmp.eq.s32.totalorder %s34, 1
      %p393 = por %p391, %p392
      %p394 = scmp.ne.s32.totalorder %s383, %s384
      %p395 = scmp.eq.s32.totalorder %s34, 0
      %p396 = por %p394, %p395
      %p397 = scmp.ne.s32.totalorder %s383, %s384
      %p398 = scmp.eq.s32.totalorder %s35, 1
      %p399 = por %p397, %p398
      %p401 = scmp.ne.s32.totalorder %s384, %s400
      %p402 = scmp.eq.s32.totalorder %s35, 0
      %p403 = por %p401, %p402
      %p404 = scmp.le.s32.totalorder 1, %s29
      %p405 = scmp.lt.s32.totalorder %s29, 3
      %p406 = pnand %p404, %p405
      %p407 = pneg %p406
      // Predicated region
      $region9: #{tpu_custom_call.1} parent=5 // pred_check
        _
      $region10: #{tpu_custom_call.1} parent=5 // pred_check_branch
        %409 = sbr.rel (%p406) target = $region12
      $region11: #{tpu_custom_call.1} parent=5 // pred_region
        %s410 = ssub.s32 %s29, 1
        // Predicated region
        $region13: #{tpu_custom_call.1} parent=11 // pred_check
          %p411 = pneg %p76
        $region14: #{tpu_custom_call.1} parent=11 // pred_check_branch
          %413 = sbr.rel (%p411) target = $region16
        $region15: #{tpu_custom_call.1} parent=11 // pred_region
          _
        $region16: #{tpu_custom_call.1} parent=11 // pred_fallthru
          _
        // Predicated region
        $region17: #{tpu_custom_call.1} parent=11 // pred_check
          %p414 = pneg %p97
        $region18: #{tpu_custom_call.1} parent=11 // pred_check_branch
          %416 = sbr.rel (%p414) target = $region20
        $region19: #{tpu_custom_call.1} parent=11 // pred_region
          %s418 = ssub.s32 16, 16
          %419 = vsyncadd [#allocation3], %s418
          %s421 = sshll.u32 [#allocation2], 4
          %s422 = int_to_ptr.vmem [resolvable:$true] %s421
          %424 = dma.hbm_to_vmem [thread:$0]  %s2, 16, %s422, [#allocation3]
        $region20: #{tpu_custom_call.1} parent=11 // pred_fallthru
          _
        // Predicated region
        $region21: #{tpu_custom_call.1} parent=11 // pred_check
          %p425 = pneg %p118
        $region22: #{tpu_custom_call.1} parent=11 // pred_check_branch
          %427 = sbr.rel (%p425) target = $region24
        $region23: #{tpu_custom_call.1} parent=11 // pred_region
          %s429 = ssub.s32 16, 16
          %430 = vsyncadd [#allocation6], %s429
          %s432 = sshll.u32 [#allocation5], 4
          %s433 = int_to_ptr.vmem [resolvable:$true] %s432
          %435 = dma.hbm_to_vmem [thread:$0]  %s3, 16, %s433, [#allocation6]
        $region24: #{tpu_custom_call.1} parent=11 // pred_fallthru
          _
        // Predicated region
        $region25: #{tpu_custom_call.1} parent=11 // pred_check
          %p436 = pneg %p139
        $region26: #{tpu_custom_call.1} parent=11 // pred_check_branch
          %438 = sbr.rel (%p436) target = $region28
        $region27: #{tpu_custom_call.1} parent=11 // pred_region
          _
        $region28: #{tpu_custom_call.1} parent=11 // pred_fallthru
          _
        // Predicated region
        $region29: #{tpu_custom_call.1} parent=11 // pred_check
          %p439 = pneg %p160
        $region30: #{tpu_custom_call.1} parent=11 // pred_check_branch
          %441 = sbr.rel (%p439) target = $region32
        $region31: #{tpu_custom_call.1} parent=11 // pred_region
          %s443 = ssub.s32 16, 16
          %444 = vsyncadd [#allocation6], %s443
          %s446 = sshll.u32 [#allocation7], 4
          %s447 = int_to_ptr.vmem [resolvable:$true] %s446
          %449 = dma.hbm_to_vmem [thread:$0]  %s5, 16, %s447, [#allocation6]
        $region32: #{tpu_custom_call.1} parent=11 // pred_fallthru
          _
        // Predicated region
        $region33: #{tpu_custom_call.1} parent=11 // pred_check
          %p450 = pneg %p181
        $region34: #{tpu_custom_call.1} parent=11 // pred_check_branch
          %452 = sbr.rel (%p450) target = $region36
        $region35: #{tpu_custom_call.1} parent=11 // pred_region
          _
        $region36: #{tpu_custom_call.1} parent=11 // pred_fallthru
          _
        // Predicated region
        $region37: #{tpu_custom_call.1} parent=11 // pred_check
          %p453 = pneg %p202
        $region38: #{tpu_custom_call.1} parent=11 // pred_check_branch
          %455 = sbr.rel (%p453) target = $region40
        $region39: #{tpu_custom_call.1} parent=11 // pred_region
          %s457 = ssub.s32 16, 16
          %458 = vsyncadd [#allocation9], %s457
          %s460 = sshll.u32 [#allocation8], 4
          %s461 = int_to_ptr.vmem [resolvable:$true] %s460
          %463 = dma.hbm_to_vmem [thread:$0]  %s7, 16, %s461, [#allocation9]
        $region40: #{tpu_custom_call.1} parent=11 // pred_fallthru
          _
        // Predicated region
        $region41: #{tpu_custom_call.1} parent=11 // pred_check
          %p464 = pneg %p223
        $region42: #{tpu_custom_call.1} parent=11 // pred_check_branch
          %466 = sbr.rel (%p464) target = $region44
        $region43: #{tpu_custom_call.1} parent=11 // pred_region
          %s468 = ssub.s32 16, 16
          %469 = vsyncadd [#allocation9], %s468
          %s471 = sshll.u32 [#allocation10], 4
          %s472 = int_to_ptr.vmem [resolvable:$true] %s471
          %474 = dma.hbm_to_vmem [thread:$0]  %s8, 16, %s472, [#allocation9]
        $region44: #{tpu_custom_call.1} parent=11 // pred_fallthru
          _
        // Predicated region
        $region45: #{tpu_custom_call.1} parent=11 // pred_check
          %p475 = pneg %p244
        $region46: #{tpu_custom_call.1} parent=11 // pred_check_branch
          %477 = sbr.rel (%p475) target = $region48
        $region47: #{tpu_custom_call.1} parent=11 // pred_region
          %s479 = ssub.s32 16, 16
          %480 = vsyncadd [#allocation12], %s479
          %s482 = sshll.u32 [#allocation11], 4
          %s483 = int_to_ptr.vmem [resolvable:$true] %s482
          %485 = dma.hbm_to_vmem [thread:$0]  %s9, 16, %s483, [#allocation12]
        $region48: #{tpu_custom_call.1} parent=11 // pred_fallthru
          _
        // Predicated region
        $region49: #{tpu_custom_call.1} parent=11 // pred_check
          %p486 = pneg %p265
        $region50: #{tpu_custom_call.1} parent=11 // pred_check_branch
          %488 = sbr.rel (%p486) target = $region52
        $region51: #{tpu_custom_call.1} parent=11 // pred_region
          _
        $region52: #{tpu_custom_call.1} parent=11 // pred_fallthru
          _
        // Predicated region
        $region53: #{tpu_custom_call.1} parent=11 // pred_check
          %p489 = pneg %p286
        $region54: #{tpu_custom_call.1} parent=11 // pred_check_branch
          %491 = sbr.rel (%p489) target = $region56
        $region55: #{tpu_custom_call.1} parent=11 // pred_region
          _
        $region56: #{tpu_custom_call.1} parent=11 // pred_fallthru
          _
        // Predicated region
        $region57: #{tpu_custom_call.1} parent=11 // pred_check
          %p492 = pneg %p307
        $region58: #{tpu_custom_call.1} parent=11 // pred_check_branch
          %494 = sbr.rel (%p492) target = $region60
        $region59: #{tpu_custom_call.1} parent=11 // pred_region
          _
        $region60: #{tpu_custom_call.1} parent=11 // pred_fallthru
          _
        // Predicated region
        $region61: #{tpu_custom_call.1} parent=11 // pred_check
          %p495 = pneg %p328
        $region62: #{tpu_custom_call.1} parent=11 // pred_check_branch
          %497 = sbr.rel (%p495) target = $region64
        $region63: #{tpu_custom_call.1} parent=11 // pred_region
          _
        $region64: #{tpu_custom_call.1} parent=11 // pred_fallthru
          _
        // Predicated region
        $region65: #{tpu_custom_call.1} parent=11 // pred_check
          %p498 = pneg %p349
        $region66: #{tpu_custom_call.1} parent=11 // pred_check_branch
          %500 = sbr.rel (%p498) target = $region68
        $region67: #{tpu_custom_call.1} parent=11 // pred_region
          _
        $region68: #{tpu_custom_call.1} parent=11 // pred_fallthru
          _
        // Predicated region
        $region69: #{tpu_custom_call.1} parent=11 // pred_check
          %p501 = pneg %p370
        $region70: #{tpu_custom_call.1} parent=11 // pred_check_branch
          %503 = sbr.rel (%p501) target = $region72
        $region71: #{tpu_custom_call.1} parent=11 // pred_region
          _
        $region72: #{tpu_custom_call.1} parent=11 // pred_fallthru
          _
      $region12: #{tpu_custom_call.1} parent=5 // pred_fallthru
        _
      %p504 = scmp.lt.s32.totalorder %s29, 2
      // Predicated region
      $region73: #{tpu_custom_call.1} parent=5 // pred_check
        %p505 = pneg %p504
      $region74: #{tpu_custom_call.1} parent=5 // pred_check_branch
        %507 = sbr.rel (%p505) target = $region76
      $region75: #{tpu_custom_call.1} parent=5 // pred_region
        // Predicated region
        $region77: #{tpu_custom_call.1} parent=75 // pred_check
          %p508 = pneg %p49
        $region78: #{tpu_custom_call.1} parent=75 // pred_check_branch
          %510 = sbr.rel (%p508) target = $region80
        $region79: #{tpu_custom_call.1} parent=75 // pred_region
          %p511 = scmp.lt.s32.totalorder %s29, 1
          %s512 = scalar_select %p511, %s29, 1
          %s513 = smul.addr %s512, 8
          %s514 = scalar_lea.vmem %s0, %s513
        $region80: #{tpu_custom_call.1} parent=75 // pred_fallthru
          _
      $region76: #{tpu_custom_call.1} parent=5 // pred_fallthru
        _
      %p515 = scmp.le.s32.totalorder 1, %s29
      %p516 = scmp.lt.s32.totalorder %s29, 3
      %p517 = pnand %p515, %p516
      %p518 = pneg %p517
      // Predicated region
      $region81: #{tpu_custom_call.1} parent=5 // pred_check
        _
      $region82: #{tpu_custom_call.1} parent=5 // pred_check_branch
        %520 = sbr.rel (%p517) target = $region84
      $region83: #{tpu_custom_call.1} parent=5 // pred_region
        %s521 = ssub.s32 %s29, 1
        // Predicated region
        $region85: #{tpu_custom_call.1} parent=83 // pred_check
          %p522 = pneg %p97
        $region86: #{tpu_custom_call.1} parent=83 // pred_check_branch
          %524 = sbr.rel (%p522) target = $region88
        $region87: #{tpu_custom_call.1} parent=83 // pred_region
          %525 = dma.done [#allocation3], 16
        $region88: #{tpu_custom_call.1} parent=83 // pred_fallthru
          _
        // Predicated region
        $region89: #{tpu_custom_call.1} parent=83 // pred_check
          %p526 = pneg %p118
        $region90: #{tpu_custom_call.1} parent=83 // pred_check_branch
          %528 = sbr.rel (%p526) target = $region92
        $region91: #{tpu_custom_call.1} parent=83 // pred_region
          %529 = dma.done [#allocation6], 16
        $region92: #{tpu_custom_call.1} parent=83 // pred_fallthru
          _
        // Predicated region
        $region93: #{tpu_custom_call.1} parent=83 // pred_check
          %p530 = pneg %p160
        $region94: #{tpu_custom_call.1} parent=83 // pred_check_branch
          %532 = sbr.rel (%p530) target = $region96
        $region95: #{tpu_custom_call.1} parent=83 // pred_region
          %533 = dma.done [#allocation6], 16
        $region96: #{tpu_custom_call.1} parent=83 // pred_fallthru
          _
        // Predicated region
        $region97: #{tpu_custom_call.1} parent=83 // pred_check
          %p534 = pneg %p202
        $region98: #{tpu_custom_call.1} parent=83 // pred_check_branch
          %536 = sbr.rel (%p534) target = $region100
        $region99: #{tpu_custom_call.1} parent=83 // pred_region
          %537 = dma.done [#allocation9], 16
        $region100: #{tpu_custom_call.1} parent=83 // pred_fallthru
          _
        // Predicated region
        $region101: #{tpu_custom_call.1} parent=83 // pred_check
          %p538 = pneg %p223
        $region102: #{tpu_custom_call.1} parent=83 // pred_check_branch
          %540 = sbr.rel (%p538) target = $region104
        $region103: #{tpu_custom_call.1} parent=83 // pred_region
          %541 = dma.done [#allocation9], 16
        $region104: #{tpu_custom_call.1} parent=83 // pred_fallthru
          _
        // Predicated region
        $region105: #{tpu_custom_call.1} parent=83 // pred_check
          %p542 = pneg %p244
        $region106: #{tpu_custom_call.1} parent=83 // pred_check_branch
          %544 = sbr.rel (%p542) target = $region108
        $region107: #{tpu_custom_call.1} parent=83 // pred_region
          %545 = dma.done [#allocation12], 16
        $region108: #{tpu_custom_call.1} parent=83 // pred_fallthru
          _
        %p546 = scmp.lt.s32.totalorder %s34, 1
        %s547 = scalar_select %p546, %s34, 1
        %s548 = smul.addr %s547, 8
        %s549 = scalar_lea.vmem %s0, %s548
        %p550 = pneg %p55
        %p551 = pneg %p52
        %p552 = pneg %p76
        %p553 = pneg %p73
        %p554 = pneg %p97
        %p555 = pneg %p94
        %p556 = pneg %p118
        %p557 = pneg %p115
        %p558 = pneg %p139
        %p559 = pneg %p136
        %p560 = pneg %p160
        %p561 = pneg %p157
        %p562 = pneg %p181
        %p563 = pneg %p178
        %p564 = pneg %p202
        %p565 = pneg %p199
        %p566 = pneg %p223
        %p567 = pneg %p220
        %p568 = pneg %p244
        %p569 = pneg %p241
        %p570 = pneg %p265
        %p571 = pneg %p262
        %p572 = pneg %p286
        %p573 = pneg %p283
        %p574 = pneg %p307
        %p575 = pneg %p304
        %p576 = pneg %p328
        %p577 = pneg %p325
        %p578 = pneg %p349
        %p579 = pneg %p346
        %p580 = pneg %p370
        %p581 = pneg %p367
        %p582 = pneg %p396
        %p583 = pneg %p393
        %s584 = sand.u32 %s383, 1
        %s585 = scalar_lea.sflag [#allocation4], %s584
        %s586 = sand.u32 %s383, 1
        %s587 = smul.addr %s586, 8
        %s588 = scalar_lea.vmem [#allocation13], %s587
        %p589 = scmp.lt.s32.totalorder %s34, 1
        %s590 = scalar_select %p589, %s34, 1
        %s591 = smul.addr %s590, 8
        %s592 = scalar_lea.vmem %s0, %s591
        %v594 = vld [vmem:[%s592] sm:$0xff]
        %v595 = vld [vmem:[%s1] sm:$0xf]
        %v596 = vld [vmem:[%s1 + $0x4] sm:$0xf]
        %v597 = vld [vmem:[%s1 + $0x8] sm:$0xf]
        %v598 = vld [vmem:[%s1 + $0xc] sm:$0xf]
        %v599 = vld [vmem:[#allocation2] sm:$0x1]
        %v600 = vld [vmem:[#allocation5] sm:$0x1]
        %v601 = vld [vmem:[#allocation10] sm:$0x1]
        %v602 = vld [vmem:[#allocation11] sm:$0x1]
        %v603 = vpack.c.bf16 %v594, %v594
        %v608 = vunpack.c.l.b16 %v595
        %v609 = vunpack.c.l.b16 %v596
        %v610 = vunpack.c.l.b16 %v597
        %v611 = vunpack.c.l.b16 %v598
        %v612 = vpack.c.b16 %v609, %v608
        %v613 = vpack.c.b16 %v611, %v610
        %vm616 = vcmask 261120
        %v618 = vsel %vm616, %v603, 0
        %620 = vmatprep.subr.bf16.mxu0 0
        %621 = vmatpush1.bf16.msra.mxu0 0
        %622 = vmatprep.subr.bf16.mxu0 0
        %623 = vmatpush1.bf16.msra.mxu0 0
        %624 = vmatprep.subr.bf16.mxu0 0
        %625 = vmatpush1.bf16.msra.mxu0 0
        %626 = vmatprep.subr.bf16.mxu0 0
        %627 = vmatpush1.bf16.msra.mxu0 0
        %628 = vmatprep.subr.bf16.mxu0 0
        %629 = vmatpush1.bf16.msra.mxu0 0
        %630 = vmatprep.subr.bf16.mxu0 0
        %631 = vmatpush1.bf16.msra.mxu0 0
        %632 = vmatprep.subr.bf16.mxu0 0
        %633 = vmatpush1.bf16.msra.mxu0 %v613
        %634 = vmatprep.subr.bf16.mxu0 0
        %635 = vmatpush1.bf16.msra.mxu0 %v612
        %636 = vmatprep.subr.bf16.mxu0 0
        %637 = vmatpush2.bf16.msra.mxu0 0
        %638 = vmatprep.subr.bf16.mxu0 0
        %639 = vmatpush2.bf16.msra.mxu0 0
        %640 = vmatprep.subr.bf16.mxu0 0
        %641 = vmatpush2.bf16.msra.mxu0 0
        %642 = vmatprep.subr.bf16.mxu0 0
        %643 = vmatpush2.bf16.msra.mxu0 0
        %644 = vmatprep.subr.bf16.mxu0 0
        %645 = vmatpush2.bf16.msra.mxu0 0
        %646 = vmatprep.subr.bf16.mxu0 0
        %647 = vmatpush2.bf16.msra.mxu0 0
        %648 = vmatprep.subr.bf16.mxu0 0
        %649 = vmatpush2.bf16.msra.mxu0 0
        %650 = vmatprep.subr.bf16.mxu0 0
        %651 = vmatpush2.bf16.msra.mxu0 0
        %652 = vmatprep.mubr.bf16.mxu0 0
        %653 = vmatmul.mubr.bf16.gmra.mxu0 %v618
        %v654 = vpop.f32.mrf.mxu0
        %v655 = vadd.f32 0.0, %v654
        %v656 = vpop.f32.mrf.mxu0
        %v657 = vpop.f32.mrf.mxu0
        %v658 = vpop.f32.mrf.mxu0
        %659 = vdwg.mxu0
        %v660 = vsub.f32 %v594, %v655
        %v661 = vmul.f32 %v660, %v660
        %v662 = vpack.c.bf16 %v661, %v661
        %v664 = vsel %vm616, %v662, 0
        %666 = vmatprep.subr.bf16.mxu0 0
        %667 = vmatpush1.bf16.msra.mxu0 0
        %668 = vmatprep.subr.bf16.mxu0 0
        %669 = vmatpush1.bf16.msra.mxu0 0
        %670 = vmatprep.subr.bf16.mxu0 0
        %671 = vmatpush1.bf16.msra.mxu0 0
        %672 = vmatprep.subr.bf16.mxu0 0
        %673 = vmatpush1.bf16.msra.mxu0 0
        %674 = vmatprep.subr.bf16.mxu0 0
        %675 = vmatpush1.bf16.msra.mxu0 0
        %676 = vmatprep.subr.bf16.mxu0 0
        %677 = vmatpush1.bf16.msra.mxu0 0
        %678 = vmatprep.subr.bf16.mxu0 0
        %679 = vmatpush1.bf16.msra.mxu0 %v613
        %680 = vmatprep.subr.bf16.mxu0 0
        %681 = vmatpush1.bf16.msra.mxu0 %v612
        %682 = vmatprep.subr.bf16.mxu0 0
        %683 = vmatpush2.bf16.msra.mxu0 0
        %684 = vmatprep.subr.bf16.mxu0 0
        %685 = vmatpush2.bf16.msra.mxu0 0
        %686 = vmatprep.subr.bf16.mxu0 0
        %687 = vmatpush2.bf16.msra.mxu0 0
        %688 = vmatprep.subr.bf16.mxu0 0
        %689 = vmatpush2.bf16.msra.mxu0 0
        %690 = vmatprep.subr.bf16.mxu0 0
        %691 = vmatpush2.bf16.msra.mxu0 0
        %692 = vmatprep.subr.bf16.mxu0 0
        %693 = vmatpush2.bf16.msra.mxu0 0
        %694 = vmatprep.subr.bf16.mxu0 0
        %695 = vmatpush2.bf16.msra.mxu0 0
        %696 = vmatprep.subr.bf16.mxu0 0
        %697 = vmatpush2.bf16.msra.mxu0 0
        %698 = vmatprep.mubr.bf16.mxu0 0
        %699 = vmatmul.mubr.bf16.gmra.mxu0 %v664
        %v700 = vpop.f32.mrf.mxu0
        %v701 = vadd.f32 1e-05, %v700
        %v702 = vpop.f32.mrf.mxu0
        %v703 = vpop.f32.mrf.mxu0
        %v704 = vpop.f32.mrf.mxu0
        %705 = vdwg.mxu0
        %v706 = vrsqrt.pop %v701
        %v707 = vmul.f32 %v660, %v706
        %v709 = vlaneseq
        %v710 = vshrl.u32 %v709, 7
        %v711 = vsub.s32 0, %v710
        %v712 = vrot.slane %v599, %v711
        %v714 = vmul.f32 %v707, %v712
        %v716 = vlaneseq
        %v717 = vshrl.u32 %v716, 7
        %v718 = vsub.s32 0, %v717
        %v719 = vrot.slane %v600, %v718
        %v721 = vadd.f32 %v714, %v719
        %v722 = vld [vmem:[%s4] sm:$0xf]
        %v723 = vld [vmem:[%s4 + $0x4] sm:$0xf]
        %v724 = vld [vmem:[%s4 + $0x8] sm:$0xf]
        %v725 = vld [vmem:[%s4 + $0xc] sm:$0xf]
        %v726 = vpack.c.bf16 %v721, %v721
        %v727 = vld [vmem:[#allocation7] sm:$0x1]
        %v729 = vlaneseq
        %v730 = vshrl.u32 %v729, 7
        %v731 = vsub.s32 0, %v730
        %v732 = vrot.slane %v727, %v731
        %v738 = vunpack.c.l.b16 %v722
        %v739 = vunpack.c.l.b16 %v723
        %v740 = vunpack.c.l.b16 %v724
        %v741 = vunpack.c.l.b16 %v725
        %v742 = vpack.c.b16 %v739, %v738
        %v743 = vpack.c.b16 %v741, %v740
        %v747 = vsel %vm616, %v726, 0
        %749 = vmatprep.subr.bf16.mxu0 0
        %750 = vmatpush1.bf16.msra.mxu0 0
        %751 = vmatprep.subr.bf16.mxu0 0
        %752 = vmatpush1.bf16.msra.mxu0 0
        %753 = vmatprep.subr.bf16.mxu0 0
        %754 = vmatpush1.bf16.msra.mxu0 0
        %755 = vmatprep.subr.bf16.mxu0 0
        %756 = vmatpush1.bf16.msra.mxu0 0
        %757 = vmatprep.subr.bf16.mxu0 0
        %758 = vmatpush1.bf16.msra.mxu0 0
        %759 = vmatprep.subr.bf16.mxu0 0
        %760 = vmatpush1.bf16.msra.mxu0 0
        %761 = vmatprep.subr.bf16.mxu0 0
        %762 = vmatpush1.bf16.msra.mxu0 %v743
        %763 = vmatprep.subr.bf16.mxu0 0
        %764 = vmatpush1.bf16.msra.mxu0 %v742
        %765 = vmatprep.subr.bf16.mxu0 0
        %766 = vmatpush2.bf16.msra.mxu0 0
        %767 = vmatprep.subr.bf16.mxu0 0
        %768 = vmatpush2.bf16.msra.mxu0 0
        %769 = vmatprep.subr.bf16.mxu0 0
        %770 = vmatpush2.bf16.msra.mxu0 0
        %771 = vmatprep.subr.bf16.mxu0 0
        %772 = vmatpush2.bf16.msra.mxu0 0
        %773 = vmatprep.subr.bf16.mxu0 0
        %774 = vmatpush2.bf16.msra.mxu0 0
        %775 = vmatprep.subr.bf16.mxu0 0
        %776 = vmatpush2.bf16.msra.mxu0 0
        %777 = vmatprep.subr.bf16.mxu0 0
        %778 = vmatpush2.bf16.msra.mxu0 0
        %779 = vmatprep.subr.bf16.mxu0 0
        %780 = vmatpush2.bf16.msra.mxu0 0
        %781 = vmatprep.mubr.bf16.mxu0 0
        %782 = vmatmul.mubr.bf16.gmra.mxu0 %v747
        %v783 = vpop.f32.mrf.mxu0
        %v784 = vadd.f32 %v732, %v783
        %v785 = vpop.f32.mrf.mxu0
        %v786 = vpop.f32.mrf.mxu0
        %v787 = vpop.f32.mrf.mxu0
        %788 = vdwg.mxu0
        %v789 = vpack.c.bf16 %v784, %v784
        %791 = vrot.lane.b32.xlu0 %v789, 96
        %v792 = vpop.permute.xlu0 %791
        %vm793 = vcmask 64512
        %v795 = vsel %vm793, %v789, 0
        %v798 = vsel %vm793, %v792, 0
        %800 = vmatprep.subr.bf16.mxu0 0
        %801 = vmatpush1.bf16.xpose.msra.mxu0 0
        %802 = vmatprep.subr.bf16.mxu0 0
        %803 = vmatpush1.bf16.xpose.msra.mxu0 0
        %804 = vmatprep.subr.bf16.mxu0 0
        %805 = vmatpush1.bf16.xpose.msra.mxu0 0
        %806 = vmatprep.subr.bf16.mxu0 0
        %807 = vmatpush1.bf16.xpose.msra.mxu0 0
        %808 = vmatprep.subr.bf16.mxu0 0
        %809 = vmatpush1.bf16.xpose.msra.mxu0 0
        %810 = vmatprep.subr.bf16.mxu0 0
        %811 = vmatpush1.bf16.xpose.msra.mxu0 0
        %812 = vmatprep.subr.bf16.mxu0 0
        %813 = vmatpush1.bf16.xpose.msra.mxu0 0
        %814 = vmatprep.subr.bf16.mxu0 0
        %815 = vmatpush1.bf16.xpose.msra.mxu0 %v798
        %816 = vmatprep.subr.bf16.mxu0 0
        %817 = vmatpush2.bf16.xpose.msra.mxu0 0
        %818 = vmatprep.subr.bf16.mxu0 0
        %819 = vmatpush2.bf16.xpose.msra.mxu0 0
        %820 = vmatprep.subr.bf16.mxu0 0
        %821 = vmatpush2.bf16.xpose.msra.mxu0 0
        %822 = vmatprep.subr.bf16.mxu0 0
        %823 = vmatpush2.bf16.xpose.msra.mxu0 0
        %824 = vmatprep.subr.bf16.mxu0 0
        %825 = vmatpush2.bf16.xpose.msra.mxu0 0
        %826 = vmatprep.subr.bf16.mxu0 0
        %827 = vmatpush2.bf16.xpose.msra.mxu0 0
        %828 = vmatprep.subr.bf16.mxu0 0
        %829 = vmatpush2.bf16.xpose.msra.mxu0 0
        %830 = vmatprep.subr.bf16.mxu0 0
        %831 = vmatpush2.bf16.xpose.msra.mxu0 0
        %832 = vmatprep.mubr.bf16.mxu0 0
        %833 = vmatmul.mubr.bf16.gmra.mxu0 %v795
        %v834 = vpop.f32.mrf.mxu0
        %v835 = vadd.f32 0.0, %v834
        %v836 = vpop.f32.mrf.mxu0
        %v837 = vpop.f32.mrf.mxu0
        %v838 = vpop.f32.mrf.mxu0
        %839 = vdwg.mxu0
        %v840 = vsel %vm793, %v835, -inf
        %841 = vmax.xlane.f32.xlu0 %v840
        %v842 = vpop.xlane.xlu0 %841
        %v843 = vsub.f32 %v835, %v842
        %v844 = vmul.f32 %v843, 1.442695
        %v845 = vpow.pop %v844
        %v846 = vsel %vm793, %v845, 0.0
        %847 = vadd.xlane.f32.xlu0 %v846
        %v848 = vpop.xlane.xlu0 %847
        %v849 = vrcp.pop %v848
        %v850 = vmul.f32 %v845, %v849
        %v851 = vpack.c.bf16 %v850, %v850
        %852 = vrot.lane.b32.xlu0 %v789, 64
        %v853 = vpop.permute.xlu0 %852
        %v855 = vsel %vm793, %v851, 0
        %vm857 = vcmask 1043456
        %v859 = vsel %vm857, %v853, 0
        %861 = vmatprep.subr.bf16.mxu0 0
        %862 = vmatpush1.bf16.msra.mxu0 0
        %863 = vmatprep.subr.bf16.mxu0 0
        %864 = vmatpush1.bf16.msra.mxu0 0
        %865 = vmatprep.subr.bf16.mxu0 0
        %866 = vmatpush1.bf16.msra.mxu0 0
        %867 = vmatprep.subr.bf16.mxu0 0
        %868 = vmatpush1.bf16.msra.mxu0 0
        %869 = vmatprep.subr.bf16.mxu0 0
        %870 = vmatpush1.bf16.msra.mxu0 0
        %871 = vmatprep.subr.bf16.mxu0 0
        %872 = vmatpush1.bf16.msra.mxu0 0
        %873 = vmatprep.subr.bf16.mxu0 0
        %874 = vmatpush1.bf16.msra.mxu0 0
        %875 = vmatprep.subr.bf16.mxu0 0
        %876 = vmatpush1.bf16.msra.mxu0 %v859
        %877 = vmatprep.subr.bf16.mxu0 0
        %878 = vmatpush2.bf16.msra.mxu0 0
        %879 = vmatprep.subr.bf16.mxu0 0
        %880 = vmatpush2.bf16.msra.mxu0 0
        %881 = vmatprep.subr.bf16.mxu0 0
        %882 = vmatpush2.bf16.msra.mxu0 0
        %883 = vmatprep.subr.bf16.mxu0 0
        %884 = vmatpush2.bf16.msra.mxu0 0
        %885 = vmatprep.subr.bf16.mxu0 0
        %886 = vmatpush2.bf16.msra.mxu0 0
        %887 = vmatprep.subr.bf16.mxu0 0
        %888 = vmatpush2.bf16.msra.mxu0 0
        %889 = vmatprep.subr.bf16.mxu0 0
        %890 = vmatpush2.bf16.msra.mxu0 0
        %891 = vmatprep.subr.bf16.mxu0 0
        %892 = vmatpush2.bf16.msra.mxu0 0
        %893 = vmatprep.mubr.bf16.mxu0 0
        %894 = vmatmul.mubr.bf16.gmra.mxu0 %v855
        %v895 = vpop.f32.mrf.mxu0
        %v896 = vadd.f32 0.0, %v895
        %v897 = vpop.f32.mrf.mxu0
        %v898 = vpop.f32.mrf.mxu0
        %v899 = vpop.f32.mrf.mxu0
        %900 = vdwg.mxu0
        %v901 = vld [vmem:[%s6] sm:$0xf]
        %v902 = vpack.c.bf16 %v896, %v896
        %903 = vrot.lane.b32.xlu0 %v789, 120
        %v904 = vpop.permute.xlu0 %903
        %905 = vrot.lane.b32.xlu0 %v789, 88
        %v906 = vpop.permute.xlu0 %905
        %v908 = vsel %vm793, %v904, 0
        %v911 = vsel %vm793, %v906, 0
        %913 = vmatprep.subr.bf16.mxu0 0
        %914 = vmatpush1.bf16.xpose.msra.mxu0 0
        %915 = vmatprep.subr.bf16.mxu0 0
        %916 = vmatpush1.bf16.xpose.msra.mxu0 0
        %917 = vmatprep.subr.bf16.mxu0 0
        %918 = vmatpush1.bf16.xpose.msra.mxu0 0
        %919 = vmatprep.subr.bf16.mxu0 0
        %920 = vmatpush1.bf16.xpose.msra.mxu0 0
        %921 = vmatprep.subr.bf16.mxu0 0
        %922 = vmatpush1.bf16.xpose.msra.mxu0 0
        %923 = vmatprep.subr.bf16.mxu0 0
        %924 = vmatpush1.bf16.xpose.msra.mxu0 0
        %925 = vmatprep.subr.bf16.mxu0 0
        %926 = vmatpush1.bf16.xpose.msra.mxu0 0
        %927 = vmatprep.subr.bf16.mxu0 0
        %928 = vmatpush1.bf16.xpose.msra.mxu0 %v911
        %929 = vmatprep.subr.bf16.mxu0 0
        %930 = vmatpush2.bf16.xpose.msra.mxu0 0
        %931 = vmatprep.subr.bf16.mxu0 0
        %932 = vmatpush2.bf16.xpose.msra.mxu0 0
        %933 = vmatprep.subr.bf16.mxu0 0
        %934 = vmatpush2.bf16.xpose.msra.mxu0 0
        %935 = vmatprep.subr.bf16.mxu0 0
        %936 = vmatpush2.bf16.xpose.msra.mxu0 0
        %937 = vmatprep.subr.bf16.mxu0 0
        %938 = vmatpush2.bf16.xpose.msra.mxu0 0
        %939 = vmatprep.subr.bf16.mxu0 0
        %940 = vmatpush2.bf16.xpose.msra.mxu0 0
        %941 = vmatprep.subr.bf16.mxu0 0
        %942 = vmatpush2.bf16.xpose.msra.mxu0 0
        %943 = vmatprep.subr.bf16.mxu0 0
        %944 = vmatpush2.bf16.xpose.msra.mxu0 0
        %945 = vmatprep.mubr.bf16.mxu0 0
        %946 = vmatmul.mubr.bf16.gmra.mxu0 %v908
        %v947 = vpop.f32.mrf.mxu0
        %v948 = vadd.f32 0.0, %v947
        %v949 = vpop.f32.mrf.mxu0
        %v950 = vpop.f32.mrf.mxu0
        %v951 = vpop.f32.mrf.mxu0
        %952 = vdwg.mxu0
        %v953 = vsel %vm793, %v948, -inf
        %954 = vmax.xlane.f32.xlu0 %v953
        %v955 = vpop.xlane.xlu0 %954
        %v956 = vsub.f32 %v948, %v955
        %v957 = vmul.f32 %v956, 1.442695
        %v958 = vpow.pop %v957
        %v959 = vsel %vm793, %v958, 0.0
        %960 = vadd.xlane.f32.xlu0 %v959
        %v961 = vpop.xlane.xlu0 %960
        %v962 = vrcp.pop %v961
        %v963 = vmul.f32 %v958, %v962
        %v964 = vpack.c.bf16 %v963, %v963
        %965 = vrot.lane.b32.xlu0 %v789, 56
        %v966 = vpop.permute.xlu0 %965
        %v968 = vsel %vm793, %v964, 0
        %v971 = vsel %vm857, %v966, 0
        %973 = vmatprep.subr.bf16.mxu0 0
        %974 = vmatpush1.bf16.msra.mxu0 0
        %975 = vmatprep.subr.bf16.mxu0 0
        %976 = vmatpush1.bf16.msra.mxu0 0
        %977 = vmatprep.subr.bf16.mxu0 0
        %978 = vmatpush1.bf16.msra.mxu0 0
        %979 = vmatprep.subr.bf16.mxu0 0
        %980 = vmatpush1.bf16.msra.mxu0 0
        %981 = vmatprep.subr.bf16.mxu0 0
        %982 = vmatpush1.bf16.msra.mxu0 0
        %983 = vmatprep.subr.bf16.mxu0 0
        %984 = vmatpush1.bf16.msra.mxu0 0
        %985 = vmatprep.subr.bf16.mxu0 0
        %986 = vmatpush1.bf16.msra.mxu0 0
        %987 = vmatprep.subr.bf16.mxu0 0
        %988 = vmatpush1.bf16.msra.mxu0 %v971
        %989 = vmatprep.subr.bf16.mxu0 0
        %990 = vmatpush2.bf16.msra.mxu0 0
        %991 = vmatprep.subr.bf16.mxu0 0
        %992 = vmatpush2.bf16.msra.mxu0 0
        %993 = vmatprep.subr.bf16.mxu0 0
        %994 = vmatpush2.bf16.msra.mxu0 0
        %995 = vmatprep.subr.bf16.mxu0 0
        %996 = vmatpush2.bf16.msra.mxu0 0
        %997 = vmatprep.subr.bf16.mxu0 0
        %998 = vmatpush2.bf16.msra.mxu0 0
        %999 = vmatprep.subr.bf16.mxu0 0
        %1000 = vmatpush2.bf16.msra.mxu0 0
        %1001 = vmatprep.subr.bf16.mxu0 0
        %1002 = vmatpush2.bf16.msra.mxu0 0
        %1003 = vmatprep.subr.bf16.mxu0 0
        %1004 = vmatpush2.bf16.msra.mxu0 0
        %1005 = vmatprep.mubr.bf16.mxu0 0
        %1006 = vmatmul.mubr.bf16.gmra.mxu0 %v968
        %v1007 = vpop.f32.mrf.mxu0
        %v1008 = vadd.f32 0.0, %v1007
        %v1009 = vpop.f32.mrf.mxu0
        %v1010 = vpop.f32.mrf.mxu0
        %v1011 = vpop.f32.mrf.mxu0
        %1012 = vdwg.mxu0
        %v1013 = vld [vmem:[%s6 + $0x4] sm:$0xf]
        %v1014 = vpack.c.bf16 %v1008, %v1008
        %v1016 = vsel %vm793, %v1014, 0
        %v1019 = vsel %vm857, %v1013, 0
        %1021 = vmatprep.subr.bf16.mxu0 0
        %1022 = vmatpush1.bf16.msra.mxu0 0
        %1023 = vmatprep.subr.bf16.mxu0 0
        %1024 = vmatpush1.bf16.msra.mxu0 0
        %1025 = vmatprep.subr.bf16.mxu0 0
        %1026 = vmatpush1.bf16.msra.mxu0 0
        %1027 = vmatprep.subr.bf16.mxu0 0
        %1028 = vmatpush1.bf16.msra.mxu0 0
        %1029 = vmatprep.subr.bf16.mxu0 0
        %1030 = vmatpush1.bf16.msra.mxu0 0
        %1031 = vmatprep.subr.bf16.mxu0 0
        %1032 = vmatpush1.bf16.msra.mxu0 0
        %1033 = vmatprep.subr.bf16.mxu0 0
        %1034 = vmatpush1.bf16.msra.mxu0 0
        %1035 = vmatprep.subr.bf16.mxu0 0
        %1036 = vmatpush1.bf16.msra.mxu0 %v1019
        %1037 = vmatprep.subr.bf16.mxu0 0
        %1038 = vmatpush2.bf16.msra.mxu0 0
        %1039 = vmatprep.subr.bf16.mxu0 0
        %1040 = vmatpush2.bf16.msra.mxu0 0
        %1041 = vmatprep.subr.bf16.mxu0 0
        %1042 = vmatpush2.bf16.msra.mxu0 0
        %1043 = vmatprep.subr.bf16.mxu0 0
        %1044 = vmatpush2.bf16.msra.mxu0 0
        %1045 = vmatprep.subr.bf16.mxu0 0
        %1046 = vmatpush2.bf16.msra.mxu0 0
        %1047 = vmatprep.subr.bf16.mxu0 0
        %1048 = vmatpush2.bf16.msra.mxu0 0
        %1049 = vmatprep.subr.bf16.mxu0 0
        %1050 = vmatpush2.bf16.msra.mxu0 0
        %1051 = vmatprep.subr.bf16.mxu0 0
        %1052 = vmatpush2.bf16.msra.mxu0 0
        %1053 = vmatprep.mubr.bf16.mxu0 0
        %1054 = vmatmul.mubr.bf16.gmra.mxu0 %v1016
        %v1055 = vpop.f32.mrf.mxu0
        %v1056 = vadd.f32 0.0, %v1055
        %v1057 = vpop.f32.mrf.mxu0
        %v1058 = vpop.f32.mrf.mxu0
        %v1059 = vpop.f32.mrf.mxu0
        %1060 = vdwg.mxu0
        %v1062 = vsel %vm793, %v902, 0
        %v1065 = vsel %vm857, %v901, 0
        %1067 = vmatprep.subr.bf16.mxu0 0
        %1068 = vmatpush1.bf16.msra.mxu0 0
        %1069 = vmatprep.subr.bf16.mxu0 0
        %1070 = vmatpush1.bf16.msra.mxu0 0
        %1071 = vmatprep.subr.bf16.mxu0 0
        %1072 = vmatpush1.bf16.msra.mxu0 0
        %1073 = vmatprep.subr.bf16.mxu0 0
        %1074 = vmatpush1.bf16.msra.mxu0 0
        %1075 = vmatprep.subr.bf16.mxu0 0
        %1076 = vmatpush1.bf16.msra.mxu0 0
        %1077 = vmatprep.subr.bf16.mxu0 0
        %1078 = vmatpush1.bf16.msra.mxu0 0
        %1079 = vmatprep.subr.bf16.mxu0 0
        %1080 = vmatpush1.bf16.msra.mxu0 0
        %1081 = vmatprep.subr.bf16.mxu0 0
        %1082 = vmatpush1.bf16.msra.mxu0 %v1065
        %1083 = vmatprep.subr.bf16.mxu0 0
        %1084 = vmatpush2.bf16.msra.mxu0 0
        %1085 = vmatprep.subr.bf16.mxu0 0
        %1086 = vmatpush2.bf16.msra.mxu0 0
        %1087 = vmatprep.subr.bf16.mxu0 0
        %1088 = vmatpush2.bf16.msra.mxu0 0
        %1089 = vmatprep.subr.bf16.mxu0 0
        %1090 = vmatpush2.bf16.msra.mxu0 0
        %1091 = vmatprep.subr.bf16.mxu0 0
        %1092 = vmatpush2.bf16.msra.mxu0 0
        %1093 = vmatprep.subr.bf16.mxu0 0
        %1094 = vmatpush2.bf16.msra.mxu0 0
        %1095 = vmatprep.subr.bf16.mxu0 0
        %1096 = vmatpush2.bf16.msra.mxu0 0
        %1097 = vmatprep.subr.bf16.mxu0 0
        %1098 = vmatpush2.bf16.msra.mxu0 0
        %1099 = vmatprep.mubr.bf16.mxu0 0
        %1100 = vmatmul.mubr.bf16.gmra.mxu0 %v1062
        %v1101 = vpop.f32.mrf.mxu0
        %v1102 = vadd.f32 %v1056, %v1101
        %v1103 = vpop.f32.mrf.mxu0
        %v1104 = vpop.f32.mrf.mxu0
        %v1105 = vpop.f32.mrf.mxu0
        %1106 = vdwg.mxu0
        %1107 = vrot.lane.b32.xlu0 %v789, 112
        %v1108 = vpop.permute.xlu0 %1107
        %1109 = vrot.lane.b32.xlu0 %v789, 80
        %v1110 = vpop.permute.xlu0 %1109
        %v1112 = vsel %vm793, %v1108, 0
        %v1115 = vsel %vm793, %v1110, 0
        %1117 = vmatprep.subr.bf16.mxu0 0
        %1118 = vmatpush1.bf16.xpose.msra.mxu0 0
        %1119 = vmatprep.subr.bf16.mxu0 0
        %1120 = vmatpush1.bf16.xpose.msra.mxu0 0
        %1121 = vmatprep.subr.bf16.mxu0 0
        %1122 = vmatpush1.bf16.xpose.msra.mxu0 0
        %1123 = vmatprep.subr.bf16.mxu0 0
        %1124 = vmatpush1.bf16.xpose.msra.mxu0 0
        %1125 = vmatprep.subr.bf16.mxu0 0
        %1126 = vmatpush1.bf16.xpose.msra.mxu0 0
        %1127 = vmatprep.subr.bf16.mxu0 0
        %1128 = vmatpush1.bf16.xpose.msra.mxu0 0
        %1129 = vmatprep.subr.bf16.mxu0 0
        %1130 = vmatpush1.bf16.xpose.msra.mxu0 0
        %1131 = vmatprep.subr.bf16.mxu0 0
        %1132 = vmatpush1.bf16.xpose.msra.mxu0 %v1115
        %1133 = vmatprep.subr.bf16.mxu0 0
        %1134 = vmatpush2.bf16.xpose.msra.mxu0 0
        %1135 = vmatprep.subr.bf16.mxu0 0
        %1136 = vmatpush2.bf16.xpose.msra.mxu0 0
        %1137 = vmatprep.subr.bf16.mxu0 0
        %1138 = vmatpush2.bf16.xpose.msra.mxu0 0
        %1139 = vmatprep.subr.bf16.mxu0 0
        %1140 = vmatpush2.bf16.xpose.msra.mxu0 0
        %1141 = vmatprep.subr.bf16.mxu0 0
        %1142 = vmatpush2.bf16.xpose.msra.mxu0 0
        %1143 = vmatprep.subr.bf16.mxu0 0
        %1144 = vmatpush2.bf16.xpose.msra.mxu0 0
        %1145 = vmatprep.subr.bf16.mxu0 0
        %1146 = vmatpush2.bf16.xpose.msra.mxu0 0
        %1147 = vmatprep.subr.bf16.mxu0 0
        %1148 = vmatpush2.bf16.xpose.msra.mxu0 0
        %1149 = vmatprep.mubr.bf16.mxu0 0
        %1150 = vmatmul.mubr.bf16.gmra.mxu0 %v1112
        %v1151 = vpop.f32.mrf.mxu0
        %v1152 = vadd.f32 0.0, %v1151
        %v1153 = vpop.f32.mrf.mxu0
        %v1154 = vpop.f32.mrf.mxu0
        %v1155 = vpop.f32.mrf.mxu0
        %1156 = vdwg.mxu0
        %v1157 = vsel %vm793, %v1152, -inf
        %1158 = vmax.xlane.f32.xlu0 %v1157
        %v1159 = vpop.xlane.xlu0 %1158
        %v1160 = vsub.f32 %v1152, %v1159
        %v1161 = vmul.f32 %v1160, 1.442695
        %v1162 = vpow.pop %v1161
        %v1163 = vsel %vm793, %v1162, 0.0
        %1164 = vadd.xlane.f32.xlu0 %v1163
        %v1165 = vpop.xlane.xlu0 %1164
        %v1166 = vrcp.pop %v1165
        %v1167 = vmul.f32 %v1162, %v1166
        %v1168 = vpack.c.bf16 %v1167, %v1167
        %1169 = vrot.lane.b32.xlu0 %v789, 48
        %v1170 = vpop.permute.xlu0 %1169
        %v1172 = vsel %vm793, %v1168, 0
        %v1175 = vsel %vm857, %v1170, 0
        %1177 = vmatprep.subr.bf16.mxu0 0
        %1178 = vmatpush1.bf16.msra.mxu0 0
        %1179 = vmatprep.subr.bf16.mxu0 0
        %1180 = vmatpush1.bf16.msra.mxu0 0
        %1181 = vmatprep.subr.bf16.mxu0 0
        %1182 = vmatpush1.bf16.msra.mxu0 0
        %1183 = vmatprep.subr.bf16.mxu0 0
        %1184 = vmatpush1.bf16.msra.mxu0 0
        %1185 = vmatprep.subr.bf16.mxu0 0
        %1186 = vmatpush1.bf16.msra.mxu0 0
        %1187 = vmatprep.subr.bf16.mxu0 0
        %1188 = vmatpush1.bf16.msra.mxu0 0
        %1189 = vmatprep.subr.bf16.mxu0 0
        %1190 = vmatpush1.bf16.msra.mxu0 0
        %1191 = vmatprep.subr.bf16.mxu0 0
        %1192 = vmatpush1.bf16.msra.mxu0 %v1175
        %1193 = vmatprep.subr.bf16.mxu0 0
        %1194 = vmatpush2.bf16.msra.mxu0 0
        %1195 = vmatprep.subr.bf16.mxu0 0
        %1196 = vmatpush2.bf16.msra.mxu0 0
        %1197 = vmatprep.subr.bf16.mxu0 0
        %1198 = vmatpush2.bf16.msra.mxu0 0
        %1199 = vmatprep.subr.bf16.mxu0 0
        %1200 = vmatpush2.bf16.msra.mxu0 0
        %1201 = vmatprep.subr.bf16.mxu0 0
        %1202 = vmatpush2.bf16.msra.mxu0 0
        %1203 = vmatprep.subr.bf16.mxu0 0
        %1204 = vmatpush2.bf16.msra.mxu0 0
        %1205 = vmatprep.subr.bf16.mxu0 0
        %1206 = vmatpush2.bf16.msra.mxu0 0
        %1207 = vmatprep.subr.bf16.mxu0 0
        %1208 = vmatpush2.bf16.msra.mxu0 0
        %1209 = vmatprep.mubr.bf16.mxu0 0
        %1210 = vmatmul.mubr.bf16.gmra.mxu0 %v1172
        %v1211 = vpop.f32.mrf.mxu0
        %v1212 = vadd.f32 0.0, %v1211
        %v1213 = vpop.f32.mrf.mxu0
        %v1214 = vpop.f32.mrf.mxu0
        %v1215 = vpop.f32.mrf.mxu0
        %1216 = vdwg.mxu0
        %v1217 = vld [vmem:[%s6 + $0x8] sm:$0xf]
        %v1218 = vpack.c.bf16 %v1212, %v1212
        %v1220 = vsel %vm793, %v1218, 0
        %v1223 = vsel %vm857, %v1217, 0
        %1225 = vmatprep.subr.bf16.mxu0 0
        %1226 = vmatpush1.bf16.msra.mxu0 0
        %1227 = vmatprep.subr.bf16.mxu0 0
        %1228 = vmatpush1.bf16.msra.mxu0 0
        %1229 = vmatprep.subr.bf16.mxu0 0
        %1230 = vmatpush1.bf16.msra.mxu0 0
        %1231 = vmatprep.subr.bf16.mxu0 0
        %1232 = vmatpush1.bf16.msra.mxu0 0
        %1233 = vmatprep.subr.bf16.mxu0 0
        %1234 = vmatpush1.bf16.msra.mxu0 0
        %1235 = vmatprep.subr.bf16.mxu0 0
        %1236 = vmatpush1.bf16.msra.mxu0 0
        %1237 = vmatprep.subr.bf16.mxu0 0
        %1238 = vmatpush1.bf16.msra.mxu0 0
        %1239 = vmatprep.subr.bf16.mxu0 0
        %1240 = vmatpush1.bf16.msra.mxu0 %v1223
        %1241 = vmatprep.subr.bf16.mxu0 0
        %1242 = vmatpush2.bf16.msra.mxu0 0
        %1243 = vmatprep.subr.bf16.mxu0 0
        %1244 = vmatpush2.bf16.msra.mxu0 0
        %1245 = vmatprep.subr.bf16.mxu0 0
        %1246 = vmatpush2.bf16.msra.mxu0 0
        %1247 = vmatprep.subr.bf16.mxu0 0
        %1248 = vmatpush2.bf16.msra.mxu0 0
        %1249 = vmatprep.subr.bf16.mxu0 0
        %1250 = vmatpush2.bf16.msra.mxu0 0
        %1251 = vmatprep.subr.bf16.mxu0 0
        %1252 = vmatpush2.bf16.msra.mxu0 0
        %1253 = vmatprep.subr.bf16.mxu0 0
        %1254 = vmatpush2.bf16.msra.mxu0 0
        %1255 = vmatprep.subr.bf16.mxu0 0
        %1256 = vmatpush2.bf16.msra.mxu0 0
        %1257 = vmatprep.mubr.bf16.mxu0 0
        %1258 = vmatmul.mubr.bf16.gmra.mxu0 %v1220
        %v1259 = vpop.f32.mrf.mxu0
        %v1260 = vadd.f32 0.0, %v1259
        %v1261 = vpop.f32.mrf.mxu0
        %v1262 = vpop.f32.mrf.mxu0
        %v1263 = vpop.f32.mrf.mxu0
        %1264 = vdwg.mxu0
        %v1265 = vadd.f32 %v1102, %v1260
        %1266 = vrot.lane.b32.xlu0 %v789, 104
        %v1267 = vpop.permute.xlu0 %1266
        %1268 = vrot.lane.b32.xlu0 %v789, 72
        %v1269 = vpop.permute.xlu0 %1268
        %v1271 = vsel %vm793, %v1267, 0
        %v1274 = vsel %vm793, %v1269, 0
        %1276 = vmatprep.subr.bf16.mxu0 0
        %1277 = vmatpush1.bf16.xpose.msra.mxu0 0
        %1278 = vmatprep.subr.bf16.mxu0 0
        %1279 = vmatpush1.bf16.xpose.msra.mxu0 0
        %1280 = vmatprep.subr.bf16.mxu0 0
        %1281 = vmatpush1.bf16.xpose.msra.mxu0 0
        %1282 = vmatprep.subr.bf16.mxu0 0
        %1283 = vmatpush1.bf16.xpose.msra.mxu0 0
        %1284 = vmatprep.subr.bf16.mxu0 0
        %1285 = vmatpush1.bf16.xpose.msra.mxu0 0
        %1286 = vmatprep.subr.bf16.mxu0 0
        %1287 = vmatpush1.bf16.xpose.msra.mxu0 0
        %1288 = vmatprep.subr.bf16.mxu0 0
        %1289 = vmatpush1.bf16.xpose.msra.mxu0 0
        %1290 = vmatprep.subr.bf16.mxu0 0
        %1291 = vmatpush1.bf16.xpose.msra.mxu0 %v1274
        %1292 = vmatprep.subr.bf16.mxu0 0
        %1293 = vmatpush2.bf16.xpose.msra.mxu0 0
        %1294 = vmatprep.subr.bf16.mxu0 0
        %1295 = vmatpush2.bf16.xpose.msra.mxu0 0
        %1296 = vmatprep.subr.bf16.mxu0 0
        %1297 = vmatpush2.bf16.xpose.msra.mxu0 0
        %1298 = vmatprep.subr.bf16.mxu0 0
        %1299 = vmatpush2.bf16.xpose.msra.mxu0 0
        %1300 = vmatprep.subr.bf16.mxu0 0
        %1301 = vmatpush2.bf16.xpose.msra.mxu0 0
        %1302 = vmatprep.subr.bf16.mxu0 0
        %1303 = vmatpush2.bf16.xpose.msra.mxu0 0
        %1304 = vmatprep.subr.bf16.mxu0 0
        %1305 = vmatpush2.bf16.xpose.msra.mxu0 0
        %1306 = vmatprep.subr.bf16.mxu0 0
        %1307 = vmatpush2.bf16.xpose.msra.mxu0 0
        %1308 = vmatprep.mubr.bf16.mxu0 0
        %1309 = vmatmul.mubr.bf16.gmra.mxu0 %v1271
        %v1310 = vpop.f32.mrf.mxu0
        %v1311 = vadd.f32 0.0, %v1310
        %v1312 = vpop.f32.mrf.mxu0
        %v1313 = vpop.f32.mrf.mxu0
        %v1314 = vpop.f32.mrf.mxu0
        %1315 = vdwg.mxu0
        %v1316 = vsel %vm793, %v1311, -inf
        %1317 = vmax.xlane.f32.xlu0 %v1316
        %v1318 = vpop.xlane.xlu0 %1317
        %v1319 = vsub.f32 %v1311, %v1318
        %v1320 = vmul.f32 %v1319, 1.442695
        %v1321 = vpow.pop %v1320
        %v1322 = vsel %vm793, %v1321, 0.0
        %1323 = vadd.xlane.f32.xlu0 %v1322
        %v1324 = vpop.xlane.xlu0 %1323
        %v1325 = vrcp.pop %v1324
        %v1326 = vmul.f32 %v1321, %v1325
        %v1327 = vpack.c.bf16 %v1326, %v1326
        %1328 = vrot.lane.b32.xlu0 %v789, 40
        %v1329 = vpop.permute.xlu0 %1328
        %v1331 = vsel %vm793, %v1327, 0
        %v1334 = vsel %vm857, %v1329, 0
        %1336 = vmatprep.subr.bf16.mxu0 0
        %1337 = vmatpush1.bf16.msra.mxu0 0
        %1338 = vmatprep.subr.bf16.mxu0 0
        %1339 = vmatpush1.bf16.msra.mxu0 0
        %1340 = vmatprep.subr.bf16.mxu0 0
        %1341 = vmatpush1.bf16.msra.mxu0 0
        %1342 = vmatprep.subr.bf16.mxu0 0
        %1343 = vmatpush1.bf16.msra.mxu0 0
        %1344 = vmatprep.subr.bf16.mxu0 0
        %1345 = vmatpush1.bf16.msra.mxu0 0
        %1346 = vmatprep.subr.bf16.mxu0 0
        %1347 = vmatpush1.bf16.msra.mxu0 0
        %1348 = vmatprep.subr.bf16.mxu0 0
        %1349 = vmatpush1.bf16.msra.mxu0 0
        %1350 = vmatprep.subr.bf16.mxu0 0
        %1351 = vmatpush1.bf16.msra.mxu0 %v1334
        %1352 = vmatprep.subr.bf16.mxu0 0
        %1353 = vmatpush2.bf16.msra.mxu0 0
        %1354 = vmatprep.subr.bf16.mxu0 0
        %1355 = vmatpush2.bf16.msra.mxu0 0
        %1356 = vmatprep.subr.bf16.mxu0 0
        %1357 = vmatpush2.bf16.msra.mxu0 0
        %1358 = vmatprep.subr.bf16.mxu0 0
        %1359 = vmatpush2.bf16.msra.mxu0 0
        %1360 = vmatprep.subr.bf16.mxu0 0
        %1361 = vmatpush2.bf16.msra.mxu0 0
        %1362 = vmatprep.subr.bf16.mxu0 0
        %1363 = vmatpush2.bf16.msra.mxu0 0
        %1364 = vmatprep.subr.bf16.mxu0 0
        %1365 = vmatpush2.bf16.msra.mxu0 0
        %1366 = vmatprep.subr.bf16.mxu0 0
        %1367 = vmatpush2.bf16.msra.mxu0 0
        %1368 = vmatprep.mubr.bf16.mxu0 0
        %1369 = vmatmul.mubr.bf16.gmra.mxu0 %v1331
        %v1370 = vpop.f32.mrf.mxu0
        %v1371 = vadd.f32 0.0, %v1370
        %v1372 = vpop.f32.mrf.mxu0
        %v1373 = vpop.f32.mrf.mxu0
        %v1374 = vpop.f32.mrf.mxu0
        %1375 = vdwg.mxu0
        %v1376 = vld [vmem:[%s6 + $0xc] sm:$0xf]
        %v1377 = vpack.c.bf16 %v1371, %v1371
        %v1379 = vsel %vm793, %v1377, 0
        %v1382 = vsel %vm857, %v1376, 0
        %1384 = vmatprep.subr.bf16.mxu0 0
        %1385 = vmatpush1.bf16.msra.mxu0 0
        %1386 = vmatprep.subr.bf16.mxu0 0
        %1387 = vmatpush1.bf16.msra.mxu0 0
        %1388 = vmatprep.subr.bf16.mxu0 0
        %1389 = vmatpush1.bf16.msra.mxu0 0
        %1390 = vmatprep.subr.bf16.mxu0 0
        %1391 = vmatpush1.bf16.msra.mxu0 0
        %1392 = vmatprep.subr.bf16.mxu0 0
        %1393 = vmatpush1.bf16.msra.mxu0 0
        %1394 = vmatprep.subr.bf16.mxu0 0
        %1395 = vmatpush1.bf16.msra.mxu0 0
        %1396 = vmatprep.subr.bf16.mxu0 0
        %1397 = vmatpush1.bf16.msra.mxu0 0
        %1398 = vmatprep.subr.bf16.mxu0 0
        %1399 = vmatpush1.bf16.msra.mxu0 %v1382
        %1400 = vmatprep.subr.bf16.mxu0 0
        %1401 = vmatpush2.bf16.msra.mxu0 0
        %1402 = vmatprep.subr.bf16.mxu0 0
        %1403 = vmatpush2.bf16.msra.mxu0 0
        %1404 = vmatprep.subr.bf16.mxu0 0
        %1405 = vmatpush2.bf16.msra.mxu0 0
        %1406 = vmatprep.subr.bf16.mxu0 0
        %1407 = vmatpush2.bf16.msra.mxu0 0
        %1408 = vmatprep.subr.bf16.mxu0 0
        %1409 = vmatpush2.bf16.msra.mxu0 0
        %1410 = vmatprep.subr.bf16.mxu0 0
        %1411 = vmatpush2.bf16.msra.mxu0 0
        %1412 = vmatprep.subr.bf16.mxu0 0
        %1413 = vmatpush2.bf16.msra.mxu0 0
        %1414 = vmatprep.subr.bf16.mxu0 0
        %1415 = vmatpush2.bf16.msra.mxu0 0
        %1416 = vmatprep.mubr.bf16.mxu0 0
        %1417 = vmatmul.mubr.bf16.gmra.mxu0 %v1379
        %v1418 = vpop.f32.mrf.mxu0
        %v1419 = vadd.f32 0.0, %v1418
        %v1420 = vpop.f32.mrf.mxu0
        %v1421 = vpop.f32.mrf.mxu0
        %v1422 = vpop.f32.mrf.mxu0
        %1423 = vdwg.mxu0
        %v1424 = vadd.f32 %v1265, %v1419
        %v1425 = vld [vmem:[#allocation8] sm:$0x1]
        %v1427 = vlaneseq
        %v1428 = vshrl.u32 %v1427, 7
        %v1429 = vsub.s32 0, %v1428
        %v1430 = vrot.slane %v1425, %v1429
        %v1432 = vadd.f32 %v1424, %v1430
        %v1433 = vadd.f32 %v1432, %v594
        %v1434 = vpack.c.bf16 %v1433, %v1433
        %v1436 = vsel %vm616, %v1434, 0
        %1438 = vmatprep.subr.bf16.mxu0 0
        %1439 = vmatpush1.bf16.msra.mxu0 0
        %1440 = vmatprep.subr.bf16.mxu0 0
        %1441 = vmatpush1.bf16.msra.mxu0 0
        %1442 = vmatprep.subr.bf16.mxu0 0
        %1443 = vmatpush1.bf16.msra.mxu0 0
        %1444 = vmatprep.subr.bf16.mxu0 0
        %1445 = vmatpush1.bf16.msra.mxu0 0
        %1446 = vmatprep.subr.bf16.mxu0 0
        %1447 = vmatpush1.bf16.msra.mxu0 0
        %1448 = vmatprep.subr.bf16.mxu0 0
        %1449 = vmatpush1.bf16.msra.mxu0 0
        %1450 = vmatprep.subr.bf16.mxu0 0
        %1451 = vmatpush1.bf16.msra.mxu0 %v613
        %1452 = vmatprep.subr.bf16.mxu0 0
        %1453 = vmatpush1.bf16.msra.mxu0 %v612
        %1454 = vmatprep.subr.bf16.mxu0 0
        %1455 = vmatpush2.bf16.msra.mxu0 0
        %1456 = vmatprep.subr.bf16.mxu0 0
        %1457 = vmatpush2.bf16.msra.mxu0 0
        %1458 = vmatprep.subr.bf16.mxu0 0
        %1459 = vmatpush2.bf16.msra.mxu0 0
        %1460 = vmatprep.subr.bf16.mxu0 0
        %1461 = vmatpush2.bf16.msra.mxu0 0
        %1462 = vmatprep.subr.bf16.mxu0 0
        %1463 = vmatpush2.bf16.msra.mxu0 0
        %1464 = vmatprep.subr.bf16.mxu0 0
        %1465 = vmatpush2.bf16.msra.mxu0 0
        %1466 = vmatprep.subr.bf16.mxu0 0
        %1467 = vmatpush2.bf16.msra.mxu0 0
        %1468 = vmatprep.subr.bf16.mxu0 0
        %1469 = vmatpush2.bf16.msra.mxu0 0
        %1470 = vmatprep.mubr.bf16.mxu0 0
        %1471 = vmatmul.mubr.bf16.gmra.mxu0 %v1436
        %v1472 = vpop.f32.mrf.mxu0
        %v1473 = vadd.f32 0.0, %v1472
        %v1474 = vpop.f32.mrf.mxu0
        %v1475 = vpop.f32.mrf.mxu0
        %v1476 = vpop.f32.mrf.mxu0
        %1477 = vdwg.mxu0
        %v1478 = vsub.f32 %v1433, %v1473
        %v1479 = vmul.f32 %v1478, %v1478
        %v1480 = vpack.c.bf16 %v1479, %v1479
        %v1482 = vsel %vm616, %v1480, 0
        %1484 = vmatprep.subr.bf16.mxu0 0
        %1485 = vmatpush1.bf16.msra.mxu0 0
        %1486 = vmatprep.subr.bf16.mxu0 0
        %1487 = vmatpush1.bf16.msra.mxu0 0
        %1488 = vmatprep.subr.bf16.mxu0 0
        %1489 = vmatpush1.bf16.msra.mxu0 0
        %1490 = vmatprep.subr.bf16.mxu0 0
        %1491 = vmatpush1.bf16.msra.mxu0 0
        %1492 = vmatprep.subr.bf16.mxu0 0
        %1493 = vmatpush1.bf16.msra.mxu0 0
        %1494 = vmatprep.subr.bf16.mxu0 0
        %1495 = vmatpush1.bf16.msra.mxu0 0
        %1496 = vmatprep.subr.bf16.mxu0 0
        %1497 = vmatpush1.bf16.msra.mxu0 %v613
        %1498 = vmatprep.subr.bf16.mxu0 0
        %1499 = vmatpush1.bf16.msra.mxu0 %v612
        %1500 = vmatprep.subr.bf16.mxu0 0
        %1501 = vmatpush2.bf16.msra.mxu0 0
        %1502 = vmatprep.subr.bf16.mxu0 0
        %1503 = vmatpush2.bf16.msra.mxu0 0
        %1504 = vmatprep.subr.bf16.mxu0 0
        %1505 = vmatpush2.bf16.msra.mxu0 0
        %1506 = vmatprep.subr.bf16.mxu0 0
        %1507 = vmatpush2.bf16.msra.mxu0 0
        %1508 = vmatprep.subr.bf16.mxu0 0
        %1509 = vmatpush2.bf16.msra.mxu0 0
        %1510 = vmatprep.subr.bf16.mxu0 0
        %1511 = vmatpush2.bf16.msra.mxu0 0
        %1512 = vmatprep.subr.bf16.mxu0 0
        %1513 = vmatpush2.bf16.msra.mxu0 0
        %1514 = vmatprep.subr.bf16.mxu0 0
        %1515 = vmatpush2.bf16.msra.mxu0 0
        %1516 = vmatprep.mubr.bf16.mxu0 0
        %1517 = vmatmul.mubr.bf16.gmra.mxu0 %v1482
        %v1518 = vpop.f32.mrf.mxu0
        %v1519 = vadd.f32 1e-05, %v1518
        %v1520 = vpop.f32.mrf.mxu0
        %v1521 = vpop.f32.mrf.mxu0
        %v1522 = vpop.f32.mrf.mxu0
        %1523 = vdwg.mxu0
        %v1524 = vrsqrt.pop %v1519
        %v1525 = vmul.f32 %v1478, %v1524
        %v1527 = vlaneseq
        %v1528 = vshrl.u32 %v1527, 7
        %v1529 = vsub.s32 0, %v1528
        %v1530 = vrot.slane %v601, %v1529
        %v1532 = vmul.f32 %v1525, %v1530
        %v1534 = vlaneseq
        %v1535 = vshrl.u32 %v1534, 7
        %v1536 = vsub.s32 0, %v1535
        %v1537 = vrot.slane %v602, %v1536
        %v1539 = vadd.f32 %v1532, %v1537
        %v1540 = vld [vmem:[%s10] sm:$0xf]
        %v1541 = vld [vmem:[%s10 + $0x4] sm:$0xf]
        %v1542 = vld [vmem:[%s10 + $0x8] sm:$0xf]
        %v1543 = vld [vmem:[%s10 + $0xc] sm:$0xf]
        %v1544 = vpack.c.bf16 %v1539, %v1539
        %v1545 = vld [vmem:[%s11] sm:$0x1]
        %v1547 = vlaneseq
        %v1548 = vshrl.u32 %v1547, 7
        %v1549 = vsub.s32 0, %v1548
        %v1550 = vrot.slane %v1545, %v1549
        %v1556 = vunpack.c.l.b16 %v1540
        %v1557 = vunpack.c.l.b16 %v1541
        %v1558 = vunpack.c.l.b16 %v1542
        %v1559 = vunpack.c.l.b16 %v1543
        %v1560 = vpack.c.b16 %v1557, %v1556
        %v1561 = vpack.c.b16 %v1559, %v1558
        %v1565 = vsel %vm616, %v1544, 0
        %1567 = vmatprep.subr.bf16.mxu0 0
        %1568 = vmatpush1.bf16.msra.mxu0 0
        %1569 = vmatprep.subr.bf16.mxu0 0
        %1570 = vmatpush1.bf16.msra.mxu0 0
        %1571 = vmatprep.subr.bf16.mxu0 0
        %1572 = vmatpush1.bf16.msra.mxu0 0
        %1573 = vmatprep.subr.bf16.mxu0 0
        %1574 = vmatpush1.bf16.msra.mxu0 0
        %1575 = vmatprep.subr.bf16.mxu0 0
        %1576 = vmatpush1.bf16.msra.mxu0 0
        %1577 = vmatprep.subr.bf16.mxu0 0
        %1578 = vmatpush1.bf16.msra.mxu0 0
        %1579 = vmatprep.subr.bf16.mxu0 0
        %1580 = vmatpush1.bf16.msra.mxu0 %v1561
        %1581 = vmatprep.subr.bf16.mxu0 0
        %1582 = vmatpush1.bf16.msra.mxu0 %v1560
        %1583 = vmatprep.subr.bf16.mxu0 0
        %1584 = vmatpush2.bf16.msra.mxu0 0
        %1585 = vmatprep.subr.bf16.mxu0 0
        %1586 = vmatpush2.bf16.msra.mxu0 0
        %1587 = vmatprep.subr.bf16.mxu0 0
        %1588 = vmatpush2.bf16.msra.mxu0 0
        %1589 = vmatprep.subr.bf16.mxu0 0
        %1590 = vmatpush2.bf16.msra.mxu0 0
        %1591 = vmatprep.subr.bf16.mxu0 0
        %1592 = vmatpush2.bf16.msra.mxu0 0
        %1593 = vmatprep.subr.bf16.mxu0 0
        %1594 = vmatpush2.bf16.msra.mxu0 0
        %1595 = vmatprep.subr.bf16.mxu0 0
        %1596 = vmatpush2.bf16.msra.mxu0 0
        %1597 = vmatprep.subr.bf16.mxu0 0
        %1598 = vmatpush2.bf16.msra.mxu0 0
        %1599 = vmatprep.mubr.bf16.mxu0 0
        %1600 = vmatmul.mubr.bf16.gmra.mxu0 %v1565
        %v1601 = vpop.f32.mrf.mxu0
        %v1602 = vadd.f32 %v1550, %v1601
        %v1603 = vpop.f32.mrf.mxu0
        %v1604 = vpop.f32.mrf.mxu0
        %v1605 = vpop.f32.mrf.mxu0
        %1606 = vdwg.mxu0
        %v1607 = vmul.f32 %v1602, 0.5
        %v1608 = vmul.f32 %v1602, %v1602
        %v1609 = vmul.f32 %v1608, %v1602
        %v1610 = vmul.f32 %v1609, 0.044715
        %v1611 = vadd.f32 %v1602, %v1610
        %v1612 = vmul.f32 %v1611, 0.7978846
        %v1613 = vtanh.pop %v1612
        %v1614 = vadd.f32 %v1613, 1.0
        %v1615 = vmul.f32 %v1607, %v1614
        %v1616 = vld [vmem:[%s12] sm:$0xf]
        %v1617 = vld [vmem:[%s12 + $0x4] sm:$0xf]
        %v1618 = vld [vmem:[%s12 + $0x8] sm:$0xf]
        %v1619 = vld [vmem:[%s12 + $0xc] sm:$0xf]
        %v1620 = vld [vmem:[%s12 + $0x10] sm:$0xf]
        %v1621 = vld [vmem:[%s12 + $0x14] sm:$0xf]
        %v1622 = vld [vmem:[%s12 + $0x18] sm:$0xf]
        %v1623 = vld [vmem:[%s12 + $0x1c] sm:$0xf]
        %v1624 = vld [vmem:[%s12 + $0x20] sm:$0xf]
        %v1625 = vld [vmem:[%s12 + $0x24] sm:$0xf]
        %v1626 = vld [vmem:[%s12 + $0x28] sm:$0xf]
        %v1627 = vld [vmem:[%s12 + $0x2c] sm:$0xf]
        %v1628 = vld [vmem:[%s12 + $0x30] sm:$0xf]
        %v1629 = vld [vmem:[%s12 + $0x34] sm:$0xf]
        %v1630 = vld [vmem:[%s12 + $0x38] sm:$0xf]
        %v1631 = vld [vmem:[%s12 + $0x3c] sm:$0xf]
        %v1632 = vpack.c.bf16 %v1615, %v1615
        %v1633 = vld [vmem:[%s13] sm:$0x1]
        %v1635 = vlaneseq
        %v1636 = vshrl.u32 %v1635, 7
        %v1637 = vsub.s32 0, %v1636
        %v1638 = vrot.slane %v1633, %v1637
        %v1656 = vunpack.c.l.b16 %v1616
        %v1657 = vunpack.c.l.b16 %v1617
        %v1658 = vunpack.c.l.b16 %v1618
        %v1659 = vunpack.c.l.b16 %v1619
        %v1660 = vunpack.c.l.b16 %v1620
        %v1661 = vunpack.c.l.b16 %v1621
        %v1662 = vunpack.c.l.b16 %v1622
        %v1663 = vunpack.c.l.b16 %v1623
        %v1664 = vunpack.c.l.b16 %v1624
        %v1665 = vunpack.c.l.b16 %v1625
        %v1666 = vunpack.c.l.b16 %v1626
        %v1667 = vunpack.c.l.b16 %v1627
        %v1668 = vunpack.c.l.b16 %v1628
        %v1669 = vunpack.c.l.b16 %v1629
        %v1670 = vunpack.c.l.b16 %v1630
        %v1671 = vunpack.c.l.b16 %v1631
        %v1672 = vpack.c.b16 %v1657, %v1656
        %v1673 = vpack.c.b16 %v1659, %v1658
        %v1674 = vpack.c.b16 %v1661, %v1660
        %v1675 = vpack.c.b16 %v1663, %v1662
        %v1676 = vpack.c.b16 %v1665, %v1664
        %v1677 = vpack.c.b16 %v1667, %v1666
        %v1678 = vpack.c.b16 %v1669, %v1668
        %v1679 = vpack.c.b16 %v1671, %v1670
        %1688 = vmatprep.subr.bf16.mxu0 0
        %1689 = vmatpush1.bf16.msra.mxu0 %v1679
        %1690 = vmatprep.subr.bf16.mxu0 0
        %1691 = vmatpush1.bf16.msra.mxu0 %v1678
        %1692 = vmatprep.subr.bf16.mxu0 0
        %1693 = vmatpush1.bf16.msra.mxu0 %v1677
        %1694 = vmatprep.subr.bf16.mxu0 0
        %1695 = vmatpush1.bf16.msra.mxu0 %v1676
        %1696 = vmatprep.subr.bf16.mxu0 0
        %1697 = vmatpush1.bf16.msra.mxu0 %v1675
        %1698 = vmatprep.subr.bf16.mxu0 0
        %1699 = vmatpush1.bf16.msra.mxu0 %v1674
        %1700 = vmatprep.subr.bf16.mxu0 0
        %1701 = vmatpush1.bf16.msra.mxu0 %v1673
        %1702 = vmatprep.subr.bf16.mxu0 0
        %1703 = vmatpush1.bf16.msra.mxu0 %v1672
        %1704 = vmatprep.subr.bf16.mxu0 0
        %1705 = vmatpush2.bf16.msra.mxu0 0
        %1706 = vmatprep.subr.bf16.mxu0 0
        %1707 = vmatpush2.bf16.msra.mxu0 0
        %1708 = vmatprep.subr.bf16.mxu0 0
        %1709 = vmatpush2.bf16.msra.mxu0 0
        %1710 = vmatprep.subr.bf16.mxu0 0
        %1711 = vmatpush2.bf16.msra.mxu0 0
        %1712 = vmatprep.subr.bf16.mxu0 0
        %1713 = vmatpush2.bf16.msra.mxu0 0
        %1714 = vmatprep.subr.bf16.mxu0 0
        %1715 = vmatpush2.bf16.msra.mxu0 0
        %1716 = vmatprep.subr.bf16.mxu0 0
        %1717 = vmatpush2.bf16.msra.mxu0 0
        %1718 = vmatprep.subr.bf16.mxu0 0
        %1719 = vmatpush2.bf16.msra.mxu0 0
        %1720 = vmatprep.mubr.bf16.mxu0 0
        %1721 = vmatmul.mubr.bf16.gmra.mxu0 %v1632
        %v1722 = vpop.f32.mrf.mxu0
        %v1723 = vadd.f32 %v1638, %v1722
        %v1724 = vpop.f32.mrf.mxu0
        %v1725 = vpop.f32.mrf.mxu0
        %v1726 = vpop.f32.mrf.mxu0
        %1727 = vdwg.mxu0
        %v1728 = vmul.f32 %v1723, 0.5
        %v1729 = vmul.f32 %v1723, %v1723
        %v1730 = vmul.f32 %v1729, %v1723
        %v1731 = vmul.f32 %v1730, 0.044715
        %v1732 = vadd.f32 %v1723, %v1731
        %v1733 = vmul.f32 %v1732, 0.7978846
        %v1734 = vtanh.pop %v1733
        %v1735 = vadd.f32 %v1734, 1.0
        %v1736 = vmul.f32 %v1728, %v1735
        %v1737 = vadd.f32 %v1736, %v1433
        %v1738 = vld [vmem:[%s14] sm:$0xf]
        %v1739 = vld [vmem:[%s14 + $0x4] sm:$0xf]
        %v1740 = vld [vmem:[%s14 + $0x8] sm:$0xf]
        %v1741 = vld [vmem:[%s14 + $0xc] sm:$0xf]
        %v1742 = vpack.c.bf16 %v1737, %v1737
        %v1743 = vld [vmem:[%s15] sm:$0x1]
        %v1745 = vlaneseq
        %v1746 = vshrl.u32 %v1745, 7
        %v1747 = vsub.s32 0, %v1746
        %v1748 = vrot.slane %v1743, %v1747
        %v1754 = vunpack.c.l.b16 %v1738
        %v1755 = vunpack.c.l.b16 %v1739
        %v1756 = vunpack.c.l.b16 %v1740
        %v1757 = vunpack.c.l.b16 %v1741
        %v1758 = vpack.c.b16 %v1755, %v1754
        %v1759 = vpack.c.b16 %v1757, %v1756
        %v1763 = vsel %vm616, %v1742, 0
        %1765 = vmatprep.subr.bf16.mxu0 0
        %1766 = vmatpush1.bf16.msra.mxu0 0
        %1767 = vmatprep.subr.bf16.mxu0 0
        %1768 = vmatpush1.bf16.msra.mxu0 0
        %1769 = vmatprep.subr.bf16.mxu0 0
        %1770 = vmatpush1.bf16.msra.mxu0 0
        %1771 = vmatprep.subr.bf16.mxu0 0
        %1772 = vmatpush1.bf16.msra.mxu0 0
        %1773 = vmatprep.subr.bf16.mxu0 0
        %1774 = vmatpush1.bf16.msra.mxu0 0
        %1775 = vmatprep.subr.bf16.mxu0 0
        %1776 = vmatpush1.bf16.msra.mxu0 0
        %1777 = vmatprep.subr.bf16.mxu0 0
        %1778 = vmatpush1.bf16.msra.mxu0 %v1759
        %1779 = vmatprep.subr.bf16.mxu0 0
        %1780 = vmatpush1.bf16.msra.mxu0 %v1758
        %1781 = vmatprep.subr.bf16.mxu0 0
        %1782 = vmatpush2.bf16.msra.mxu0 0
        %1783 = vmatprep.subr.bf16.mxu0 0
        %1784 = vmatpush2.bf16.msra.mxu0 0
        %1785 = vmatprep.subr.bf16.mxu0 0
        %1786 = vmatpush2.bf16.msra.mxu0 0
        %1787 = vmatprep.subr.bf16.mxu0 0
        %1788 = vmatpush2.bf16.msra.mxu0 0
        %1789 = vmatprep.subr.bf16.mxu0 0
        %1790 = vmatpush2.bf16.msra.mxu0 0
        %1791 = vmatprep.subr.bf16.mxu0 0
        %1792 = vmatpush2.bf16.msra.mxu0 0
        %1793 = vmatprep.subr.bf16.mxu0 0
        %1794 = vmatpush2.bf16.msra.mxu0 0
        %1795 = vmatprep.subr.bf16.mxu0 0
        %1796 = vmatpush2.bf16.msra.mxu0 0
        %1797 = vmatprep.mubr.bf16.mxu0 0
        %1798 = vmatmul.mubr.bf16.gmra.mxu0 %v1763
        %v1799 = vpop.f32.mrf.mxu0
        %v1800 = vadd.f32 %v1748, %v1799
        %v1801 = vpop.f32.mrf.mxu0
        %v1802 = vpop.f32.mrf.mxu0
        %v1803 = vpop.f32.mrf.mxu0
        %1804 = vdwg.mxu0
        %1805 = vst.msk [vmem:[%s588] sm:$0xff] %vm616, %v1800
        %s1806 = sand.u32 %s383, 1
        %s1807 = scalar_lea.sflag [#allocation4], %s1806
        %s1808 = sand.u32 %s383, 1
        %s1809 = smul.addr %s1808, 8
        %s1810 = scalar_lea.vmem [#allocation13], %s1809
        // Predicated region
        $region109: #{tpu_custom_call.1} parent=83 // pred_check
          %p1811 = pneg %p393
        $region110: #{tpu_custom_call.1} parent=83 // pred_check_branch
          %1813 = sbr.rel (%p1811) target = $region112
        $region111: #{tpu_custom_call.1} parent=83 // pred_region
          %s1815 = ssub.s32 128, 128
          %1816 = vsyncadd %s1807, %s1815
          %s1817 = smul.addr %s34, 128
          %s1818 = scalar_lea.hbm %s16, %s1817
          %s1820 = sshll.u32 %s1810, 4
          %s1821 = int_to_ptr.vmem [resolvable:$true] %s1820
          %1823 = dma.vmem_to_hbm [thread:$0]  %s1821, 128, %s1818, %s1807
        $region112: #{tpu_custom_call.1} parent=83 // pred_fallthru
          _
      $region84: #{tpu_custom_call.1} parent=5 // pred_fallthru
        _
      %p1824 = scmp.le.s32.totalorder 2, %s29
      // Predicated region
      $region113: #{tpu_custom_call.1} parent=5 // pred_check
        %p1825 = pneg %p1824
      $region114: #{tpu_custom_call.1} parent=5 // pred_check_branch
        %1827 = sbr.rel (%p1825) target = $region116
      $region115: #{tpu_custom_call.1} parent=5 // pred_region
        %s1828 = ssub.s32 %s29, 2
        // Predicated region
        $region117: #{tpu_custom_call.1} parent=115 // pred_check
          %p1829 = pneg %p399
        $region118: #{tpu_custom_call.1} parent=115 // pred_check_branch
          %1831 = sbr.rel (%p1829) target = $region120
        $region119: #{tpu_custom_call.1} parent=115 // pred_region
          %s1832 = sand.u32 %s384, 1
          %s1833 = scalar_lea.sflag [#allocation4], %s1832
          %s1834 = sand.u32 %s384, 1
          %s1835 = smul.addr %s1834, 8
          %s1836 = scalar_lea.vmem [#allocation13], %s1835
          %1837 = dma.done %s1833, 128
        $region120: #{tpu_custom_call.1} parent=115 // pred_fallthru
          _
      $region116: #{tpu_custom_call.1} parent=5 // pred_fallthru
        _
    $region6: #{tpu_custom_call.1} parent=1 // loop_footer
      %s33 = sadd.s32 1, %s29
    $region7: #{tpu_custom_call.1} parent=1 // loop_footer_branch
      %28 = sbr.rel target = $region3
    $region8: #{tpu_custom_call.1} parent=1 // loop_exit
      _
    %1838 = vsyncpa [#allocation3], 1
    %s1839 = scalar_lea.sflag [#allocation3], 1
    %1840 = vsyncpa %s1839, 1
    %1841 = vsyncpa [#allocation6], 1
    %1842 = vsyncpa [#allocation9], 1
    %1843 = vsyncpa [#allocation12], 1
    %1844 = vsyncpa [#allocation4], 1
    %s1845 = scalar_lea.sflag [#allocation4], 1
    %1846 = vsyncpa %s1845, 1

</llo_original>
